<compile_context>
chip_gen: v5e
topology: v5e:2x2
jax: 0.10.0
libtpu: 0.0.40
codegen_flags: <defaults>
</compile_context>

<pallas_src>
import math

import jax
import jax.numpy as jnp
from jax.experimental import pallas as pl
from jax.experimental.pallas import tpu as pltpu

EPS = 1e-5          # torch.nn.BatchNorm1d default eps
LEAKY_SLOPE = 0.2   # GATv2Conv default negative_slope

# Rows of the single packed parameter-vector array (all rows zero-padded to the
# widest width; real widths are recovered in-kernel from the weight ref shapes).
(R_BS, R_BF,
 R_P1B1, R_P1G1, R_P1BE1, R_P1B2, R_P1G2, R_P1BE2, R_P1B3,
 R_ATT, R_BO,
 R_P2B1, R_P2G1, R_P2BE1, R_P2B2, R_P2G2, R_P2BE2, R_P2B3) = range(18)
NUM_VEC_ROWS = 18


# ----------------------------------------------------------------------------
# In-kernel helpers (operate on values, not refs)
# ----------------------------------------------------------------------------
def _bn_train(h, gamma, beta):
    """BatchNorm1d training mode: biased batch stats, eps=1e-5, affine (f32)."""
    mu = jnp.mean(h, axis=0, keepdims=True)
    var = jnp.mean((h - mu) * (h - mu), axis=0, keepdims=True)
    return (h - mu) * jax.lax.rsqrt(var + EPS) * gamma + beta


def _linear(x, w_bf16, b):
    """bf16 MXU matmul with f32 accumulate + f32 bias add."""
    return jnp.dot(x.astype(jnp.bfloat16), w_bf16,
                   preferred_element_type=jnp.float32) + b


def _mlp3_bn(x, w1, b1, g1, be1, w2, b2, g2, be2, w3, b3):
    """Linear -> BN -> ReLU -> Linear -> BN -> ReLU -> Linear."""
    h = jnp.maximum(_bn_train(_linear(x, w1, b1), g1, be1), 0.0)
    h = jnp.maximum(_bn_train(_linear(h, w2, b2), g2, be2), 0.0)
    return _linear(h, w3, b3)


# ----------------------------------------------------------------------------
# Fused kernel: one program, both branches, lane-aligned concat into out_ref.
# ----------------------------------------------------------------------------
def _fused_vicreg_kernel(
        # branch 0 (image): stand-in backbone_1 + projector_1 weights
        ximg_ref, ws_ref, wf_ref, p1w1_ref, p1w2_ref, p1w3_ref,
        # branch 1 (graph): inputs + stand-in GATv2 backbone_2 + projector_2
        gx_ref, adj_ref, he_ref, pool_ref, wlr_ref, wo_ref,
        p2w1_ref, p2w2_ref, p2w3_ref,
        # single packed vector array (biases, BN gamma/beta, att)
        vec_ref,
        # output: torch.cat((z1, z2), 1)
        out_ref):
    V = vec_ref[...]                                     # (18, Wmax) f32
    row = lambda r, w: V[r:r + 1, :w]                    # lane-aligned slices only

    feat_d = ws_ref.shape[1]
    hid1 = p1w1_ref.shape[1]
    out1 = p1w3_ref.shape[1]
    dgat = wlr_ref.shape[1] // 2
    szo = wo_ref.shape[1]          # already padded to a 128 multiple in wrapper
    h2a = p2w1_ref.shape[1]
    h2b = p2w2_ref.shape[1]
    out2 = p2w3_ref.shape[1]

    # ---------------- branch 0: image backbone_1 + projector_1 ----------------
    # TODO(synk): backbone_1 (pretrained ResNet-18 trunk) is an external module;
    # stand-in = linear stem + ReLU followed by the module's replaced fc Linear.
    h = _linear(ximg_ref[...], ws_ref[...], row(R_BS, feat_d))
    feats = _linear(jnp.maximum(h, 0.0), wf_ref[...], row(R_BF, feat_d))
    z1 = _mlp3_bn(
        feats,
        p1w1_ref[...], row(R_P1B1, hid1), row(R_P1G1, hid1), row(R_P1BE1, hid1),
        p1w2_ref[...], row(R_P1B2, hid1), row(R_P1G2, hid1), row(R_P1BE2, hid1),
        p1w3_ref[...], row(R_P1B3, out1))
    out_ref[:, :out1] = z1

    # ---------------- branch 1: graph backbone_2 + projector_2 ----------------
    # TODO(synk): backbone_2 (gcm.GraphClassificationModel w/ GATv2Conv) is an
    # external module; stand-in = one GATv2-style edge-featured attention layer
    # + per-graph mean pool + Linear readout.
    y = jnp.dot(gx_ref[...], wlr_ref[...],
                preferred_element_type=jnp.float32)                  # (N, 2*D), fused Wl|Wr
    hl = y[:, :dgat]
    hr = y[:, dgat:]
    # TODO(synk): tile this (N,N,D) broadcast over the source-node axis once N grows.
    m = hl[:, None, :] + hr[None, :, :] + he_ref[...]                 # (N, N, D) f32
    m = jnp.where(m > 0, m, LEAKY_SLOPE * m)                          # LeakyReLU
    att = row(R_ATT, dgat)                                            # (1, D)
    scores = jnp.sum(m * att[None, :, :], axis=-1)                    # (N, N)

    adj = adj_ref[...]
    scores = jnp.where(adj > 0, scores, jnp.float32(-1e30))
    smax = jnp.max(scores, axis=1, keepdims=True)
    p = jnp.exp(scores - smax)                                        # 0 off-edges
    alpha = p / jnp.sum(p, axis=1, keepdims=True)                     # exact softmax

    hout = jnp.dot(alpha, hr, preferred_element_type=jnp.float32)     # (N, D)
    pooled = jnp.dot(pool_ref[...], hout,
                     preferred_element_type=jnp.float32)              # (G, D) mean pool
    g = _linear(pooled, wo_ref[...], row(R_BO, szo))                  # (G, szo)
    z2 = _mlp3_bn(
        g,
        p2w1_ref[...], row(R_P2B1, h2a), row(R_P2G1, h2a), row(R_P2BE1, h2a),
        p2w2_ref[...], row(R_P2B2, h2b), row(R_P2G2, h2b), row(R_P2BE2, h2b),
        p2w3_ref[...], row(R_P2B3, out2))
    out_ref[:, out1:] = z2


# ----------------------------------------------------------------------------
# Wrapper: one gridless pallas_call, whole arrays resident in VMEM (~1.5 MB).
# ----------------------------------------------------------------------------
def vicreg_fused(args, batch, proj_out):
    # TODO(synk): at production dims (proj_hidden/proj_output = 4096) the
    # projector weights (64 MiB f32 each) exceed v7x VMEM; the ladder must
    # become a K-tiled grid with BlockSpec-tiled weights + an f32 VMEM
    # accumulator (init/finalize via pl.when).  Whole-array residency is only
    # valid for these small demo shapes.
    # TODO(synk): on v7x the two branches can be split across the 2 TensorCores
    # (two pallas_calls or pl.core_map) so each core only holds its own weights.
    return pl.pallas_call(
        _fused_vicreg_kernel,
        out_shape=jax.ShapeDtypeStruct((batch, 2 * proj_out), jnp.float32),
        in_specs=[pl.BlockSpec(memory_space=pltpu.MemorySpace.VMEM)
                  for _ in args],
        out_specs=pl.BlockSpec(memory_space=pltpu.MemorySpace.VMEM),
    )(*args)


# ----------------------------------------------------------------------------
# Parameter init (deterministic, torch.nn.Linear-style uniform)
# ----------------------------------------------------------------------------
def init_linear(key, fan_in, fan_out):
    kw, kb = jax.random.split(key)
    bound = 1.0 / math.sqrt(fan_in)
    w = jax.random.uniform(kw, (fan_in, fan_out), jnp.float32, -bound, bound)
    b = jax.random.uniform(kb, (1, fan_out), jnp.float32, -bound, bound)
    return w, b


def init_bn(dim):
    return jnp.ones((1, dim), jnp.float32), jnp.zeros((1, dim), jnp.float32)


def _round_up(x, m):
    return ((x + m - 1) // m) * m


def _pad_to(a, rows=None, cols=None):
    r = a.shape[0] if rows is None else rows
    c = a.shape[1] if cols is None else cols
    return jnp.pad(a, ((0, r - a.shape[0]), (0, c - a.shape[1])))


# ----------------------------------------------------------------------------
# Full forward
# ----------------------------------------------------------------------------
def vicreg_forward(timage, graph_x, edge_index, edge_attr, batch_vec, params):
    B = timage.shape[0]
    N = graph_x.shape[0]
    G = B  # number of graphs must match the image batch for the final concat

    ws, bs, wf, bf = params["backbone1"]
    w1, b1, g1, be1, w2, b2, g2, be2, w3, b3 = params["projector1"]
    wl, wr, we, att, wo, bo = params["backbone2"]
    (p2w1, p2b1, p2g1, p2be1, p2w2, p2b2, p2g2, p2be2,
     p2w3, p2b3) = params["projector2"]

    dgat = wl.shape[1]
    proj_out = w3.shape[1]

    # ---- branch 0 input: flatten NCHW image row-major -----------------------
    x_flat = timage.reshape(B, -1).astype(jnp.bfloat16)

    # ---- branch 1 glue: densify graph (plain JAX) ----------------------------
    # TODO(synk): duplicate (dst,src) edges overwrite in the dense form (last
    # write wins), diverging from PyG message passing on multigraphs; at larger
    # N pass edge_index/batch via scalar prefetch instead of dense (N,N,D).
    src, dst = edge_index[0], edge_index[1]
    adj = jnp.zeros((N, N), jnp.float32).at[dst, src].set(1.0)
    adj = adj.at[jnp.arange(N), jnp.arange(N)].set(1.0)            # self loops
    # Edge-feature linear (We) folded onto the sparse edge list here so the
    # kernel gets a lane-dense (N, N, D) tensor instead of a 16x-lane-padded
    # (N*N, Fe=8) buffer and a 94%-wasted-K MXU matmul.
    he_edges = jnp.dot(edge_attr.astype(jnp.float32), we)          # (E, D)
    he = jnp.zeros((N, N, dgat), jnp.float32).at[dst, src].set(he_edges)
    onehot = (batch_vec[None, :] == jnp.arange(G)[:, None]).astype(jnp.float32)
    pool = onehot / jnp.sum(onehot, axis=1, keepdims=True)         # mean-pool matrix

    # ---- pad the sz_out-wide stage to a 128-lane boundary (exact, zero pads) --
    szo_pad = _round_up(wo.shape[1], 128)
    wo_p = _pad_to(wo, cols=szo_pad)
    bo_p = _pad_to(bo, cols=szo_pad)
    p2w1_p = _pad_to(p2w1, rows=szo_pad)

    # ---- pack every (1, dim) vector into ONE array (zero-padded rows) --------
    vec_rows = [bs, bf, b1, g1, be1, b2, g2, be2, b3,
                att, bo_p, p2b1, p2g1, p2be1, p2b2, p2g2, p2be2, p2b3]
    assert len(vec_rows) == NUM_VEC_ROWS
    wmax = _round_up(max(v.shape[1] for v in vec_rows), 128)
    vec = jnp.concatenate([_pad_to(v, cols=wmax) for v in vec_rows], axis=0)

    bf16 = jnp.bfloat16
    args = (x_flat,
            ws.astype(bf16), wf.astype(bf16),
            w1.astype(bf16), w2.astype(bf16), w3.astype(bf16),
            graph_x.astype(bf16), adj, he, pool,
            jnp.concatenate([wl, wr], axis=1).astype(bf16),        # fused Wl|Wr
            wo_p.astype(bf16),
            p2w1_p.astype(bf16), p2w2.astype(bf16), p2w3.astype(bf16),
            vec)
    return vicreg_fused(args, B, proj_out)


# ----------------------------------------------------------------------------
if __name__ == "__main__":
    # Small shapes consistent with the module structure.
    B = 8                    # image batch == number of graphs
    C, H, W = 4, 16, 16      # image
    FEATURES_DIM = 128       # resnet feature dim (scaled down from 512)
    PROJ_HIDDEN = 256        # proj_hidden_dim (scaled down from 4096)
    PROJ_OUT = 256           # proj_output_dim (scaled down from 4096)
    SZ_OUT = 64              # graph-backbone output dim (module default)
    NODES_PER_GRAPH = 4
    N = B * NODES_PER_GRAPH  # total nodes
    FIN = 16                 # node feature dim
    FE = 8                   # edge feature dim
    DGAT = 128               # GAT hidden dim (full lane width)

    # TODO(synk): the kernel hard-codes the 2-stage doubling ladder of
    # projector_2 (sz_out -> 2*sz_out -> 4*sz_out == proj_output_dim), matching
    # the torch while-loop at these dims.
    assert 4 * SZ_OUT == PROJ_OUT

    key = jax.random.PRNGKey(0)
    keys = jax.random.split(key, 24)

    params = {}
    # backbone_1: stand-in stem Linear(C*H*W -> FEATURES_DIM) + fc Linear
    ws, bs = init_linear(keys[0], C * H * W, FEATURES_DIM)
    wf, bf = init_linear(keys[1], FEATURES_DIM, FEATURES_DIM)
    params["backbone1"] = (ws, bs, wf, bf)

    # projector_1: Linear(128->256) BN ReLU Linear(256->256) BN ReLU Linear(256->256)
    w1, b1 = init_linear(keys[2], FEATURES_DIM, PROJ_HIDDEN)
    g1, be1 = init_bn(PROJ_HIDDEN)
    w2, b2 = init_linear(keys[3], PROJ_HIDDEN, PROJ_HIDDEN)
    g2, be2 = init_bn(PROJ_HIDDEN)
    w3, b3 = init_linear(keys[4], PROJ_HIDDEN, PROJ_OUT)
    params["projector1"] = (w1, b1, g1, be1, w2, b2, g2, be2, w3, b3)

    # backbone_2: stand-in GATv2 layer (Wl, Wr, We, att) + readout Linear(DGAT -> SZ_OUT)
    wl, _ = init_linear(keys[5], FIN, DGAT)
    wr, _ = init_linear(keys[6], FIN, DGAT)
    we, _ = init_linear(keys[7], FE, DGAT)
    att = jax.random.normal(keys[8], (1, DGAT), jnp.float32) * 0.1
    wo, bo = init_linear(keys[9], DGAT, SZ_OUT)
    params["backbone2"] = (wl, wr, we, att, wo, bo)

    # projector_2: 64->128 BN ReLU, 128->256 BN ReLU, 256->256 (doubling loop + final Linear)
    p2w1, p2b1 = init_linear(keys[10], SZ_OUT, 2 * SZ_OUT)
    p2g1, p2be1 = init_bn(2 * SZ_OUT)
    p2w2, p2b2 = init_linear(keys[11], 2 * SZ_OUT, 4 * SZ_OUT)
    p2g2, p2be2 = init_bn(4 * SZ_OUT)
    p2w3, p2b3 = init_linear(keys[12], 4 * SZ_OUT, PROJ_OUT)
    params["projector2"] = (p2w1, p2b1, p2g1, p2be1,
                            p2w2, p2b2, p2g2, p2be2, p2w3, p2b3)

    # Inputs.
    timage = jax.random.normal(keys[13], (B, C, H, W), jnp.float32)   # NCHW
    graph_x = jax.random.normal(keys[14], (N, FIN), jnp.float32)
    edge_attr_list = jax.random.normal(keys[15], (N * 2, FE), jnp.float32)

    src_list, dst_list = [], []
    for g in range(B):                       # ring graph inside every sample
        base = g * NODES_PER_GRAPH
        for i in range(NODES_PER_GRAPH):
            j = (i + 1) % NODES_PER_GRAPH
            src_list += [base + i, base + j]
            dst_list += [base + j, base + i]
    edge_index = jnp.array([src_list, dst_list], dtype=jnp.int32)     # (2, E)
    batch_vec = jnp.repeat(jnp.arange(B, dtype=jnp.int32), NODES_PER_GRAPH)

    out = vicreg_forward(timage, graph_x, edge_index, edge_attr_list,
                         batch_vec, params)
    out = jax.block_until_ready(out)
    assert out.shape == (B, PROJ_OUT + PROJ_OUT), out.shape
    assert out.dtype == jnp.float32
    assert bool(jnp.all(jnp.isfinite(out)))
    print("KERNEL_OK")
</pallas_src>

<mosaic_0001>
module attributes {stable_mosaic.version = 11 : i64} {
  func.func @_fused_vicreg_kernel(%arg0: memref<8x1024xbf16, #tpu.memory_space<vmem>>, %arg1: memref<1024x128xbf16, #tpu.memory_space<vmem>>, %arg2: memref<128x128xbf16, #tpu.memory_space<vmem>>, %arg3: memref<128x256xbf16, #tpu.memory_space<vmem>>, %arg4: memref<256x256xbf16, #tpu.memory_space<vmem>>, %arg5: memref<256x256xbf16, #tpu.memory_space<vmem>>, %arg6: memref<32x16xbf16, #tpu.memory_space<vmem>>, %arg7: memref<32x32xf32, #tpu.memory_space<vmem>>, %arg8: memref<32x32x128xf32, #tpu.memory_space<vmem>>, %arg9: memref<8x32xf32, #tpu.memory_space<vmem>>, %arg10: memref<16x256xbf16, #tpu.memory_space<vmem>>, %arg11: memref<128x128xbf16, #tpu.memory_space<vmem>>, %arg12: memref<128x128xbf16, #tpu.memory_space<vmem>>, %arg13: memref<128x256xbf16, #tpu.memory_space<vmem>>, %arg14: memref<256x256xbf16, #tpu.memory_space<vmem>>, %arg15: memref<18x256xf32, #tpu.memory_space<vmem>>, %arg16: memref<8x512xf32, #tpu.memory_space<vmem>>) attributes {dimension_semantics = [], scalar_prefetch = 0 : i64, scratch_operands = 0 : i64, tpu.core_type = #tpu.core_type<tc>} {
    %c0 = arith.constant 0 : index
    %c0_0 = arith.constant 0 : index
    %0 = vector.load %arg15[%c0, %c0_0] : memref<18x256xf32, #tpu.memory_space<vmem>>, vector<18x256xf32>
    %c0_1 = arith.constant 0 : index
    %c0_2 = arith.constant 0 : index
    %1 = vector.load %arg0[%c0_1, %c0_2] : memref<8x1024xbf16, #tpu.memory_space<vmem>>, vector<8x1024xbf16>
    %c0_3 = arith.constant 0 : index
    %c0_4 = arith.constant 0 : index
    %2 = vector.load %arg1[%c0_3, %c0_4] : memref<1024x128xbf16, #tpu.memory_space<vmem>>, vector<1024x128xbf16>
    %3 = vector.extract_strided_slice %0 {offsets = [0, 0], sizes = [1, 128], strides = [1, 1]} : vector<18x256xf32> to vector<1x128xf32>
    %cst = arith.constant dense<0.000000e+00> : vector<8x128xf32>
    %4 = tpu.matmul %1, %2, %cst {dimension_numbers = #tpu.dot_dimension_numbers<[1], [0], [0], [1], [0, 0, 1, 1], [], []>} : vector<8x1024xbf16>, vector<1024x128xbf16>, vector<8x128xf32> -> vector<8x128xf32>
    %5 = vector.broadcast %3 : vector<1x128xf32> to vector<8x128xf32>
    %6 = arith.addf %4, %5 : vector<8x128xf32>
    %cst_5 = arith.constant 0.000000e+00 : f32
    %7 = vector.broadcast %cst_5 : f32 to vector<8x128xf32>
    %8 = arith.maximumf %6, %7 : vector<8x128xf32>
    %c0_6 = arith.constant 0 : index
    %c0_7 = arith.constant 0 : index
    %9 = vector.load %arg2[%c0_6, %c0_7] : memref<128x128xbf16, #tpu.memory_space<vmem>>, vector<128x128xbf16>
    %10 = vector.extract_strided_slice %0 {offsets = [1, 0], sizes = [1, 128], strides = [1, 1]} : vector<18x256xf32> to vector<1x128xf32>
    %11 = arith.truncf %8 : vector<8x128xf32> to vector<8x128xbf16>
    %cst_8 = arith.constant dense<0.000000e+00> : vector<8x128xf32>
    %12 = tpu.matmul %11, %9, %cst_8 {dimension_numbers = #tpu.dot_dimension_numbers<[1], [0], [0], [1], [0, 0, 1, 1], [], []>} : vector<8x128xbf16>, vector<128x128xbf16>, vector<8x128xf32> -> vector<8x128xf32>
    %13 = vector.broadcast %10 : vector<1x128xf32> to vector<8x128xf32>
    %14 = arith.addf %12, %13 : vector<8x128xf32>
    %c0_9 = arith.constant 0 : index
    %c0_10 = arith.constant 0 : index
    %15 = vector.load %arg3[%c0_9, %c0_10] : memref<128x256xbf16, #tpu.memory_space<vmem>>, vector<128x256xbf16>
    %16 = vector.extract_strided_slice %0 {offsets = [2, 0], sizes = [1, 256], strides = [1, 1]} : vector<18x256xf32> to vector<1x256xf32>
    %17 = vector.extract_strided_slice %0 {offsets = [3, 0], sizes = [1, 256], strides = [1, 1]} : vector<18x256xf32> to vector<1x256xf32>
    %18 = vector.extract_strided_slice %0 {offsets = [4, 0], sizes = [1, 256], strides = [1, 1]} : vector<18x256xf32> to vector<1x256xf32>
    %c0_11 = arith.constant 0 : index
    %c0_12 = arith.constant 0 : index
    %19 = vector.load %arg4[%c0_11, %c0_12] : memref<256x256xbf16, #tpu.memory_space<vmem>>, vector<256x256xbf16>
    %20 = vector.extract_strided_slice %0 {offsets = [5, 0], sizes = [1, 256], strides = [1, 1]} : vector<18x256xf32> to vector<1x256xf32>
    %21 = vector.extract_strided_slice %0 {offsets = [6, 0], sizes = [1, 256], strides = [1, 1]} : vector<18x256xf32> to vector<1x256xf32>
    %22 = vector.extract_strided_slice %0 {offsets = [7, 0], sizes = [1, 256], strides = [1, 1]} : vector<18x256xf32> to vector<1x256xf32>
    %c0_13 = arith.constant 0 : index
    %c0_14 = arith.constant 0 : index
    %23 = vector.load %arg5[%c0_13, %c0_14] : memref<256x256xbf16, #tpu.memory_space<vmem>>, vector<256x256xbf16>
    %24 = vector.extract_strided_slice %0 {offsets = [8, 0], sizes = [1, 256], strides = [1, 1]} : vector<18x256xf32> to vector<1x256xf32>
    %25 = arith.truncf %14 : vector<8x128xf32> to vector<8x128xbf16>
    %cst_15 = arith.constant dense<0.000000e+00> : vector<8x256xf32>
    %26 = tpu.matmul %25, %15, %cst_15 {dimension_numbers = #tpu.dot_dimension_numbers<[1], [0], [0], [1], [0, 0, 1, 1], [], []>} : vector<8x128xbf16>, vector<128x256xbf16>, vector<8x256xf32> -> vector<8x256xf32>
    %27 = vector.broadcast %16 : vector<1x256xf32> to vector<8x256xf32>
    %28 = arith.addf %26, %27 : vector<8x256xf32>
    %cst_16 = arith.constant dense<0.000000e+00> : vector<256xf32>
    %29 = vector.multi_reduction <add>, %28, %cst_16 [0] : vector<8x256xf32> to vector<256xf32>
    %30 = vector.shape_cast %29 : vector<256xf32> to vector<1x256xf32>
    %cst_17 = arith.constant 8.000000e+00 : f32
    %31 = vector.broadcast %cst_17 : f32 to vector<1x256xf32>
    %32 = arith.divf %30, %31 : vector<1x256xf32>
    %33 = vector.broadcast %32 : vector<1x256xf32> to vector<8x256xf32>
    %34 = arith.subf %28, %33 : vector<8x256xf32>
    %35 = vector.broadcast %32 : vector<1x256xf32> to vector<8x256xf32>
    %36 = arith.subf %28, %35 : vector<8x256xf32>
    %37 = arith.mulf %34, %36 : vector<8x256xf32>
    %cst_18 = arith.constant dense<0.000000e+00> : vector<256xf32>
    %38 = vector.multi_reduction <add>, %37, %cst_18 [0] : vector<8x256xf32> to vector<256xf32>
    %39 = vector.shape_cast %38 : vector<256xf32> to vector<1x256xf32>
    %cst_19 = arith.constant 8.000000e+00 : f32
    %40 = vector.broadcast %cst_19 : f32 to vector<1x256xf32>
    %41 = arith.divf %39, %40 : vector<1x256xf32>
    %42 = vector.broadcast %32 : vector<1x256xf32> to vector<8x256xf32>
    %43 = arith.subf %28, %42 : vector<8x256xf32>
    %cst_20 = arith.constant 9.99999974E-6 : f32
    %44 = vector.broadcast %cst_20 : f32 to vector<1x256xf32>
    %45 = arith.addf %41, %44 : vector<1x256xf32>
    %46 = math.rsqrt %45 : vector<1x256xf32>
    %47 = vector.broadcast %46 : vector<1x256xf32> to vector<8x256xf32>
    %48 = arith.mulf %43, %47 : vector<8x256xf32>
    %49 = vector.broadcast %17 : vector<1x256xf32> to vector<8x256xf32>
    %50 = arith.mulf %48, %49 : vector<8x256xf32>
    %51 = vector.broadcast %18 : vector<1x256xf32> to vector<8x256xf32>
    %52 = arith.addf %50, %51 : vector<8x256xf32>
    %cst_21 = arith.constant 0.000000e+00 : f32
    %53 = vector.broadcast %cst_21 : f32 to vector<8x256xf32>
    %54 = arith.maximumf %52, %53 : vector<8x256xf32>
    %55 = arith.truncf %54 : vector<8x256xf32> to vector<8x256xbf16>
    %cst_22 = arith.constant dense<0.000000e+00> : vector<8x256xf32>
    %56 = tpu.matmul %55, %19, %cst_22 {dimension_numbers = #tpu.dot_dimension_numbers<[1], [0], [0], [1], [0, 0, 1, 1], [], []>} : vector<8x256xbf16>, vector<256x256xbf16>, vector<8x256xf32> -> vector<8x256xf32>
    %57 = vector.broadcast %20 : vector<1x256xf32> to vector<8x256xf32>
    %58 = arith.addf %56, %57 : vector<8x256xf32>
    %cst_23 = arith.constant dense<0.000000e+00> : vector<256xf32>
    %59 = vector.multi_reduction <add>, %58, %cst_23 [0] : vector<8x256xf32> to vector<256xf32>
    %60 = vector.shape_cast %59 : vector<256xf32> to vector<1x256xf32>
    %cst_24 = arith.constant 8.000000e+00 : f32
    %61 = vector.broadcast %cst_24 : f32 to vector<1x256xf32>
    %62 = arith.divf %60, %61 : vector<1x256xf32>
    %63 = vector.broadcast %62 : vector<1x256xf32> to vector<8x256xf32>
    %64 = arith.subf %58, %63 : vector<8x256xf32>
    %65 = vector.broadcast %62 : vector<1x256xf32> to vector<8x256xf32>
    %66 = arith.subf %58, %65 : vector<8x256xf32>
    %67 = arith.mulf %64, %66 : vector<8x256xf32>
    %cst_25 = arith.constant dense<0.000000e+00> : vector<256xf32>
    %68 = vector.multi_reduction <add>, %67, %cst_25 [0] : vector<8x256xf32> to vector<256xf32>
    %69 = vector.shape_cast %68 : vector<256xf32> to vector<1x256xf32>
    %cst_26 = arith.constant 8.000000e+00 : f32
    %70 = vector.broadcast %cst_26 : f32 to vector<1x256xf32>
    %71 = arith.divf %69, %70 : vector<1x256xf32>
    %72 = vector.broadcast %62 : vector<1x256xf32> to vector<8x256xf32>
    %73 = arith.subf %58, %72 : vector<8x256xf32>
    %cst_27 = arith.constant 9.99999974E-6 : f32
    %74 = vector.broadcast %cst_27 : f32 to vector<1x256xf32>
    %75 = arith.addf %71, %74 : vector<1x256xf32>
    %76 = math.rsqrt %75 : vector<1x256xf32>
    %77 = vector.broadcast %76 : vector<1x256xf32> to vector<8x256xf32>
    %78 = arith.mulf %73, %77 : vector<8x256xf32>
    %79 = vector.broadcast %21 : vector<1x256xf32> to vector<8x256xf32>
    %80 = arith.mulf %78, %79 : vector<8x256xf32>
    %81 = vector.broadcast %22 : vector<1x256xf32> to vector<8x256xf32>
    %82 = arith.addf %80, %81 : vector<8x256xf32>
    %cst_28 = arith.constant 0.000000e+00 : f32
    %83 = vector.broadcast %cst_28 : f32 to vector<8x256xf32>
    %84 = arith.maximumf %82, %83 : vector<8x256xf32>
    %85 = arith.truncf %84 : vector<8x256xf32> to vector<8x256xbf16>
    %cst_29 = arith.constant dense<0.000000e+00> : vector<8x256xf32>
    %86 = tpu.matmul %85, %23, %cst_29 {dimension_numbers = #tpu.dot_dimension_numbers<[1], [0], [0], [1], [0, 0, 1, 1], [], []>} : vector<8x256xbf16>, vector<256x256xbf16>, vector<8x256xf32> -> vector<8x256xf32>
    %87 = vector.broadcast %24 : vector<1x256xf32> to vector<8x256xf32>
    %88 = arith.addf %86, %87 : vector<8x256xf32>
    %c0_30 = arith.constant 0 : index
    %c0_31 = arith.constant 0 : index
    %89 = vector.load %arg16[%c0_30, %c0_31] : memref<8x512xf32, #tpu.memory_space<vmem>>, vector<8x256xf32>
    tpu.vector_store %arg16[%c0_30, %c0_31], %88 {strides = array<i32>} : memref<8x512xf32, #tpu.memory_space<vmem>>, vector<8x256xf32>,
    %c0_32 = arith.constant 0 : index
    %c0_33 = arith.constant 0 : index
    %90 = vector.load %arg6[%c0_32, %c0_33] : memref<32x16xbf16, #tpu.memory_space<vmem>>, vector<32x16xbf16>
    %c0_34 = arith.constant 0 : index
    %c0_35 = arith.constant 0 : index
    %91 = vector.load %arg10[%c0_34, %c0_35] : memref<16x256xbf16, #tpu.memory_space<vmem>>, vector<16x256xbf16>
    %cst_36 = arith.constant dense<0.000000e+00> : vector<32x256xf32>
    %92 = tpu.matmul %90, %91, %cst_36 {dimension_numbers = #tpu.dot_dimension_numbers<[1], [0], [0], [1], [0, 0, 1, 1], [], []>} : vector<32x16xbf16>, vector<16x256xbf16>, vector<32x256xf32> -> vector<32x256xf32>
    %93 = vector.extract_strided_slice %92 {offsets = [0, 0], sizes = [32, 128], strides = [1, 1]} : vector<32x256xf32> to vector<32x128xf32>
    %94 = vector.extract_strided_slice %92 {offsets = [0, 128], sizes = [32, 128], strides = [1, 1]} : vector<32x256xf32> to vector<32x128xf32>
    %95 = vector.shape_cast %93 : vector<32x128xf32> to vector<32x1x128xf32>
    %96 = vector.shape_cast %94 : vector<32x128xf32> to vector<1x32x128xf32>
    %97 = vector.broadcast %95 : vector<32x1x128xf32> to vector<32x32x128xf32>
    %98 = vector.broadcast %96 : vector<1x32x128xf32> to vector<32x32x128xf32>
    %99 = arith.addf %97, %98 : vector<32x32x128xf32>
    %c0_37 = arith.constant 0 : index
    %c0_38 = arith.constant 0 : index
    %c0_39 = arith.constant 0 : index
    %100 = vector.load %arg8[%c0_37, %c0_38, %c0_39] : memref<32x32x128xf32, #tpu.memory_space<vmem>>, vector<32x32x128xf32>
    %101 = arith.addf %99, %100 : vector<32x32x128xf32>
    %cst_40 = arith.constant 0.000000e+00 : f32
    %102 = vector.broadcast %cst_40 : f32 to vector<32x32x128xf32>
    %103 = arith.cmpf ogt, %101, %102 : vector<32x32x128xf32>
    %cst_41 = arith.constant 2.000000e-01 : f32
    %104 = vector.broadcast %cst_41 : f32 to vector<32x32x128xf32>
    %105 = arith.mulf %104, %101 : vector<32x32x128xf32>
    %106 = arith.select %103, %101, %105 : vector<32x32x128xi1>, vector<32x32x128xf32>
    %107 = vector.extract_strided_slice %0 {offsets = [9, 0], sizes = [1, 128], strides = [1, 1]} : vector<18x256xf32> to vector<1x128xf32>
    %108 = vector.shape_cast %107 : vector<1x128xf32> to vector<1x1x128xf32>
    %109 = vector.broadcast %108 : vector<1x1x128xf32> to vector<32x32x128xf32>
    %110 = arith.mulf %106, %109 : vector<32x32x128xf32>
    %cst_42 = arith.constant dense<0.000000e+00> : vector<32x32xf32>
    %111 = vector.multi_reduction <add>, %110, %cst_42 [2] : vector<32x32x128xf32> to vector<32x32xf32>
    %c0_43 = arith.constant 0 : index
    %c0_44 = arith.constant 0 : index
    %112 = vector.load %arg7[%c0_43, %c0_44] : memref<32x32xf32, #tpu.memory_space<vmem>>, vector<32x32xf32>
    %cst_45 = arith.constant 0.000000e+00 : f32
    %113 = vector.broadcast %cst_45 : f32 to vector<32x32xf32>
    %114 = arith.cmpf ogt, %112, %113 : vector<32x32xf32>
    %cst_46 = arith.constant -1.000000e+30 : f32
    %115 = vector.broadcast %cst_46 : f32 to vector<32x32xf32>
    %116 = arith.select %114, %111, %115 : vector<32x32xi1>, vector<32x32xf32>
    %cst_47 = arith.constant dense<0xFF800000> : vector<32xf32>
    %117 = vector.multi_reduction <maximumf>, %116, %cst_47 [1] : vector<32x32xf32> to vector<32xf32>
    %118 = vector.shape_cast %117 : vector<32xf32> to vector<32x1xf32>
    %119 = vector.broadcast %118 : vector<32x1xf32> to vector<32x32xf32>
    %120 = arith.subf %116, %119 : vector<32x32xf32>
    %121 = math.exp %120 : vector<32x32xf32>
    %cst_48 = arith.constant dense<0.000000e+00> : vector<32xf32>
    %122 = vector.multi_reduction <add>, %121, %cst_48 [1] : vector<32x32xf32> to vector<32xf32>
    %123 = vector.shape_cast %122 : vector<32xf32> to vector<32x1xf32>
    %124 = vector.broadcast %123 : vector<32x1xf32> to vector<32x32xf32>
    %125 = arith.divf %121, %124 : vector<32x32xf32>
    %cst_49 = arith.constant dense<0.000000e+00> : vector<32x128xf32>
    %126 = tpu.matmul %125, %94, %cst_49 {dimension_numbers = #tpu.dot_dimension_numbers<[1], [0], [0], [1], [0, 0, 1, 1], [], []>} : vector<32x32xf32>, vector<32x128xf32>, vector<32x128xf32> -> vector<32x128xf32>
    %c0_50 = arith.constant 0 : index
    %c0_51 = arith.constant 0 : index
    %127 = vector.load %arg9[%c0_50, %c0_51] : memref<8x32xf32, #tpu.memory_space<vmem>>, vector<8x32xf32>
    %cst_52 = arith.constant dense<0.000000e+00> : vector<8x128xf32>
    %128 = tpu.matmul %127, %126, %cst_52 {dimension_numbers = #tpu.dot_dimension_numbers<[1], [0], [0], [1], [0, 0, 1, 1], [], []>} : vector<8x32xf32>, vector<32x128xf32>, vector<8x128xf32> -> vector<8x128xf32>
    %c0_53 = arith.constant 0 : index
    %c0_54 = arith.constant 0 : index
    %129 = vector.load %arg11[%c0_53, %c0_54] : memref<128x128xbf16, #tpu.memory_space<vmem>>, vector<128x128xbf16>
    %130 = vector.extract_strided_slice %0 {offsets = [10, 0], sizes = [1, 128], strides = [1, 1]} : vector<18x256xf32> to vector<1x128xf32>
    %131 = arith.truncf %128 : vector<8x128xf32> to vector<8x128xbf16>
    %cst_55 = arith.constant dense<0.000000e+00> : vector<8x128xf32>
    %132 = tpu.matmul %131, %129, %cst_55 {dimension_numbers = #tpu.dot_dimension_numbers<[1], [0], [0], [1], [0, 0, 1, 1], [], []>} : vector<8x128xbf16>, vector<128x128xbf16>, vector<8x128xf32> -> vector<8x128xf32>
    %133 = vector.broadcast %130 : vector<1x128xf32> to vector<8x128xf32>
    %134 = arith.addf %132, %133 : vector<8x128xf32>
    %c0_56 = arith.constant 0 : index
    %c0_57 = arith.constant 0 : index
    %135 = vector.load %arg12[%c0_56, %c0_57] : memref<128x128xbf16, #tpu.memory_space<vmem>>, vector<128x128xbf16>
    %136 = vector.extract_strided_slice %0 {offsets = [11, 0], sizes = [1, 128], strides = [1, 1]} : vector<18x256xf32> to vector<1x128xf32>
    %137 = vector.extract_strided_slice %0 {offsets = [12, 0], sizes = [1, 128], strides = [1, 1]} : vector<18x256xf32> to vector<1x128xf32>
    %138 = vector.extract_strided_slice %0 {offsets = [13, 0], sizes = [1, 128], strides = [1, 1]} : vector<18x256xf32> to vector<1x128xf32>
    %c0_58 = arith.constant 0 : index
    %c0_59 = arith.constant 0 : index
    %139 = vector.load %arg13[%c0_58, %c0_59] : memref<128x256xbf16, #tpu.memory_space<vmem>>, vector<128x256xbf16>
    %140 = vector.extract_strided_slice %0 {offsets = [14, 0], sizes = [1, 256], strides = [1, 1]} : vector<18x256xf32> to vector<1x256xf32>
    %141 = vector.extract_strided_slice %0 {offsets = [15, 0], sizes = [1, 256], strides = [1, 1]} : vector<18x256xf32> to vector<1x256xf32>
    %142 = vector.extract_strided_slice %0 {offsets = [16, 0], sizes = [1, 256], strides = [1, 1]} : vector<18x256xf32> to vector<1x256xf32>
    %c0_60 = arith.constant 0 : index
    %c0_61 = arith.constant 0 : index
    %143 = vector.load %arg14[%c0_60, %c0_61] : memref<256x256xbf16, #tpu.memory_space<vmem>>, vector<256x256xbf16>
    %144 = vector.extract_strided_slice %0 {offsets = [17, 0], sizes = [1, 256], strides = [1, 1]} : vector<18x256xf32> to vector<1x256xf32>
    %145 = arith.truncf %134 : vector<8x128xf32> to vector<8x128xbf16>
    %cst_62 = arith.constant dense<0.000000e+00> : vector<8x128xf32>
    %146 = tpu.matmul %145, %135, %cst_62 {dimension_numbers = #tpu.dot_dimension_numbers<[1], [0], [0], [1], [0, 0, 1, 1], [], []>} : vector<8x128xbf16>, vector<128x128xbf16>, vector<8x128xf32> -> vector<8x128xf32>
    %147 = vector.broadcast %136 : vector<1x128xf32> to vector<8x128xf32>
    %148 = arith.addf %146, %147 : vector<8x128xf32>
    %cst_63 = arith.constant dense<0.000000e+00> : vector<128xf32>
    %149 = vector.multi_reduction <add>, %148, %cst_63 [0] : vector<8x128xf32> to vector<128xf32>
    %150 = vector.shape_cast %149 : vector<128xf32> to vector<1x128xf32>
    %cst_64 = arith.constant 8.000000e+00 : f32
    %151 = vector.broadcast %cst_64 : f32 to vector<1x128xf32>
    %152 = arith.divf %150, %151 : vector<1x128xf32>
    %153 = vector.broadcast %152 : vector<1x128xf32> to vector<8x128xf32>
    %154 = arith.subf %148, %153 : vector<8x128xf32>
    %155 = vector.broadcast %152 : vector<1x128xf32> to vector<8x128xf32>
    %156 = arith.subf %148, %155 : vector<8x128xf32>
    %157 = arith.mulf %154, %156 : vector<8x128xf32>
    %cst_65 = arith.constant dense<0.000000e+00> : vector<128xf32>
    %158 = vector.multi_reduction <add>, %157, %cst_65 [0] : vector<8x128xf32> to vector<128xf32>
    %159 = vector.shape_cast %158 : vector<128xf32> to vector<1x128xf32>
    %cst_66 = arith.constant 8.000000e+00 : f32
    %160 = vector.broadcast %cst_66 : f32 to vector<1x128xf32>
    %161 = arith.divf %159, %160 : vector<1x128xf32>
    %162 = vector.broadcast %152 : vector<1x128xf32> to vector<8x128xf32>
    %163 = arith.subf %148, %162 : vector<8x128xf32>
    %cst_67 = arith.constant 9.99999974E-6 : f32
    %164 = vector.broadcast %cst_67 : f32 to vector<1x128xf32>
    %165 = arith.addf %161, %164 : vector<1x128xf32>
    %166 = math.rsqrt %165 : vector<1x128xf32>
    %167 = vector.broadcast %166 : vector<1x128xf32> to vector<8x128xf32>
    %168 = arith.mulf %163, %167 : vector<8x128xf32>
    %169 = vector.broadcast %137 : vector<1x128xf32> to vector<8x128xf32>
    %170 = arith.mulf %168, %169 : vector<8x128xf32>
    %171 = vector.broadcast %138 : vector<1x128xf32> to vector<8x128xf32>
    %172 = arith.addf %170, %171 : vector<8x128xf32>
    %cst_68 = arith.constant 0.000000e+00 : f32
    %173 = vector.broadcast %cst_68 : f32 to vector<8x128xf32>
    %174 = arith.maximumf %172, %173 : vector<8x128xf32>
    %175 = arith.truncf %174 : vector<8x128xf32> to vector<8x128xbf16>
    %cst_69 = arith.constant dense<0.000000e+00> : vector<8x256xf32>
    %176 = tpu.matmul %175, %139, %cst_69 {dimension_numbers = #tpu.dot_dimension_numbers<[1], [0], [0], [1], [0, 0, 1, 1], [], []>} : vector<8x128xbf16>, vector<128x256xbf16>, vector<8x256xf32> -> vector<8x256xf32>
    %177 = vector.broadcast %140 : vector<1x256xf32> to vector<8x256xf32>
    %178 = arith.addf %176, %177 : vector<8x256xf32>
    %cst_70 = arith.constant dense<0.000000e+00> : vector<256xf32>
    %179 = vector.multi_reduction <add>, %178, %cst_70 [0] : vector<8x256xf32> to vector<256xf32>
    %180 = vector.shape_cast %179 : vector<256xf32> to vector<1x256xf32>
    %cst_71 = arith.constant 8.000000e+00 : f32
    %181 = vector.broadcast %cst_71 : f32 to vector<1x256xf32>
    %182 = arith.divf %180, %181 : vector<1x256xf32>
    %183 = vector.broadcast %182 : vector<1x256xf32> to vector<8x256xf32>
    %184 = arith.subf %178, %183 : vector<8x256xf32>
    %185 = vector.broadcast %182 : vector<1x256xf32> to vector<8x256xf32>
    %186 = arith.subf %178, %185 : vector<8x256xf32>
    %187 = arith.mulf %184, %186 : vector<8x256xf32>
    %cst_72 = arith.constant dense<0.000000e+00> : vector<256xf32>
    %188 = vector.multi_reduction <add>, %187, %cst_72 [0] : vector<8x256xf32> to vector<256xf32>
    %189 = vector.shape_cast %188 : vector<256xf32> to vector<1x256xf32>
    %cst_73 = arith.constant 8.000000e+00 : f32
    %190 = vector.broadcast %cst_73 : f32 to vector<1x256xf32>
    %191 = arith.divf %189, %190 : vector<1x256xf32>
    %192 = vector.broadcast %182 : vector<1x256xf32> to vector<8x256xf32>
    %193 = arith.subf %178, %192 : vector<8x256xf32>
    %cst_74 = arith.constant 9.99999974E-6 : f32
    %194 = vector.broadcast %cst_74 : f32 to vector<1x256xf32>
    %195 = arith.addf %191, %194 : vector<1x256xf32>
    %196 = math.rsqrt %195 : vector<1x256xf32>
    %197 = vector.broadcast %196 : vector<1x256xf32> to vector<8x256xf32>
    %198 = arith.mulf %193, %197 : vector<8x256xf32>
    %199 = vector.broadcast %141 : vector<1x256xf32> to vector<8x256xf32>
    %200 = arith.mulf %198, %199 : vector<8x256xf32>
    %201 = vector.broadcast %142 : vector<1x256xf32> to vector<8x256xf32>
    %202 = arith.addf %200, %201 : vector<8x256xf32>
    %cst_75 = arith.constant 0.000000e+00 : f32
    %203 = vector.broadcast %cst_75 : f32 to vector<8x256xf32>
    %204 = arith.maximumf %202, %203 : vector<8x256xf32>
    %205 = arith.truncf %204 : vector<8x256xf32> to vector<8x256xbf16>
    %cst_76 = arith.constant dense<0.000000e+00> : vector<8x256xf32>
    %206 = tpu.matmul %205, %143, %cst_76 {dimension_numbers = #tpu.dot_dimension_numbers<[1], [0], [0], [1], [0, 0, 1, 1], [], []>} : vector<8x256xbf16>, vector<256x256xbf16>, vector<8x256xf32> -> vector<8x256xf32>
    %207 = vector.broadcast %144 : vector<1x256xf32> to vector<8x256xf32>
    %208 = arith.addf %206, %207 : vector<8x256xf32>
    %c0_77 = arith.constant 0 : index
    %c256 = arith.constant 256 : index
    %209 = vector.load %arg16[%c0_77, %c256] : memref<8x512xf32, #tpu.memory_space<vmem>>, vector<8x256xf32>
    tpu.vector_store %arg16[%c0_77, %c256], %208 {strides = array<i32>} : memref<8x512xf32, #tpu.memory_space<vmem>>, vector<8x256xf32>,
    return
  }
}

</mosaic_0001>

<llo_original>
// kernel: tpu_custom_call.1
$region0: #{tpu_custom_call.1}
  #allocation0 [shape = 'u32[]', space=smem, size = 0x4, offset = 0x4, fixed_abs, tag = 'smem constant byte address 0x4 - core index']
  #allocation1 [shape = 'u32[72,128]{1,0:T(1,128)}', space=vmem, size = 0x9000, scoped, tag = 'internal scratch']
  %s0 = inlined_call_operand.hbm [shape: bf16[8,1024], index: 0, kind: input, shape index: {}]
  %s1 = inlined_call_operand.hbm [shape: bf16[1024,128], index: 1, kind: input, shape index: {}]
  %s2 = inlined_call_operand.hbm [shape: bf16[128,128], index: 2, kind: input, shape index: {}]
  %s3 = inlined_call_operand.hbm [shape: bf16[128,256], index: 3, kind: input, shape index: {}]
  %s4 = inlined_call_operand.hbm [shape: bf16[256,256], index: 4, kind: input, shape index: {}]
  %s5 = inlined_call_operand.hbm [shape: bf16[256,256], index: 5, kind: input, shape index: {}]
  %s6 = inlined_call_operand.vmem [shape: bf16[32,16], index: 6, kind: input, shape index: {}]
  %s7 = inlined_call_operand.hbm [shape: f32[32,32], index: 7, kind: input, shape index: {}]
  %s8 = inlined_call_operand.hbm [shape: f32[32,32,128], index: 8, kind: input, shape index: {}]
  %s9 = inlined_call_operand.vmem [shape: f32[8,32], index: 9, kind: input, shape index: {}]
  %s10 = inlined_call_operand.vmem [shape: bf16[16,256], index: 10, kind: input, shape index: {}]
  %s11 = inlined_call_operand.hbm [shape: bf16[128,128], index: 11, kind: input, shape index: {}]
  %s12 = inlined_call_operand.hbm [shape: bf16[128,128], index: 12, kind: input, shape index: {}]
  %s13 = inlined_call_operand.hbm [shape: bf16[128,256], index: 13, kind: input, shape index: {}]
  %s14 = inlined_call_operand.hbm [shape: bf16[256,256], index: 14, kind: input, shape index: {}]
  %s15 = inlined_call_operand.hbm [shape: f32[18,256], index: 15, kind: input, shape index: {}]
  %s16 = inlined_call_operand.hbm [shape: f32[8,512], index: 16, kind: output, shape index: {}]
  %s17 = sld [smem:[#allocation0]]
  $region126: #{tpu_custom_call.1} parent=0
    _
  %s19 = ssub.s32 1, %s17
  %s20 = scalar_select 0, %s19, %s17
  $region1: #{tpu_custom_call.1} parent=0
    #allocation2 [shape = 'u8[16384]{0}', space=vmem, size = 0x4000, scoped, tag = 'input window, operand 0, single buffered']
    #allocation3 [shape = 's32[1]{0}', space=sflag, size = 0x4, scoped, tag = 'scoped memory for tpu_custom_call.1']
    #allocation4 [shape = 's32[1]{0}', space=sflag, size = 0x4, scoped, tag = 'scoped memory for tpu_custom_call.1']
    #allocation5 [shape = 'u8[262144]{0}', space=vmem, size = 0x40000, scoped, tag = 'input window, operand 1, single buffered']
    #allocation6 [shape = 's32[1]{0}', space=sflag, size = 0x4, scoped, tag = 'scoped memory for tpu_custom_call.1']
    #allocation7 [shape = 'u8[32768]{0}', space=vmem, size = 0x8000, scoped, tag = 'input window, operand 2, single buffered']
    #allocation8 [shape = 'u8[65536]{0}', space=vmem, size = 0x10000, scoped, tag = 'input window, operand 3, single buffered']
    #allocation9 [shape = 's32[1]{0}', space=sflag, size = 0x4, scoped, tag = 'scoped memory for tpu_custom_call.1']
    #allocation10 [shape = 'u8[131072]{0}', space=vmem, size = 0x20000, scoped, tag = 'input window, operand 4, single buffered']
    #allocation11 [shape = 'u8[131072]{0}', space=vmem, size = 0x20000, scoped, tag = 'input window, operand 5, single buffered']
    #allocation12 [shape = 's32[1]{0}', space=sflag, size = 0x4, scoped, tag = 'scoped memory for tpu_custom_call.1']
    #allocation13 [shape = 'u8[16384]{0}', space=vmem, size = 0x4000, scoped, tag = 'input window, operand 7, single buffered']
    #allocation14 [shape = 'u8[524288]{0}', space=vmem, size = 0x80000, scoped, tag = 'input window, operand 8, single buffered']
    #allocation15 [shape = 's32[1]{0}', space=sflag, size = 0x4, scoped, tag = 'scoped memory for tpu_custom_call.1']
    #allocation16 [shape = 'u8[32768]{0}', space=vmem, size = 0x8000, scoped, tag = 'input window, operand 11, single buffered']
    #allocation17 [shape = 'u8[32768]{0}', space=vmem, size = 0x8000, scoped, tag = 'input window, operand 12, single buffered']
    #allocation18 [shape = 's32[1]{0}', space=sflag, size = 0x4, scoped, tag = 'scoped memory for tpu_custom_call.1']
    #allocation19 [shape = 'u8[65536]{0}', space=vmem, size = 0x10000, scoped, tag = 'input window, operand 13, single buffered']
    #allocation20 [shape = 'u8[131072]{0}', space=vmem, size = 0x20000, scoped, tag = 'input window, operand 14, single buffered']
    #allocation21 [shape = 's32[1]{0}', space=sflag, size = 0x4, scoped, tag = 'scoped memory for tpu_custom_call.1']
    #allocation22 [shape = 'u8[24576]{0}', space=vmem, size = 0x6000, scoped, tag = 'input window, operand 15, single buffered']
    #allocation23 [shape = 'u8[16384]{0}', space=vmem, size = 0x4000, scoped, tag = 'output window, operand 0, single buffered']
    %21 = vsyncpa [#allocation3], 0
    %22 = vsyncpa [#allocation6], 0
    %23 = vsyncpa [#allocation9], 0
    %24 = vsyncpa [#allocation12], 0
    %25 = vsyncpa [#allocation15], 0
    %26 = vsyncpa [#allocation18], 0
    %27 = vsyncpa [#allocation21], 0
    %28 = vsyncpa [#allocation4], 0
    // Predicated region
    $region2: #{tpu_custom_call.1} parent=1 // pred_check
      _
    $region3: #{tpu_custom_call.1} parent=1 // pred_check_branch
      %30 = sbr.rel (0) target = $region5
    $region4: #{tpu_custom_call.1} parent=1 // pred_region
      %32 = vsyncadd [#allocation3], 0
      %s34 = sshll.u32 %s0, 4
      %s35 = int_to_ptr.hbm [resolvable:$true] %s34
      %s36 = sshll.u32 [#allocation2], 4
      %s37 = int_to_ptr.vmem [resolvable:$true] %s36
      %39 = dma.hbm_to_vmem [thread:$0]  %s35, 512, %s37, [#allocation3]
    $region5: #{tpu_custom_call.1} parent=1 // pred_fallthru
      _
    // Predicated region
    $region6: #{tpu_custom_call.1} parent=1 // pred_check
      _
    $region7: #{tpu_custom_call.1} parent=1 // pred_check_branch
      %41 = sbr.rel (0) target = $region9
    $region8: #{tpu_custom_call.1} parent=1 // pred_region
      %43 = vsyncadd [#allocation6], 0
      %s44 = sshll.u32 %s1, 4
      %s45 = int_to_ptr.hbm [resolvable:$true] %s44
      %s46 = sshll.u32 [#allocation5], 4
      %s47 = int_to_ptr.vmem [resolvable:$true] %s46
      %52 = dma.hbm_to_vmem [thread:$0]  %s45, 8192, %s47, [#allocation6], 64, 64, 4
    $region9: #{tpu_custom_call.1} parent=1 // pred_fallthru
      _
    // Predicated region
    $region10: #{tpu_custom_call.1} parent=1 // pred_check
      _
    $region11: #{tpu_custom_call.1} parent=1 // pred_check_branch
      %54 = sbr.rel (0) target = $region13
    $region12: #{tpu_custom_call.1} parent=1 // pred_region
      %56 = vsyncadd [#allocation6], 0
      %s57 = sshll.u32 %s2, 4
      %s58 = int_to_ptr.hbm [resolvable:$true] %s57
      %s59 = sshll.u32 [#allocation7], 4
      %s60 = int_to_ptr.vmem [resolvable:$true] %s59
      %65 = dma.hbm_to_vmem [thread:$0]  %s58, 1024, %s60, [#allocation6], 64, 64, 4
    $region13: #{tpu_custom_call.1} parent=1 // pred_fallthru
      _
    // Predicated region
    $region14: #{tpu_custom_call.1} parent=1 // pred_check
      _
    $region15: #{tpu_custom_call.1} parent=1 // pred_check_branch
      %67 = sbr.rel (0) target = $region17
    $region16: #{tpu_custom_call.1} parent=1 // pred_region
      %69 = vsyncadd [#allocation9], 0
      %s70 = sshll.u32 %s3, 4
      %s71 = int_to_ptr.hbm [resolvable:$true] %s70
      %s72 = sshll.u32 [#allocation8], 4
      %s73 = int_to_ptr.vmem [resolvable:$true] %s72
      %78 = dma.hbm_to_vmem [thread:$0]  %s71, 2048, %s73, [#allocation9], 128, 128, 8
    $region17: #{tpu_custom_call.1} parent=1 // pred_fallthru
      _
    // Predicated region
    $region18: #{tpu_custom_call.1} parent=1 // pred_check
      _
    $region19: #{tpu_custom_call.1} parent=1 // pred_check_branch
      %80 = sbr.rel (0) target = $region21
    $region20: #{tpu_custom_call.1} parent=1 // pred_region
      %82 = vsyncadd [#allocation9], 0
      %s83 = sshll.u32 %s4, 4
      %s84 = int_to_ptr.hbm [resolvable:$true] %s83
      %s85 = sshll.u32 [#allocation10], 4
      %s86 = int_to_ptr.vmem [resolvable:$true] %s85
      %91 = dma.hbm_to_vmem [thread:$0]  %s84, 4096, %s86, [#allocation9], 128, 128, 8
    $region21: #{tpu_custom_call.1} parent=1 // pred_fallthru
      _
    // Predicated region
    $region22: #{tpu_custom_call.1} parent=1 // pred_check
      _
    $region23: #{tpu_custom_call.1} parent=1 // pred_check_branch
      %93 = sbr.rel (0) target = $region25
    $region24: #{tpu_custom_call.1} parent=1 // pred_region
      %95 = vsyncadd [#allocation12], 0
      %s96 = sshll.u32 %s5, 4
      %s97 = int_to_ptr.hbm [resolvable:$true] %s96
      %s98 = sshll.u32 [#allocation11], 4
      %s99 = int_to_ptr.vmem [resolvable:$true] %s98
      %104 = dma.hbm_to_vmem [thread:$0]  %s97, 4096, %s99, [#allocation12], 128, 128, 8
    $region25: #{tpu_custom_call.1} parent=1 // pred_fallthru
      _
    // Predicated region
    $region26: #{tpu_custom_call.1} parent=1 // pred_check
      _
    $region27: #{tpu_custom_call.1} parent=1 // pred_check_branch
      %106 = sbr.rel (0) target = $region29
    $region28: #{tpu_custom_call.1} parent=1 // pred_region
      _
    $region29: #{tpu_custom_call.1} parent=1 // pred_fallthru
      _
    // Predicated region
    $region30: #{tpu_custom_call.1} parent=1 // pred_check
      _
    $region31: #{tpu_custom_call.1} parent=1 // pred_check_branch
      %108 = sbr.rel (0) target = $region33
    $region32: #{tpu_custom_call.1} parent=1 // pred_region
      %110 = vsyncadd [#allocation12], 0
      %s111 = sshll.u32 %s7, 4
      %s112 = int_to_ptr.hbm [resolvable:$true] %s111
      %s113 = sshll.u32 [#allocation13], 4
      %s114 = int_to_ptr.vmem [resolvable:$true] %s113
      %119 = dma.hbm_to_vmem [thread:$0]  %s112, 512, %s114, [#allocation12], 128, 128, 8
    $region33: #{tpu_custom_call.1} parent=1 // pred_fallthru
      _
    // Predicated region
    $region34: #{tpu_custom_call.1} parent=1 // pred_check
      _
    $region35: #{tpu_custom_call.1} parent=1 // pred_check_branch
      %121 = sbr.rel (0) target = $region37
    $region36: #{tpu_custom_call.1} parent=1 // pred_region
      %123 = vsyncadd [#allocation15], 0
      %s124 = sshll.u32 %s8, 4
      %s125 = int_to_ptr.hbm [resolvable:$true] %s124
      %s126 = sshll.u32 [#allocation14], 4
      %s127 = int_to_ptr.vmem [resolvable:$true] %s126
      %132 = dma.hbm_to_vmem [thread:$0]  %s125, 16384, %s127, [#allocation15], 128, 128, 8
    $region37: #{tpu_custom_call.1} parent=1 // pred_fallthru
      _
    // Predicated region
    $region38: #{tpu_custom_call.1} parent=1 // pred_check
      _
    $region39: #{tpu_custom_call.1} parent=1 // pred_check_branch
      %134 = sbr.rel (0) target = $region41
    $region40: #{tpu_custom_call.1} parent=1 // pred_region
      _
    $region41: #{tpu_custom_call.1} parent=1 // pred_fallthru
      _
    // Predicated region
    $region42: #{tpu_custom_call.1} parent=1 // pred_check
      _
    $region43: #{tpu_custom_call.1} parent=1 // pred_check_branch
      %136 = sbr.rel (0) target = $region45
    $region44: #{tpu_custom_call.1} parent=1 // pred_region
      _
    $region45: #{tpu_custom_call.1} parent=1 // pred_fallthru
      _
    // Predicated region
    $region46: #{tpu_custom_call.1} parent=1 // pred_check
      _
    $region47: #{tpu_custom_call.1} parent=1 // pred_check_branch
      %138 = sbr.rel (0) target = $region49
    $region48: #{tpu_custom_call.1} parent=1 // pred_region
      %140 = vsyncadd [#allocation15], 0
      %s141 = sshll.u32 %s11, 4
      %s142 = int_to_ptr.hbm [resolvable:$true] %s141
      %s143 = sshll.u32 [#allocation16], 4
      %s144 = int_to_ptr.vmem [resolvable:$true] %s143
      %149 = dma.hbm_to_vmem [thread:$0]  %s142, 1024, %s144, [#allocation15], 64, 64, 4
    $region49: #{tpu_custom_call.1} parent=1 // pred_fallthru
      _
    // Predicated region
    $region50: #{tpu_custom_call.1} parent=1 // pred_check
      _
    $region51: #{tpu_custom_call.1} parent=1 // pred_check_branch
      %151 = sbr.rel (0) target = $region53
    $region52: #{tpu_custom_call.1} parent=1 // pred_region
      %153 = vsyncadd [#allocation18], 0
      %s154 = sshll.u32 %s12, 4
      %s155 = int_to_ptr.hbm [resolvable:$true] %s154
      %s156 = sshll.u32 [#allocation17], 4
      %s157 = int_to_ptr.vmem [resolvable:$true] %s156
      %162 = dma.hbm_to_vmem [thread:$0]  %s155, 1024, %s157, [#allocation18], 64, 64, 4
    $region53: #{tpu_custom_call.1} parent=1 // pred_fallthru
      _
    // Predicated region
    $region54: #{tpu_custom_call.1} parent=1 // pred_check
      _
    $region55: #{tpu_custom_call.1} parent=1 // pred_check_branch
      %164 = sbr.rel (0) target = $region57
    $region56: #{tpu_custom_call.1} parent=1 // pred_region
      %166 = vsyncadd [#allocation18], 0
      %s167 = sshll.u32 %s13, 4
      %s168 = int_to_ptr.hbm [resolvable:$true] %s167
      %s169 = sshll.u32 [#allocation19], 4
      %s170 = int_to_ptr.vmem [resolvable:$true] %s169
      %175 = dma.hbm_to_vmem [thread:$0]  %s168, 2048, %s170, [#allocation18], 128, 128, 8
    $region57: #{tpu_custom_call.1} parent=1 // pred_fallthru
      _
    // Predicated region
    $region58: #{tpu_custom_call.1} parent=1 // pred_check
      _
    $region59: #{tpu_custom_call.1} parent=1 // pred_check_branch
      %177 = sbr.rel (0) target = $region61
    $region60: #{tpu_custom_call.1} parent=1 // pred_region
      %179 = vsyncadd [#allocation21], 0
      %s180 = sshll.u32 %s14, 4
      %s181 = int_to_ptr.hbm [resolvable:$true] %s180
      %s182 = sshll.u32 [#allocation20], 4
      %s183 = int_to_ptr.vmem [resolvable:$true] %s182
      %188 = dma.hbm_to_vmem [thread:$0]  %s181, 4096, %s183, [#allocation21], 128, 128, 8
    $region61: #{tpu_custom_call.1} parent=1 // pred_fallthru
      _
    // Predicated region
    $region62: #{tpu_custom_call.1} parent=1 // pred_check
      _
    $region63: #{tpu_custom_call.1} parent=1 // pred_check_branch
      %190 = sbr.rel (0) target = $region65
    $region64: #{tpu_custom_call.1} parent=1 // pred_region
      %192 = vsyncadd [#allocation21], 0
      %s193 = sshll.u32 %s15, 4
      %s194 = int_to_ptr.hbm [resolvable:$true] %s193
      %s195 = sshll.u32 [#allocation22], 4
      %s196 = int_to_ptr.vmem [resolvable:$true] %s195
      %201 = dma.hbm_to_vmem [thread:$0]  %s194, 768, %s196, [#allocation21], 256, 256, 16
    $region65: #{tpu_custom_call.1} parent=1 // pred_fallthru
      _
    // Predicated region
    $region66: #{tpu_custom_call.1} parent=1 // pred_check
      _
    $region67: #{tpu_custom_call.1} parent=1 // pred_check_branch
      %203 = sbr.rel (0) target = $region69
    $region68: #{tpu_custom_call.1} parent=1 // pred_region
      %205 = dma.done [#allocation3], 512
    $region69: #{tpu_custom_call.1} parent=1 // pred_fallthru
      _
    // Predicated region
    $region70: #{tpu_custom_call.1} parent=1 // pred_check
      _
    $region71: #{tpu_custom_call.1} parent=1 // pred_check_branch
      %207 = sbr.rel (0) target = $region73
    $region72: #{tpu_custom_call.1} parent=1 // pred_region
      %209 = dma.done [#allocation6], 8192
    $region73: #{tpu_custom_call.1} parent=1 // pred_fallthru
      _
    // Predicated region
    $region74: #{tpu_custom_call.1} parent=1 // pred_check
      _
    $region75: #{tpu_custom_call.1} parent=1 // pred_check_branch
      %211 = sbr.rel (0) target = $region77
    $region76: #{tpu_custom_call.1} parent=1 // pred_region
      %213 = dma.done [#allocation6], 1024
    $region77: #{tpu_custom_call.1} parent=1 // pred_fallthru
      _
    // Predicated region
    $region78: #{tpu_custom_call.1} parent=1 // pred_check
      _
    $region79: #{tpu_custom_call.1} parent=1 // pred_check_branch
      %215 = sbr.rel (0) target = $region81
    $region80: #{tpu_custom_call.1} parent=1 // pred_region
      %217 = dma.done [#allocation9], 2048
    $region81: #{tpu_custom_call.1} parent=1 // pred_fallthru
      _
    // Predicated region
    $region82: #{tpu_custom_call.1} parent=1 // pred_check
      _
    $region83: #{tpu_custom_call.1} parent=1 // pred_check_branch
      %219 = sbr.rel (0) target = $region85
    $region84: #{tpu_custom_call.1} parent=1 // pred_region
      %221 = dma.done [#allocation9], 4096
    $region85: #{tpu_custom_call.1} parent=1 // pred_fallthru
      _
    // Predicated region
    $region86: #{tpu_custom_call.1} parent=1 // pred_check
      _
    $region87: #{tpu_custom_call.1} parent=1 // pred_check_branch
      %223 = sbr.rel (0) target = $region89
    $region88: #{tpu_custom_call.1} parent=1 // pred_region
      %225 = dma.done [#allocation12], 4096
    $region89: #{tpu_custom_call.1} parent=1 // pred_fallthru
      _
    // Predicated region
    $region90: #{tpu_custom_call.1} parent=1 // pred_check
      _
    $region91: #{tpu_custom_call.1} parent=1 // pred_check_branch
      %227 = sbr.rel (0) target = $region93
    $region92: #{tpu_custom_call.1} parent=1 // pred_region
      %229 = dma.done [#allocation12], 512
    $region93: #{tpu_custom_call.1} parent=1 // pred_fallthru
      _
    // Predicated region
    $region94: #{tpu_custom_call.1} parent=1 // pred_check
      _
    $region95: #{tpu_custom_call.1} parent=1 // pred_check_branch
      %231 = sbr.rel (0) target = $region97
    $region96: #{tpu_custom_call.1} parent=1 // pred_region
      %233 = dma.done [#allocation15], 16384
    $region97: #{tpu_custom_call.1} parent=1 // pred_fallthru
      _
    // Predicated region
    $region98: #{tpu_custom_call.1} parent=1 // pred_check
      _
    $region99: #{tpu_custom_call.1} parent=1 // pred_check_branch
      %235 = sbr.rel (0) target = $region101
    $region100: #{tpu_custom_call.1} parent=1 // pred_region
      %237 = dma.done [#allocation15], 1024
    $region101: #{tpu_custom_call.1} parent=1 // pred_fallthru
      _
    // Predicated region
    $region102: #{tpu_custom_call.1} parent=1 // pred_check
      _
    $region103: #{tpu_custom_call.1} parent=1 // pred_check_branch
      %239 = sbr.rel (0) target = $region105
    $region104: #{tpu_custom_call.1} parent=1 // pred_region
      %241 = dma.done [#allocation18], 1024
    $region105: #{tpu_custom_call.1} parent=1 // pred_fallthru
      _
    // Predicated region
    $region106: #{tpu_custom_call.1} parent=1 // pred_check
      _
    $region107: #{tpu_custom_call.1} parent=1 // pred_check_branch
      %243 = sbr.rel (0) target = $region109
    $region108: #{tpu_custom_call.1} parent=1 // pred_region
      %245 = dma.done [#allocation18], 2048
    $region109: #{tpu_custom_call.1} parent=1 // pred_fallthru
      _
    // Predicated region
    $region110: #{tpu_custom_call.1} parent=1 // pred_check
      _
    $region111: #{tpu_custom_call.1} parent=1 // pred_check_branch
      %247 = sbr.rel (0) target = $region113
    $region112: #{tpu_custom_call.1} parent=1 // pred_region
      %249 = dma.done [#allocation21], 4096
    $region113: #{tpu_custom_call.1} parent=1 // pred_fallthru
      _
    // Predicated region
    $region114: #{tpu_custom_call.1} parent=1 // pred_check
      _
    $region115: #{tpu_custom_call.1} parent=1 // pred_check_branch
      %251 = sbr.rel (0) target = $region117
    $region116: #{tpu_custom_call.1} parent=1 // pred_region
      %253 = dma.done [#allocation21], 768
    $region117: #{tpu_custom_call.1} parent=1 // pred_fallthru
      _
    %v255 = vld [vmem:[#allocation22] sm:$0xff]
    %v256 = vld [vmem:[#allocation22 + $0x8] sm:$0xff]
    %v257 = vld [vmem:[#allocation22 + $0x10] sm:$0xff]
    %v258 = vld [vmem:[#allocation22 + $0x18] sm:$0xff]
    %v259 = vld [vmem:[#allocation22 + $0x20] sm:$0x3]
    %v260 = vld [vmem:[#allocation22 + $0x28] sm:$0x3]
    %v261 = vld [vmem:[#allocation2] sm:$0xff]
    %v262 = vld [vmem:[#allocation2 + $0x8] sm:$0xff]
    %v263 = vld [vmem:[#allocation2 + $0x10] sm:$0xff]
    %v264 = vld [vmem:[#allocation2 + $0x18] sm:$0xff]
    %v265 = vld [vmem:[#allocation5] sm:$0xf]
    %v266 = vld [vmem:[#allocation5 + $0x4] sm:$0xf]
    %v267 = vld [vmem:[#allocation5 + $0x8] sm:$0xf]
    %v268 = vld [vmem:[#allocation5 + $0xc] sm:$0xf]
    %v269 = vld [vmem:[#allocation5 + $0x10] sm:$0xf]
    %v270 = vld [vmem:[#allocation5 + $0x14] sm:$0xf]
    %v271 = vld [vmem:[#allocation5 + $0x18] sm:$0xf]
    %v272 = vld [vmem:[#allocation5 + $0x1c] sm:$0xf]
    %v273 = vld [vmem:[#allocation5 + $0x20] sm:$0xf]
    %v274 = vld [vmem:[#allocation5 + $0x24] sm:$0xf]
    %v275 = vld [vmem:[#allocation5 + $0x28] sm:$0xf]
    %v276 = vld [vmem:[#allocation5 + $0x2c] sm:$0xf]
    %v277 = vld [vmem:[#allocation5 + $0x30] sm:$0xf]
    %v278 = vld [vmem:[#allocation5 + $0x34] sm:$0xf]
    %v279 = vld [vmem:[#allocation5 + $0x38] sm:$0xf]
    %v280 = vld [vmem:[#allocation5 + $0x3c] sm:$0xf]
    %v281 = vld [vmem:[#allocation5 + $0x40] sm:$0xf]
    %v282 = vld [vmem:[#allocation5 + $0x44] sm:$0xf]
    %v283 = vld [vmem:[#allocation5 + $0x48] sm:$0xf]
    %v284 = vld [vmem:[#allocation5 + $0x4c] sm:$0xf]
    %v285 = vld [vmem:[#allocation5 + $0x50] sm:$0xf]
    %v286 = vld [vmem:[#allocation5 + $0x54] sm:$0xf]
    %v287 = vld [vmem:[#allocation5 + $0x58] sm:$0xf]
    %v288 = vld [vmem:[#allocation5 + $0x5c] sm:$0xf]
    %v289 = vld [vmem:[#allocation5 + $0x60] sm:$0xf]
    %v290 = vld [vmem:[#allocation5 + $0x64] sm:$0xf]
    %v291 = vld [vmem:[#allocation5 + $0x68] sm:$0xf]
    %v292 = vld [vmem:[#allocation5 + $0x6c] sm:$0xf]
    %v293 = vld [vmem:[#allocation5 + $0x70] sm:$0xf]
    %v294 = vld [vmem:[#allocation5 + $0x74] sm:$0xf]
    %v295 = vld [vmem:[#allocation5 + $0x78] sm:$0xf]
    %v296 = vld [vmem:[#allocation5 + $0x7c] sm:$0xf]
    %v297 = vld [vmem:[#allocation5 + $0x80] sm:$0xf]
    %v298 = vld [vmem:[#allocation5 + $0x84] sm:$0xf]
    %v299 = vld [vmem:[#allocation5 + $0x88] sm:$0xf]
    %v300 = vld [vmem:[#allocation5 + $0x8c] sm:$0xf]
    %v301 = vld [vmem:[#allocation5 + $0x90] sm:$0xf]
    %v302 = vld [vmem:[#allocation5 + $0x94] sm:$0xf]
    %v303 = vld [vmem:[#allocation5 + $0x98] sm:$0xf]
    %v304 = vld [vmem:[#allocation5 + $0x9c] sm:$0xf]
    %v305 = vld [vmem:[#allocation5 + $0xa0] sm:$0xf]
    %v306 = vld [vmem:[#allocation5 + $0xa4] sm:$0xf]
    %v307 = vld [vmem:[#allocation5 + $0xa8] sm:$0xf]
    %v308 = vld [vmem:[#allocation5 + $0xac] sm:$0xf]
    %v309 = vld [vmem:[#allocation5 + $0xb0] sm:$0xf]
    %v310 = vld [vmem:[#allocation5 + $0xb4] sm:$0xf]
    %v311 = vld [vmem:[#allocation5 + $0xb8] sm:$0xf]
    %v312 = vld [vmem:[#allocation5 + $0xbc] sm:$0xf]
    %v313 = vld [vmem:[#allocation5 + $0xc0] sm:$0xf]
    %v314 = vld [vmem:[#allocation5 + $0xc4] sm:$0xf]
    %v315 = vld [vmem:[#allocation5 + $0xc8] sm:$0xf]
    %v316 = vld [vmem:[#allocation5 + $0xcc] sm:$0xf]
    %v317 = vld [vmem:[#allocation5 + $0xd0] sm:$0xf]
    %v318 = vld [vmem:[#allocation5 + $0xd4] sm:$0xf]
    %v319 = vld [vmem:[#allocation5 + $0xd8] sm:$0xf]
    %v320 = vld [vmem:[#allocation5 + $0xdc] sm:$0xf]
    %v321 = vld [vmem:[#allocation5 + $0xe0] sm:$0xf]
    %v322 = vld [vmem:[#allocation5 + $0xe4] sm:$0xf]
    %v323 = vld [vmem:[#allocation5 + $0xe8] sm:$0xf]
    %v324 = vld [vmem:[#allocation5 + $0xec] sm:$0xf]
    %v325 = vld [vmem:[#allocation5 + $0xf0] sm:$0xf]
    %v326 = vld [vmem:[#allocation5 + $0xf4] sm:$0xf]
    %v327 = vld [vmem:[#allocation5 + $0xf8] sm:$0xf]
    %v328 = vld [vmem:[#allocation5 + $0xfc] sm:$0xf]
    %v329 = vld [vmem:[#allocation5 + $0x100] sm:$0xf]
    %v330 = vld [vmem:[#allocation5 + $0x104] sm:$0xf]
    %v331 = vld [vmem:[#allocation5 + $0x108] sm:$0xf]
    %v332 = vld [vmem:[#allocation5 + $0x10c] sm:$0xf]
    %v333 = vld [vmem:[#allocation5 + $0x110] sm:$0xf]
    %v334 = vld [vmem:[#allocation5 + $0x114] sm:$0xf]
    %v335 = vld [vmem:[#allocation5 + $0x118] sm:$0xf]
    %v336 = vld [vmem:[#allocation5 + $0x11c] sm:$0xf]
    %v337 = vld [vmem:[#allocation5 + $0x120] sm:$0xf]
    %v338 = vld [vmem:[#allocation5 + $0x124] sm:$0xf]
    %v339 = vld [vmem:[#allocation5 + $0x128] sm:$0xf]
    %v340 = vld [vmem:[#allocation5 + $0x12c] sm:$0xf]
    %v341 = vld [vmem:[#allocation5 + $0x130] sm:$0xf]
    %v342 = vld [vmem:[#allocation5 + $0x134] sm:$0xf]
    %v343 = vld [vmem:[#allocation5 + $0x138] sm:$0xf]
    %v344 = vld [vmem:[#allocation5 + $0x13c] sm:$0xf]
    %v345 = vld [vmem:[#allocation5 + $0x140] sm:$0xf]
    %v346 = vld [vmem:[#allocation5 + $0x144] sm:$0xf]
    %v347 = vld [vmem:[#allocation5 + $0x148] sm:$0xf]
    %v348 = vld [vmem:[#allocation5 + $0x14c] sm:$0xf]
    %v349 = vld [vmem:[#allocation5 + $0x150] sm:$0xf]
    %v350 = vld [vmem:[#allocation5 + $0x154] sm:$0xf]
    %v351 = vld [vmem:[#allocation5 + $0x158] sm:$0xf]
    %v352 = vld [vmem:[#allocation5 + $0x15c] sm:$0xf]
    %v353 = vld [vmem:[#allocation5 + $0x160] sm:$0xf]
    %v354 = vld [vmem:[#allocation5 + $0x164] sm:$0xf]
    %v355 = vld [vmem:[#allocation5 + $0x168] sm:$0xf]
    %v356 = vld [vmem:[#allocation5 + $0x16c] sm:$0xf]
    %v357 = vld [vmem:[#allocation5 + $0x170] sm:$0xf]
    %v358 = vld [vmem:[#allocation5 + $0x174] sm:$0xf]
    %v359 = vld [vmem:[#allocation5 + $0x178] sm:$0xf]
    %v360 = vld [vmem:[#allocation5 + $0x17c] sm:$0xf]
    %v361 = vld [vmem:[#allocation5 + $0x180] sm:$0xf]
    %v362 = vld [vmem:[#allocation5 + $0x184] sm:$0xf]
    %v363 = vld [vmem:[#allocation5 + $0x188] sm:$0xf]
    %v364 = vld [vmem:[#allocation5 + $0x18c] sm:$0xf]
    %v365 = vld [vmem:[#allocation5 + $0x190] sm:$0xf]
    %v366 = vld [vmem:[#allocation5 + $0x194] sm:$0xf]
    %v367 = vld [vmem:[#allocation5 + $0x198] sm:$0xf]
    %v368 = vld [vmem:[#allocation5 + $0x19c] sm:$0xf]
    %v369 = vld [vmem:[#allocation5 + $0x1a0] sm:$0xf]
    %v370 = vld [vmem:[#allocation5 + $0x1a4] sm:$0xf]
    %v371 = vld [vmem:[#allocation5 + $0x1a8] sm:$0xf]
    %v372 = vld [vmem:[#allocation5 + $0x1ac] sm:$0xf]
    %v373 = vld [vmem:[#allocation5 + $0x1b0] sm:$0xf]
    %v374 = vld [vmem:[#allocation5 + $0x1b4] sm:$0xf]
    %v375 = vld [vmem:[#allocation5 + $0x1b8] sm:$0xf]
    %v376 = vld [vmem:[#allocation5 + $0x1bc] sm:$0xf]
    %v377 = vld [vmem:[#allocation5 + $0x1c0] sm:$0xf]
    %v378 = vld [vmem:[#allocation5 + $0x1c4] sm:$0xf]
    %v379 = vld [vmem:[#allocation5 + $0x1c8] sm:$0xf]
    %v380 = vld [vmem:[#allocation5 + $0x1cc] sm:$0xf]
    %v381 = vld [vmem:[#allocation5 + $0x1d0] sm:$0xf]
    %v382 = vld [vmem:[#allocation5 + $0x1d4] sm:$0xf]
    %v383 = vld [vmem:[#allocation5 + $0x1d8] sm:$0xf]
    %v384 = vld [vmem:[#allocation5 + $0x1dc] sm:$0xf]
    %v385 = vld [vmem:[#allocation5 + $0x1e0] sm:$0xf]
    %v386 = vld [vmem:[#allocation5 + $0x1e4] sm:$0xf]
    %v387 = vld [vmem:[#allocation5 + $0x1e8] sm:$0xf]
    %v388 = vld [vmem:[#allocation5 + $0x1ec] sm:$0xf]
    %v389 = vld [vmem:[#allocation5 + $0x1f0] sm:$0xf]
    %v390 = vld [vmem:[#allocation5 + $0x1f4] sm:$0xf]
    %v391 = vld [vmem:[#allocation5 + $0x1f8] sm:$0xf]
    %v392 = vld [vmem:[#allocation5 + $0x1fc] sm:$0xf]
    %v393 = vperm.slane %v255, 0
    %v398 = vunpack.c.l.b16 %v261
    %v399 = vunpack.c.h.b16 %v261
    %v400 = vunpack.c.l.b16 %v262
    %v401 = vunpack.c.h.b16 %v262
    %v402 = vunpack.c.l.b16 %v263
    %v403 = vunpack.c.h.b16 %v263
    %v404 = vunpack.c.l.b16 %v264
    %v405 = vunpack.c.h.b16 %v264
    %v406 = vpack.c.b16 %v398, %v398
    %v407 = vpack.c.b16 %v399, %v399
    %v408 = vpack.c.b16 %v400, %v400
    %v409 = vpack.c.b16 %v401, %v401
    %v410 = vpack.c.b16 %v402, %v402
    %v411 = vpack.c.b16 %v403, %v403
    %v412 = vpack.c.b16 %v404, %v404
    %v413 = vpack.c.b16 %v405, %v405
    %v550 = vunpack.c.l.b16 %v265
    %v551 = vunpack.c.l.b16 %v266
    %v552 = vunpack.c.l.b16 %v267
    %v553 = vunpack.c.l.b16 %v268
    %v554 = vunpack.c.l.b16 %v269
    %v555 = vunpack.c.l.b16 %v270
    %v556 = vunpack.c.l.b16 %v271
    %v557 = vunpack.c.l.b16 %v272
    %v558 = vunpack.c.l.b16 %v273
    %v559 = vunpack.c.l.b16 %v274
    %v560 = vunpack.c.l.b16 %v275
    %v561 = vunpack.c.l.b16 %v276
    %v562 = vunpack.c.l.b16 %v277
    %v563 = vunpack.c.l.b16 %v278
    %v564 = vunpack.c.l.b16 %v279
    %v565 = vunpack.c.l.b16 %v280
    %v566 = vunpack.c.l.b16 %v281
    %v567 = vunpack.c.l.b16 %v282
    %v568 = vunpack.c.l.b16 %v283
    %v569 = vunpack.c.l.b16 %v284
    %v570 = vunpack.c.l.b16 %v285
    %v571 = vunpack.c.l.b16 %v286
    %v572 = vunpack.c.l.b16 %v287
    %v573 = vunpack.c.l.b16 %v288
    %v574 = vunpack.c.l.b16 %v289
    %v575 = vunpack.c.l.b16 %v290
    %v576 = vunpack.c.l.b16 %v291
    %v577 = vunpack.c.l.b16 %v292
    %v578 = vunpack.c.l.b16 %v293
    %v579 = vunpack.c.l.b16 %v294
    %v580 = vunpack.c.l.b16 %v295
    %v581 = vunpack.c.l.b16 %v296
    %v582 = vunpack.c.l.b16 %v297
    %v583 = vunpack.c.l.b16 %v298
    %v584 = vunpack.c.l.b16 %v299
    %v585 = vunpack.c.l.b16 %v300
    %v586 = vunpack.c.l.b16 %v301
    %v587 = vunpack.c.l.b16 %v302
    %v588 = vunpack.c.l.b16 %v303
    %v589 = vunpack.c.l.b16 %v304
    %v590 = vunpack.c.l.b16 %v305
    %v591 = vunpack.c.l.b16 %v306
    %v592 = vunpack.c.l.b16 %v307
    %v593 = vunpack.c.l.b16 %v308
    %v594 = vunpack.c.l.b16 %v309
    %v595 = vunpack.c.l.b16 %v310
    %v596 = vunpack.c.l.b16 %v311
    %v597 = vunpack.c.l.b16 %v312
    %v598 = vunpack.c.l.b16 %v313
    %v599 = vunpack.c.l.b16 %v314
    %v600 = vunpack.c.l.b16 %v315
    %v601 = vunpack.c.l.b16 %v316
    %v602 = vunpack.c.l.b16 %v317
    %v603 = vunpack.c.l.b16 %v318
    %v604 = vunpack.c.l.b16 %v319
    %v605 = vunpack.c.l.b16 %v320
    %v606 = vunpack.c.l.b16 %v321
    %v607 = vunpack.c.l.b16 %v322
    %v608 = vunpack.c.l.b16 %v323
    %v609 = vunpack.c.l.b16 %v324
    %v610 = vunpack.c.l.b16 %v325
    %v611 = vunpack.c.l.b16 %v326
    %v612 = vunpack.c.l.b16 %v327
    %v613 = vunpack.c.l.b16 %v328
    %v614 = vunpack.c.l.b16 %v329
    %v615 = vunpack.c.l.b16 %v330
    %v616 = vunpack.c.l.b16 %v331
    %v617 = vunpack.c.l.b16 %v332
    %v618 = vunpack.c.l.b16 %v333
    %v619 = vunpack.c.l.b16 %v334
    %v620 = vunpack.c.l.b16 %v335
    %v621 = vunpack.c.l.b16 %v336
    %v622 = vunpack.c.l.b16 %v337
    %v623 = vunpack.c.l.b16 %v338
    %v624 = vunpack.c.l.b16 %v339
    %v625 = vunpack.c.l.b16 %v340
    %v626 = vunpack.c.l.b16 %v341
    %v627 = vunpack.c.l.b16 %v342
    %v628 = vunpack.c.l.b16 %v343
    %v629 = vunpack.c.l.b16 %v344
    %v630 = vunpack.c.l.b16 %v345
    %v631 = vunpack.c.l.b16 %v346
    %v632 = vunpack.c.l.b16 %v347
    %v633 = vunpack.c.l.b16 %v348
    %v634 = vunpack.c.l.b16 %v349
    %v635 = vunpack.c.l.b16 %v350
    %v636 = vunpack.c.l.b16 %v351
    %v637 = vunpack.c.l.b16 %v352
    %v638 = vunpack.c.l.b16 %v353
    %v639 = vunpack.c.l.b16 %v354
    %v640 = vunpack.c.l.b16 %v355
    %v641 = vunpack.c.l.b16 %v356
    %v642 = vunpack.c.l.b16 %v357
    %v643 = vunpack.c.l.b16 %v358
    %v644 = vunpack.c.l.b16 %v359
    %v645 = vunpack.c.l.b16 %v360
    %v646 = vunpack.c.l.b16 %v361
    %v647 = vunpack.c.l.b16 %v362
    %v648 = vunpack.c.l.b16 %v363
    %v649 = vunpack.c.l.b16 %v364
    %v650 = vunpack.c.l.b16 %v365
    %v651 = vunpack.c.l.b16 %v366
    %v652 = vunpack.c.l.b16 %v367
    %v653 = vunpack.c.l.b16 %v368
    %v654 = vunpack.c.l.b16 %v369
    %v655 = vunpack.c.l.b16 %v370
    %v656 = vunpack.c.l.b16 %v371
    %v657 = vunpack.c.l.b16 %v372
    %v658 = vunpack.c.l.b16 %v373
    %v659 = vunpack.c.l.b16 %v374
    %v660 = vunpack.c.l.b16 %v375
    %v661 = vunpack.c.l.b16 %v376
    %v662 = vunpack.c.l.b16 %v377
    %v663 = vunpack.c.l.b16 %v378
    %v664 = vunpack.c.l.b16 %v379
    %v665 = vunpack.c.l.b16 %v380
    %v666 = vunpack.c.l.b16 %v381
    %v667 = vunpack.c.l.b16 %v382
    %v668 = vunpack.c.l.b16 %v383
    %v669 = vunpack.c.l.b16 %v384
    %v670 = vunpack.c.l.b16 %v385
    %v671 = vunpack.c.l.b16 %v386
    %v672 = vunpack.c.l.b16 %v387
    %v673 = vunpack.c.l.b16 %v388
    %v674 = vunpack.c.l.b16 %v389
    %v675 = vunpack.c.l.b16 %v390
    %v676 = vunpack.c.l.b16 %v391
    %v677 = vunpack.c.l.b16 %v392
    %v678 = vpack.c.b16 %v551, %v550
    %v679 = vpack.c.b16 %v553, %v552
    %v680 = vpack.c.b16 %v555, %v554
    %v681 = vpack.c.b16 %v557, %v556
    %v682 = vpack.c.b16 %v559, %v558
    %v683 = vpack.c.b16 %v561, %v560
    %v684 = vpack.c.b16 %v563, %v562
    %v685 = vpack.c.b16 %v565, %v564
    %v686 = vpack.c.b16 %v567, %v566
    %v687 = vpack.c.b16 %v569, %v568
    %v688 = vpack.c.b16 %v571, %v570
    %v689 = vpack.c.b16 %v573, %v572
    %v690 = vpack.c.b16 %v575, %v574
    %v691 = vpack.c.b16 %v577, %v576
    %v692 = vpack.c.b16 %v579, %v578
    %v693 = vpack.c.b16 %v581, %v580
    %v694 = vpack.c.b16 %v583, %v582
    %v695 = vpack.c.b16 %v585, %v584
    %v696 = vpack.c.b16 %v587, %v586
    %v697 = vpack.c.b16 %v589, %v588
    %v698 = vpack.c.b16 %v591, %v590
    %v699 = vpack.c.b16 %v593, %v592
    %v700 = vpack.c.b16 %v595, %v594
    %v701 = vpack.c.b16 %v597, %v596
    %v702 = vpack.c.b16 %v599, %v598
    %v703 = vpack.c.b16 %v601, %v600
    %v704 = vpack.c.b16 %v603, %v602
    %v705 = vpack.c.b16 %v605, %v604
    %v706 = vpack.c.b16 %v607, %v606
    %v707 = vpack.c.b16 %v609, %v608
    %v708 = vpack.c.b16 %v611, %v610
    %v709 = vpack.c.b16 %v613, %v612
    %v710 = vpack.c.b16 %v615, %v614
    %v711 = vpack.c.b16 %v617, %v616
    %v712 = vpack.c.b16 %v619, %v618
    %v713 = vpack.c.b16 %v621, %v620
    %v714 = vpack.c.b16 %v623, %v622
    %v715 = vpack.c.b16 %v625, %v624
    %v716 = vpack.c.b16 %v627, %v626
    %v717 = vpack.c.b16 %v629, %v628
    %v718 = vpack.c.b16 %v631, %v630
    %v719 = vpack.c.b16 %v633, %v632
    %v720 = vpack.c.b16 %v635, %v634
    %v721 = vpack.c.b16 %v637, %v636
    %v722 = vpack.c.b16 %v639, %v638
    %v723 = vpack.c.b16 %v641, %v640
    %v724 = vpack.c.b16 %v643, %v642
    %v725 = vpack.c.b16 %v645, %v644
    %v726 = vpack.c.b16 %v647, %v646
    %v727 = vpack.c.b16 %v649, %v648
    %v728 = vpack.c.b16 %v651, %v650
    %v729 = vpack.c.b16 %v653, %v652
    %v730 = vpack.c.b16 %v655, %v654
    %v731 = vpack.c.b16 %v657, %v656
    %v732 = vpack.c.b16 %v659, %v658
    %v733 = vpack.c.b16 %v661, %v660
    %v734 = vpack.c.b16 %v663, %v662
    %v735 = vpack.c.b16 %v665, %v664
    %v736 = vpack.c.b16 %v667, %v666
    %v737 = vpack.c.b16 %v669, %v668
    %v738 = vpack.c.b16 %v671, %v670
    %v739 = vpack.c.b16 %v673, %v672
    %v740 = vpack.c.b16 %v675, %v674
    %v741 = vpack.c.b16 %v677, %v676
    %806 = vmatpush.bf16.msra.mxu0 %v685
    %807 = vmatpush.bf16.msra.mxu0 %v684
    %808 = vmatpush.bf16.msra.mxu0 %v683
    %809 = vmatpush.bf16.msra.mxu0 %v682
    %810 = vmatpush.bf16.msra.mxu0 %v681
    %811 = vmatpush.bf16.msra.mxu0 %v680
    %812 = vmatpush.bf16.msra.mxu0 %v679
    %813 = vmatpush.bf16.msra.mxu0 %v678
    %814 = vmatmul.bf16.gmra.mxu0 %v406
    %v815 = vpop.f32.mrf.mxu0
    %v816 = vadd.f32 %v393, %v815
    %v817 = vpop.f32.mrf.mxu0
    %818 = vdwg.mxu0
    %819 = vmatpush.bf16.msra.mxu0 %v693
    %820 = vmatpush.bf16.msra.mxu0 %v692
    %821 = vmatpush.bf16.msra.mxu0 %v691
    %822 = vmatpush.bf16.msra.mxu0 %v690
    %823 = vmatpush.bf16.msra.mxu0 %v689
    %824 = vmatpush.bf16.msra.mxu0 %v688
    %825 = vmatpush.bf16.msra.mxu0 %v687
    %826 = vmatpush.bf16.msra.mxu0 %v686
    %827 = vmatmul.bf16.gmra.mxu0 %v407
    %v828 = vpop.f32.mrf.mxu0
    %v829 = vadd.f32 %v816, %v828
    %v830 = vpop.f32.mrf.mxu0
    %831 = vdwg.mxu0
    %832 = vmatpush.bf16.msra.mxu0 %v701
    %833 = vmatpush.bf16.msra.mxu0 %v700
    %834 = vmatpush.bf16.msra.mxu0 %v699
    %835 = vmatpush.bf16.msra.mxu0 %v698
    %836 = vmatpush.bf16.msra.mxu0 %v697
    %837 = vmatpush.bf16.msra.mxu0 %v696
    %838 = vmatpush.bf16.msra.mxu0 %v695
    %839 = vmatpush.bf16.msra.mxu0 %v694
    %840 = vmatmul.bf16.gmra.mxu0 %v408
    %v841 = vpop.f32.mrf.mxu0
    %v842 = vadd.f32 %v829, %v841
    %v843 = vpop.f32.mrf.mxu0
    %844 = vdwg.mxu0
    %845 = vmatpush.bf16.msra.mxu0 %v709
    %846 = vmatpush.bf16.msra.mxu0 %v708
    %847 = vmatpush.bf16.msra.mxu0 %v707
    %848 = vmatpush.bf16.msra.mxu0 %v706
    %849 = vmatpush.bf16.msra.mxu0 %v705
    %850 = vmatpush.bf16.msra.mxu0 %v704
    %851 = vmatpush.bf16.msra.mxu0 %v703
    %852 = vmatpush.bf16.msra.mxu0 %v702
    %853 = vmatmul.bf16.gmra.mxu0 %v409
    %v854 = vpop.f32.mrf.mxu0
    %v855 = vadd.f32 %v842, %v854
    %v856 = vpop.f32.mrf.mxu0
    %857 = vdwg.mxu0
    %858 = vmatpush.bf16.msra.mxu0 %v717
    %859 = vmatpush.bf16.msra.mxu0 %v716
    %860 = vmatpush.bf16.msra.mxu0 %v715
    %861 = vmatpush.bf16.msra.mxu0 %v714
    %862 = vmatpush.bf16.msra.mxu0 %v713
    %863 = vmatpush.bf16.msra.mxu0 %v712
    %864 = vmatpush.bf16.msra.mxu0 %v711
    %865 = vmatpush.bf16.msra.mxu0 %v710
    %866 = vmatmul.bf16.gmra.mxu0 %v410
    %v867 = vpop.f32.mrf.mxu0
    %v868 = vadd.f32 %v855, %v867
    %v869 = vpop.f32.mrf.mxu0
    %870 = vdwg.mxu0
    %871 = vmatpush.bf16.msra.mxu0 %v725
    %872 = vmatpush.bf16.msra.mxu0 %v724
    %873 = vmatpush.bf16.msra.mxu0 %v723
    %874 = vmatpush.bf16.msra.mxu0 %v722
    %875 = vmatpush.bf16.msra.mxu0 %v721
    %876 = vmatpush.bf16.msra.mxu0 %v720
    %877 = vmatpush.bf16.msra.mxu0 %v719
    %878 = vmatpush.bf16.msra.mxu0 %v718
    %879 = vmatmul.bf16.gmra.mxu0 %v411
    %v880 = vpop.f32.mrf.mxu0
    %v881 = vadd.f32 %v868, %v880
    %v882 = vpop.f32.mrf.mxu0
    %883 = vdwg.mxu0
    %884 = vmatpush.bf16.msra.mxu0 %v733
    %885 = vmatpush.bf16.msra.mxu0 %v732
    %886 = vmatpush.bf16.msra.mxu0 %v731
    %887 = vmatpush.bf16.msra.mxu0 %v730
    %888 = vmatpush.bf16.msra.mxu0 %v729
    %889 = vmatpush.bf16.msra.mxu0 %v728
    %890 = vmatpush.bf16.msra.mxu0 %v727
    %891 = vmatpush.bf16.msra.mxu0 %v726
    %892 = vmatmul.bf16.gmra.mxu0 %v412
    %v893 = vpop.f32.mrf.mxu0
    %v894 = vadd.f32 %v881, %v893
    %v895 = vpop.f32.mrf.mxu0
    %896 = vdwg.mxu0
    %897 = vmatpush.bf16.msra.mxu0 %v741
    %898 = vmatpush.bf16.msra.mxu0 %v740
    %899 = vmatpush.bf16.msra.mxu0 %v739
    %900 = vmatpush.bf16.msra.mxu0 %v738
    %901 = vmatpush.bf16.msra.mxu0 %v737
    %902 = vmatpush.bf16.msra.mxu0 %v736
    %903 = vmatpush.bf16.msra.mxu0 %v735
    %904 = vmatpush.bf16.msra.mxu0 %v734
    %905 = vmatmul.bf16.gmra.mxu0 %v413
    %v906 = vpop.f32.mrf.mxu0
    %v907 = vadd.f32 %v894, %v906
    %v908 = vpop.f32.mrf.mxu0
    %909 = vdwg.mxu0
    %v910 = vmax.f32 %v907, 0.0
    %v911 = vld [vmem:[#allocation7] sm:$0xf]
    %v912 = vld [vmem:[#allocation7 + $0x4] sm:$0xf]
    %v913 = vld [vmem:[#allocation7 + $0x8] sm:$0xf]
    %v914 = vld [vmem:[#allocation7 + $0xc] sm:$0xf]
    %v915 = vld [vmem:[#allocation7 + $0x10] sm:$0xf]
    %v916 = vld [vmem:[#allocation7 + $0x14] sm:$0xf]
    %v917 = vld [vmem:[#allocation7 + $0x18] sm:$0xf]
    %v918 = vld [vmem:[#allocation7 + $0x1c] sm:$0xf]
    %v919 = vld [vmem:[#allocation7 + $0x20] sm:$0xf]
    %v920 = vld [vmem:[#allocation7 + $0x24] sm:$0xf]
    %v921 = vld [vmem:[#allocation7 + $0x28] sm:$0xf]
    %v922 = vld [vmem:[#allocation7 + $0x2c] sm:$0xf]
    %v923 = vld [vmem:[#allocation7 + $0x30] sm:$0xf]
    %v924 = vld [vmem:[#allocation7 + $0x34] sm:$0xf]
    %v925 = vld [vmem:[#allocation7 + $0x38] sm:$0xf]
    %v926 = vld [vmem:[#allocation7 + $0x3c] sm:$0xf]
    %v927 = vpack.c.bf16 %v910, %v910
    %v928 = vperm.slane %v255, 1
    %v945 = vunpack.c.l.b16 %v911
    %v946 = vunpack.c.l.b16 %v912
    %v947 = vunpack.c.l.b16 %v913
    %v948 = vunpack.c.l.b16 %v914
    %v949 = vunpack.c.l.b16 %v915
    %v950 = vunpack.c.l.b16 %v916
    %v951 = vunpack.c.l.b16 %v917
    %v952 = vunpack.c.l.b16 %v918
    %v953 = vunpack.c.l.b16 %v919
    %v954 = vunpack.c.l.b16 %v920
    %v955 = vunpack.c.l.b16 %v921
    %v956 = vunpack.c.l.b16 %v922
    %v957 = vunpack.c.l.b16 %v923
    %v958 = vunpack.c.l.b16 %v924
    %v959 = vunpack.c.l.b16 %v925
    %v960 = vunpack.c.l.b16 %v926
    %v961 = vpack.c.b16 %v946, %v945
    %v962 = vpack.c.b16 %v948, %v947
    %v963 = vpack.c.b16 %v950, %v949
    %v964 = vpack.c.b16 %v952, %v951
    %v965 = vpack.c.b16 %v954, %v953
    %v966 = vpack.c.b16 %v956, %v955
    %v967 = vpack.c.b16 %v958, %v957
    %v968 = vpack.c.b16 %v960, %v959
    %977 = vmatpush.bf16.msra.mxu0 %v968
    %978 = vmatpush.bf16.msra.mxu0 %v967
    %979 = vmatpush.bf16.msra.mxu0 %v966
    %980 = vmatpush.bf16.msra.mxu0 %v965
    %981 = vmatpush.bf16.msra.mxu0 %v964
    %982 = vmatpush.bf16.msra.mxu0 %v963
    %983 = vmatpush.bf16.msra.mxu0 %v962
    %984 = vmatpush.bf16.msra.mxu0 %v961
    %985 = vmatmul.bf16.gmra.mxu0 %v927
    %v986 = vpop.f32.mrf.mxu0
    %v987 = vadd.f32 %v928, %v986
    %v988 = vpop.f32.mrf.mxu0
    %989 = vdwg.mxu0
    %v990 = vld [vmem:[#allocation8] sm:$0xff]
    %v991 = vld [vmem:[#allocation8 + $0x8] sm:$0xff]
    %v992 = vld [vmem:[#allocation8 + $0x10] sm:$0xff]
    %v993 = vld [vmem:[#allocation8 + $0x18] sm:$0xff]
    %v994 = vld [vmem:[#allocation8 + $0x20] sm:$0xff]
    %v995 = vld [vmem:[#allocation8 + $0x28] sm:$0xff]
    %v996 = vld [vmem:[#allocation8 + $0x30] sm:$0xff]
    %v997 = vld [vmem:[#allocation8 + $0x38] sm:$0xff]
    %v998 = vld [vmem:[#allocation8 + $0x40] sm:$0xff]
    %v999 = vld [vmem:[#allocation8 + $0x48] sm:$0xff]
    %v1000 = vld [vmem:[#allocation8 + $0x50] sm:$0xff]
    %v1001 = vld [vmem:[#allocation8 + $0x58] sm:$0xff]
    %v1002 = vld [vmem:[#allocation8 + $0x60] sm:$0xff]
    %v1003 = vld [vmem:[#allocation8 + $0x68] sm:$0xff]
    %v1004 = vld [vmem:[#allocation8 + $0x70] sm:$0xff]
    %v1005 = vld [vmem:[#allocation8 + $0x78] sm:$0xff]
    %v1006 = vld [vmem:[#allocation10] sm:$0xff]
    %v1007 = vld [vmem:[#allocation10 + $0x8] sm:$0xff]
    %v1008 = vld [vmem:[#allocation10 + $0x10] sm:$0xff]
    %v1009 = vld [vmem:[#allocation10 + $0x18] sm:$0xff]
    %v1010 = vld [vmem:[#allocation10 + $0x20] sm:$0xff]
    %v1011 = vld [vmem:[#allocation10 + $0x28] sm:$0xff]
    %v1012 = vld [vmem:[#allocation10 + $0x30] sm:$0xff]
    %v1013 = vld [vmem:[#allocation10 + $0x38] sm:$0xff]
    %v1014 = vld [vmem:[#allocation10 + $0x40] sm:$0xff]
    %v1015 = vld [vmem:[#allocation10 + $0x48] sm:$0xff]
    %v1016 = vld [vmem:[#allocation10 + $0x50] sm:$0xff]
    %v1017 = vld [vmem:[#allocation10 + $0x58] sm:$0xff]
    %v1018 = vld [vmem:[#allocation10 + $0x60] sm:$0xff]
    %v1019 = vld [vmem:[#allocation10 + $0x68] sm:$0xff]
    %v1020 = vld [vmem:[#allocation10 + $0x70] sm:$0xff]
    %v1021 = vld [vmem:[#allocation10 + $0x78] sm:$0xff]
    %v1022 = vld [vmem:[#allocation10 + $0x80] sm:$0xff]
    %v1023 = vld [vmem:[#allocation10 + $0x88] sm:$0xff]
    %v1024 = vld [vmem:[#allocation10 + $0x90] sm:$0xff]
    %v1025 = vld [vmem:[#allocation10 + $0x98] sm:$0xff]
    %v1026 = vld [vmem:[#allocation10 + $0xa0] sm:$0xff]
    %v1027 = vld [vmem:[#allocation10 + $0xa8] sm:$0xff]
    %v1028 = vld [vmem:[#allocation10 + $0xb0] sm:$0xff]
    %v1029 = vld [vmem:[#allocation10 + $0xb8] sm:$0xff]
    %v1030 = vld [vmem:[#allocation10 + $0xc0] sm:$0xff]
    %v1031 = vld [vmem:[#allocation10 + $0xc8] sm:$0xff]
    %v1032 = vld [vmem:[#allocation10 + $0xd0] sm:$0xff]
    %v1033 = vld [vmem:[#allocation10 + $0xd8] sm:$0xff]
    %v1034 = vld [vmem:[#allocation10 + $0xe0] sm:$0xff]
    %v1035 = vld [vmem:[#allocation10 + $0xe8] sm:$0xff]
    %v1036 = vld [vmem:[#allocation10 + $0xf0] sm:$0xff]
    %v1037 = vld [vmem:[#allocation10 + $0xf8] sm:$0xff]
    %v1038 = vld [vmem:[#allocation11] sm:$0xff]
    %v1039 = vld [vmem:[#allocation11 + $0x8] sm:$0xff]
    %v1040 = vld [vmem:[#allocation11 + $0x10] sm:$0xff]
    %v1041 = vld [vmem:[#allocation11 + $0x18] sm:$0xff]
    %v1042 = vld [vmem:[#allocation11 + $0x20] sm:$0xff]
    %v1043 = vld [vmem:[#allocation11 + $0x28] sm:$0xff]
    %v1044 = vld [vmem:[#allocation11 + $0x30] sm:$0xff]
    %v1045 = vld [vmem:[#allocation11 + $0x38] sm:$0xff]
    %v1046 = vld [vmem:[#allocation11 + $0x40] sm:$0xff]
    %v1047 = vld [vmem:[#allocation11 + $0x48] sm:$0xff]
    %v1048 = vld [vmem:[#allocation11 + $0x50] sm:$0xff]
    %v1049 = vld [vmem:[#allocation11 + $0x58] sm:$0xff]
    %v1050 = vld [vmem:[#allocation11 + $0x60] sm:$0xff]
    %v1051 = vld [vmem:[#allocation11 + $0x68] sm:$0xff]
    %v1052 = vld [vmem:[#allocation11 + $0x70] sm:$0xff]
    %v1053 = vld [vmem:[#allocation11 + $0x78] sm:$0xff]
    %v1054 = vld [vmem:[#allocation11 + $0x80] sm:$0xff]
    %v1055 = vld [vmem:[#allocation11 + $0x88] sm:$0xff]
    %v1056 = vld [vmem:[#allocation11 + $0x90] sm:$0xff]
    %v1057 = vld [vmem:[#allocation11 + $0x98] sm:$0xff]
    %v1058 = vld [vmem:[#allocation11 + $0xa0] sm:$0xff]
    %v1059 = vld [vmem:[#allocation11 + $0xa8] sm:$0xff]
    %v1060 = vld [vmem:[#allocation11 + $0xb0] sm:$0xff]
    %v1061 = vld [vmem:[#allocation11 + $0xb8] sm:$0xff]
    %v1062 = vld [vmem:[#allocation11 + $0xc0] sm:$0xff]
    %v1063 = vld [vmem:[#allocation11 + $0xc8] sm:$0xff]
    %v1064 = vld [vmem:[#allocation11 + $0xd0] sm:$0xff]
    %v1065 = vld [vmem:[#allocation11 + $0xd8] sm:$0xff]
    %v1066 = vld [vmem:[#allocation11 + $0xe0] sm:$0xff]
    %v1067 = vld [vmem:[#allocation11 + $0xe8] sm:$0xff]
    %v1068 = vld [vmem:[#allocation11 + $0xf0] sm:$0xff]
    %v1069 = vld [vmem:[#allocation11 + $0xf8] sm:$0xff]
    %v1070 = vpack.c.bf16 %v987, %v987
    %v1071 = vperm.slane %v255, 2
    %v1072 = vperm.slane %v256, 2
    %v1089 = vunpack.c.l.b16 %v990
    %v1090 = vunpack.c.h.b16 %v990
    %v1091 = vunpack.c.l.b16 %v991
    %v1092 = vunpack.c.h.b16 %v991
    %v1093 = vunpack.c.l.b16 %v992
    %v1094 = vunpack.c.h.b16 %v992
    %v1095 = vunpack.c.l.b16 %v993
    %v1096 = vunpack.c.h.b16 %v993
    %v1097 = vunpack.c.l.b16 %v994
    %v1098 = vunpack.c.h.b16 %v994
    %v1099 = vunpack.c.l.b16 %v995
    %v1100 = vunpack.c.h.b16 %v995
    %v1101 = vunpack.c.l.b16 %v996
    %v1102 = vunpack.c.h.b16 %v996
    %v1103 = vunpack.c.l.b16 %v997
    %v1104 = vunpack.c.h.b16 %v997
    %v1105 = vunpack.c.l.b16 %v998
    %v1106 = vunpack.c.h.b16 %v998
    %v1107 = vunpack.c.l.b16 %v999
    %v1108 = vunpack.c.h.b16 %v999
    %v1109 = vunpack.c.l.b16 %v1000
    %v1110 = vunpack.c.h.b16 %v1000
    %v1111 = vunpack.c.l.b16 %v1001
    %v1112 = vunpack.c.h.b16 %v1001
    %v1113 = vunpack.c.l.b16 %v1002
    %v1114 = vunpack.c.h.b16 %v1002
    %v1115 = vunpack.c.l.b16 %v1003
    %v1116 = vunpack.c.h.b16 %v1003
    %v1117 = vunpack.c.l.b16 %v1004
    %v1118 = vunpack.c.h.b16 %v1004
    %v1119 = vunpack.c.l.b16 %v1005
    %v1120 = vunpack.c.h.b16 %v1005
    %v1121 = vpack.c.b16 %v1091, %v1089
    %v1122 = vpack.c.b16 %v1092, %v1090
    %v1123 = vpack.c.b16 %v1095, %v1093
    %v1124 = vpack.c.b16 %v1096, %v1094
    %v1125 = vpack.c.b16 %v1099, %v1097
    %v1126 = vpack.c.b16 %v1100, %v1098
    %v1127 = vpack.c.b16 %v1103, %v1101
    %v1128 = vpack.c.b16 %v1104, %v1102
    %v1129 = vpack.c.b16 %v1107, %v1105
    %v1130 = vpack.c.b16 %v1108, %v1106
    %v1131 = vpack.c.b16 %v1111, %v1109
    %v1132 = vpack.c.b16 %v1112, %v1110
    %v1133 = vpack.c.b16 %v1115, %v1113
    %v1134 = vpack.c.b16 %v1116, %v1114
    %v1135 = vpack.c.b16 %v1119, %v1117
    %v1136 = vpack.c.b16 %v1120, %v1118
    %1153 = vmatpush.bf16.msra.mxu0 %v1135
    %1154 = vmatpush.bf16.msra.mxu0 %v1133
    %1155 = vmatpush.bf16.msra.mxu0 %v1131
    %1156 = vmatpush.bf16.msra.mxu0 %v1129
    %1157 = vmatpush.bf16.msra.mxu0 %v1127
    %1158 = vmatpush.bf16.msra.mxu0 %v1125
    %1159 = vmatpush.bf16.msra.mxu0 %v1123
    %1160 = vmatpush.bf16.msra.mxu0 %v1121
    %1161 = vmatmul.bf16.gmra.mxu0 %v1070
    %v1162 = vpop.f32.mrf.mxu0
    %v1163 = vadd.f32 %v1071, %v1162
    %v1164 = vpop.f32.mrf.mxu0
    %1165 = vdwg.mxu0
    %1166 = vmatpush.bf16.msra.mxu0 %v1136
    %1167 = vmatpush.bf16.msra.mxu0 %v1134
    %1168 = vmatpush.bf16.msra.mxu0 %v1132
    %1169 = vmatpush.bf16.msra.mxu0 %v1130
    %1170 = vmatpush.bf16.msra.mxu0 %v1128
    %1171 = vmatpush.bf16.msra.mxu0 %v1126
    %1172 = vmatpush.bf16.msra.mxu0 %v1124
    %1173 = vmatpush.bf16.msra.mxu0 %v1122
    %1174 = vmatmul.bf16.gmra.mxu0 %v1070
    %v1175 = vpop.f32.mrf.mxu0
    %v1176 = vadd.f32 %v1072, %v1175
    %v1177 = vpop.f32.mrf.mxu0
    %1178 = vdwg.mxu0
    %v1179 = vrot.slane %v1163, 4
    %v1180 = vadd.f32 %v1163, %v1179
    %v1181 = vrot.slane %v1180, 2
    %v1182 = vadd.f32 %v1180, %v1181
    %v1183 = vrot.slane %v1182, 1
    %v1184 = vadd.f32 %v1182, %v1183
    %v1185 = vrot.slane %v1176, 4
    %v1186 = vadd.f32 %v1176, %v1185
    %v1187 = vrot.slane %v1186, 2
    %v1188 = vadd.f32 %v1186, %v1187
    %v1189 = vrot.slane %v1188, 1
    %v1190 = vadd.f32 %v1188, %v1189
    %v1191 = vrcp.pop 8.0
    %v1192 = vmul.f32 8.0, %v1191
    %v1193 = vsub.f32 1.0, %v1192
    %v1194 = vmul.f32 %v1191, %v1193
    %v1195 = vadd.f32 %v1191, %v1194
    %vm1196 = vweird.f32 %v1191
    %v1197 = vsel %vm1196, %v1191, %v1195
    %v1198 = vmul.f32 %v1184, %v1197
    %v1199 = vmul.f32 %v1190, %v1197
    %v1200 = vsub.f32 %v1163, %v1198
    %v1201 = vsub.f32 %v1176, %v1199
    %v1202 = vmul.f32 %v1200, %v1200
    %v1203 = vmul.f32 %v1201, %v1201
    %v1204 = vrot.slane %v1202, 4
    %v1205 = vadd.f32 %v1202, %v1204
    %v1206 = vrot.slane %v1205, 2
    %v1207 = vadd.f32 %v1205, %v1206
    %v1208 = vrot.slane %v1207, 1
    %v1209 = vadd.f32 %v1207, %v1208
    %v1210 = vrot.slane %v1203, 4
    %v1211 = vadd.f32 %v1203, %v1210
    %v1212 = vrot.slane %v1211, 2
    %v1213 = vadd.f32 %v1211, %v1212
    %v1214 = vrot.slane %v1213, 1
    %v1215 = vadd.f32 %v1213, %v1214
    %v1216 = vmul.f32 %v1209, %v1197
    %v1217 = vmul.f32 %v1215, %v1197
    %v1218 = vadd.f32 %v1216, 1e-05
    %v1219 = vadd.f32 %v1217, 1e-05
    %v1220 = vrsqrt.pop %v1218
    %v1221 = vmul.f32 %v1220, %v1218
    %v1222 = vmul.f32 %v1221, %v1220
    %v1223 = vmul.f32 0.5, %v1222
    %v1224 = vsub.f32 1.5, %v1223
    %v1225 = vmul.f32 %v1220, %v1224
    %vm1226 = vweird.f32 %v1218
    %vm1227 = vweird.f32 %v1220
    %vm1228 = vmor %vm1226, %vm1227
    %v1229 = vsel %vm1228, %v1220, %v1225
    %v1230 = vrsqrt.pop %v1219
    %v1231 = vmul.f32 %v1230, %v1219
    %v1232 = vmul.f32 %v1231, %v1230
    %v1233 = vmul.f32 0.5, %v1232
    %v1234 = vsub.f32 1.5, %v1233
    %v1235 = vmul.f32 %v1230, %v1234
    %vm1236 = vweird.f32 %v1219
    %vm1237 = vweird.f32 %v1230
    %vm1238 = vmor %vm1236, %vm1237
    %v1239 = vsel %vm1238, %v1230, %v1235
    %v1240 = vmul.f32 %v1200, %v1229
    %v1241 = vmul.f32 %v1201, %v1239
    %v1242 = vperm.slane %v255, 3
    %v1243 = vperm.slane %v256, 3
    %v1244 = vmul.f32 %v1240, %v1242
    %v1245 = vmul.f32 %v1241, %v1243
    %v1246 = vperm.slane %v255, 4
    %v1247 = vperm.slane %v256, 4
    %v1248 = vadd.f32 %v1244, %v1246
    %v1249 = vadd.f32 %v1245, %v1247
    %v1250 = vmax.f32 %v1248, 0.0
    %v1251 = vmax.f32 %v1249, 0.0
    %v1252 = vpack.c.bf16 %v1250, %v1250
    %v1253 = vpack.c.bf16 %v1251, %v1251
    %v1254 = vperm.slane %v255, 5
    %v1255 = vperm.slane %v256, 5
    %v1288 = vunpack.c.l.b16 %v1006
    %v1289 = vunpack.c.h.b16 %v1006
    %v1290 = vunpack.c.l.b16 %v1007
    %v1291 = vunpack.c.h.b16 %v1007
    %v1292 = vunpack.c.l.b16 %v1008
    %v1293 = vunpack.c.h.b16 %v1008
    %v1294 = vunpack.c.l.b16 %v1009
    %v1295 = vunpack.c.h.b16 %v1009
    %v1296 = vunpack.c.l.b16 %v1010
    %v1297 = vunpack.c.h.b16 %v1010
    %v1298 = vunpack.c.l.b16 %v1011
    %v1299 = vunpack.c.h.b16 %v1011
    %v1300 = vunpack.c.l.b16 %v1012
    %v1301 = vunpack.c.h.b16 %v1012
    %v1302 = vunpack.c.l.b16 %v1013
    %v1303 = vunpack.c.h.b16 %v1013
    %v1304 = vunpack.c.l.b16 %v1014
    %v1305 = vunpack.c.h.b16 %v1014
    %v1306 = vunpack.c.l.b16 %v1015
    %v1307 = vunpack.c.h.b16 %v1015
    %v1308 = vunpack.c.l.b16 %v1016
    %v1309 = vunpack.c.h.b16 %v1016
    %v1310 = vunpack.c.l.b16 %v1017
    %v1311 = vunpack.c.h.b16 %v1017
    %v1312 = vunpack.c.l.b16 %v1018
    %v1313 = vunpack.c.h.b16 %v1018
    %v1314 = vunpack.c.l.b16 %v1019
    %v1315 = vunpack.c.h.b16 %v1019
    %v1316 = vunpack.c.l.b16 %v1020
    %v1317 = vunpack.c.h.b16 %v1020
    %v1318 = vunpack.c.l.b16 %v1021
    %v1319 = vunpack.c.h.b16 %v1021
    %v1320 = vunpack.c.l.b16 %v1022
    %v1321 = vunpack.c.h.b16 %v1022
    %v1322 = vunpack.c.l.b16 %v1023
    %v1323 = vunpack.c.h.b16 %v1023
    %v1324 = vunpack.c.l.b16 %v1024
    %v1325 = vunpack.c.h.b16 %v1024
    %v1326 = vunpack.c.l.b16 %v1025
    %v1327 = vunpack.c.h.b16 %v1025
    %v1328 = vunpack.c.l.b16 %v1026
    %v1329 = vunpack.c.h.b16 %v1026
    %v1330 = vunpack.c.l.b16 %v1027
    %v1331 = vunpack.c.h.b16 %v1027
    %v1332 = vunpack.c.l.b16 %v1028
    %v1333 = vunpack.c.h.b16 %v1028
    %v1334 = vunpack.c.l.b16 %v1029
    %v1335 = vunpack.c.h.b16 %v1029
    %v1336 = vunpack.c.l.b16 %v1030
    %v1337 = vunpack.c.h.b16 %v1030
    %v1338 = vunpack.c.l.b16 %v1031
    %v1339 = vunpack.c.h.b16 %v1031
    %v1340 = vunpack.c.l.b16 %v1032
    %v1341 = vunpack.c.h.b16 %v1032
    %v1342 = vunpack.c.l.b16 %v1033
    %v1343 = vunpack.c.h.b16 %v1033
    %v1344 = vunpack.c.l.b16 %v1034
    %v1345 = vunpack.c.h.b16 %v1034
    %v1346 = vunpack.c.l.b16 %v1035
    %v1347 = vunpack.c.h.b16 %v1035
    %v1348 = vunpack.c.l.b16 %v1036
    %v1349 = vunpack.c.h.b16 %v1036
    %v1350 = vunpack.c.l.b16 %v1037
    %v1351 = vunpack.c.h.b16 %v1037
    %v1352 = vpack.c.b16 %v1290, %v1288
    %v1353 = vpack.c.b16 %v1291, %v1289
    %v1354 = vpack.c.b16 %v1294, %v1292
    %v1355 = vpack.c.b16 %v1295, %v1293
    %v1356 = vpack.c.b16 %v1298, %v1296
    %v1357 = vpack.c.b16 %v1299, %v1297
    %v1358 = vpack.c.b16 %v1302, %v1300
    %v1359 = vpack.c.b16 %v1303, %v1301
    %v1360 = vpack.c.b16 %v1306, %v1304
    %v1361 = vpack.c.b16 %v1307, %v1305
    %v1362 = vpack.c.b16 %v1310, %v1308
    %v1363 = vpack.c.b16 %v1311, %v1309
    %v1364 = vpack.c.b16 %v1314, %v1312
    %v1365 = vpack.c.b16 %v1315, %v1313
    %v1366 = vpack.c.b16 %v1318, %v1316
    %v1367 = vpack.c.b16 %v1319, %v1317
    %v1368 = vpack.c.b16 %v1322, %v1320
    %v1369 = vpack.c.b16 %v1323, %v1321
    %v1370 = vpack.c.b16 %v1326, %v1324
    %v1371 = vpack.c.b16 %v1327, %v1325
    %v1372 = vpack.c.b16 %v1330, %v1328
    %v1373 = vpack.c.b16 %v1331, %v1329
    %v1374 = vpack.c.b16 %v1334, %v1332
    %v1375 = vpack.c.b16 %v1335, %v1333
    %v1376 = vpack.c.b16 %v1338, %v1336
    %v1377 = vpack.c.b16 %v1339, %v1337
    %v1378 = vpack.c.b16 %v1342, %v1340
    %v1379 = vpack.c.b16 %v1343, %v1341
    %v1380 = vpack.c.b16 %v1346, %v1344
    %v1381 = vpack.c.b16 %v1347, %v1345
    %v1382 = vpack.c.b16 %v1350, %v1348
    %v1383 = vpack.c.b16 %v1351, %v1349
    %1416 = vmatpush.bf16.msra.mxu0 %v1366
    %1417 = vmatpush.bf16.msra.mxu0 %v1364
    %1418 = vmatpush.bf16.msra.mxu0 %v1362
    %1419 = vmatpush.bf16.msra.mxu0 %v1360
    %1420 = vmatpush.bf16.msra.mxu0 %v1358
    %1421 = vmatpush.bf16.msra.mxu0 %v1356
    %1422 = vmatpush.bf16.msra.mxu0 %v1354
    %1423 = vmatpush.bf16.msra.mxu0 %v1352
    %1424 = vmatmul.bf16.gmra.mxu0 %v1252
    %v1425 = vpop.f32.mrf.mxu0
    %v1426 = vadd.f32 %v1254, %v1425
    %v1427 = vpop.f32.mrf.mxu0
    %1428 = vdwg.mxu0
    %1429 = vmatpush.bf16.msra.mxu0 %v1382
    %1430 = vmatpush.bf16.msra.mxu0 %v1380
    %1431 = vmatpush.bf16.msra.mxu0 %v1378
    %1432 = vmatpush.bf16.msra.mxu0 %v1376
    %1433 = vmatpush.bf16.msra.mxu0 %v1374
    %1434 = vmatpush.bf16.msra.mxu0 %v1372
    %1435 = vmatpush.bf16.msra.mxu0 %v1370
    %1436 = vmatpush.bf16.msra.mxu0 %v1368
    %1437 = vmatmul.bf16.gmra.mxu0 %v1253
    %v1438 = vpop.f32.mrf.mxu0
    %v1439 = vadd.f32 %v1426, %v1438
    %v1440 = vpop.f32.mrf.mxu0
    %1441 = vdwg.mxu0
    %1442 = vmatpush.bf16.msra.mxu0 %v1367
    %1443 = vmatpush.bf16.msra.mxu0 %v1365
    %1444 = vmatpush.bf16.msra.mxu0 %v1363
    %1445 = vmatpush.bf16.msra.mxu0 %v1361
    %1446 = vmatpush.bf16.msra.mxu0 %v1359
    %1447 = vmatpush.bf16.msra.mxu0 %v1357
    %1448 = vmatpush.bf16.msra.mxu0 %v1355
    %1449 = vmatpush.bf16.msra.mxu0 %v1353
    %1450 = vmatmul.bf16.gmra.mxu0 %v1252
    %v1451 = vpop.f32.mrf.mxu0
    %v1452 = vadd.f32 %v1255, %v1451
    %v1453 = vpop.f32.mrf.mxu0
    %1454 = vdwg.mxu0
    %1455 = vmatpush.bf16.msra.mxu0 %v1383
    %1456 = vmatpush.bf16.msra.mxu0 %v1381
    %1457 = vmatpush.bf16.msra.mxu0 %v1379
    %1458 = vmatpush.bf16.msra.mxu0 %v1377
    %1459 = vmatpush.bf16.msra.mxu0 %v1375
    %1460 = vmatpush.bf16.msra.mxu0 %v1373
    %1461 = vmatpush.bf16.msra.mxu0 %v1371
    %1462 = vmatpush.bf16.msra.mxu0 %v1369
    %1463 = vmatmul.bf16.gmra.mxu0 %v1253
    %v1464 = vpop.f32.mrf.mxu0
    %v1465 = vadd.f32 %v1452, %v1464
    %v1466 = vpop.f32.mrf.mxu0
    %1467 = vdwg.mxu0
    %v1468 = vrot.slane %v1439, 4
    %v1469 = vadd.f32 %v1439, %v1468
    %v1470 = vrot.slane %v1469, 2
    %v1471 = vadd.f32 %v1469, %v1470
    %v1472 = vrot.slane %v1471, 1
    %v1473 = vadd.f32 %v1471, %v1472
    %v1474 = vrot.slane %v1465, 4
    %v1475 = vadd.f32 %v1465, %v1474
    %v1476 = vrot.slane %v1475, 2
    %v1477 = vadd.f32 %v1475, %v1476
    %v1478 = vrot.slane %v1477, 1
    %v1479 = vadd.f32 %v1477, %v1478
    %v1480 = vmul.f32 %v1473, %v1197
    %v1481 = vmul.f32 %v1479, %v1197
    %v1482 = vsub.f32 %v1439, %v1480
    %v1483 = vsub.f32 %v1465, %v1481
    %v1484 = vmul.f32 %v1482, %v1482
    %v1485 = vmul.f32 %v1483, %v1483
    %v1486 = vrot.slane %v1484, 4
    %v1487 = vadd.f32 %v1484, %v1486
    %v1488 = vrot.slane %v1487, 2
    %v1489 = vadd.f32 %v1487, %v1488
    %v1490 = vrot.slane %v1489, 1
    %v1491 = vadd.f32 %v1489, %v1490
    %v1492 = vrot.slane %v1485, 4
    %v1493 = vadd.f32 %v1485, %v1492
    %v1494 = vrot.slane %v1493, 2
    %v1495 = vadd.f32 %v1493, %v1494
    %v1496 = vrot.slane %v1495, 1
    %v1497 = vadd.f32 %v1495, %v1496
    %v1498 = vmul.f32 %v1491, %v1197
    %v1499 = vmul.f32 %v1497, %v1197
    %v1500 = vadd.f32 %v1498, 1e-05
    %v1501 = vadd.f32 %v1499, 1e-05
    %v1502 = vrsqrt.pop %v1500
    %v1503 = vmul.f32 %v1502, %v1500
    %v1504 = vmul.f32 %v1503, %v1502
    %v1505 = vmul.f32 0.5, %v1504
    %v1506 = vsub.f32 1.5, %v1505
    %v1507 = vmul.f32 %v1502, %v1506
    %vm1508 = vweird.f32 %v1500
    %vm1509 = vweird.f32 %v1502
    %vm1510 = vmor %vm1508, %vm1509
    %v1511 = vsel %vm1510, %v1502, %v1507
    %v1512 = vrsqrt.pop %v1501
    %v1513 = vmul.f32 %v1512, %v1501
    %v1514 = vmul.f32 %v1513, %v1512
    %v1515 = vmul.f32 0.5, %v1514
    %v1516 = vsub.f32 1.5, %v1515
    %v1517 = vmul.f32 %v1512, %v1516
    %vm1518 = vweird.f32 %v1501
    %vm1519 = vweird.f32 %v1512
    %vm1520 = vmor %vm1518, %vm1519
    %v1521 = vsel %vm1520, %v1512, %v1517
    %v1522 = vmul.f32 %v1482, %v1511
    %v1523 = vmul.f32 %v1483, %v1521
    %v1524 = vperm.slane %v255, 6
    %v1525 = vperm.slane %v256, 6
    %v1526 = vmul.f32 %v1522, %v1524
    %v1527 = vmul.f32 %v1523, %v1525
    %v1528 = vperm.slane %v255, 7
    %v1529 = vperm.slane %v256, 7
    %v1530 = vadd.f32 %v1526, %v1528
    %v1531 = vadd.f32 %v1527, %v1529
    %v1532 = vmax.f32 %v1530, 0.0
    %v1533 = vmax.f32 %v1531, 0.0
    %v1534 = vpack.c.bf16 %v1532, %v1532
    %v1535 = vpack.c.bf16 %v1533, %v1533
    %v1536 = vperm.slane %v257, 0
    %v1537 = vperm.slane %v258, 0
    %v1570 = vunpack.c.l.b16 %v1038
    %v1571 = vunpack.c.h.b16 %v1038
    %v1572 = vunpack.c.l.b16 %v1039
    %v1573 = vunpack.c.h.b16 %v1039
    %v1574 = vunpack.c.l.b16 %v1040
    %v1575 = vunpack.c.h.b16 %v1040
    %v1576 = vunpack.c.l.b16 %v1041
    %v1577 = vunpack.c.h.b16 %v1041
    %v1578 = vunpack.c.l.b16 %v1042
    %v1579 = vunpack.c.h.b16 %v1042
    %v1580 = vunpack.c.l.b16 %v1043
    %v1581 = vunpack.c.h.b16 %v1043
    %v1582 = vunpack.c.l.b16 %v1044
    %v1583 = vunpack.c.h.b16 %v1044
    %v1584 = vunpack.c.l.b16 %v1045
    %v1585 = vunpack.c.h.b16 %v1045
    %v1586 = vunpack.c.l.b16 %v1046
    %v1587 = vunpack.c.h.b16 %v1046
    %v1588 = vunpack.c.l.b16 %v1047
    %v1589 = vunpack.c.h.b16 %v1047
    %v1590 = vunpack.c.l.b16 %v1048
    %v1591 = vunpack.c.h.b16 %v1048
    %v1592 = vunpack.c.l.b16 %v1049
    %v1593 = vunpack.c.h.b16 %v1049
    %v1594 = vunpack.c.l.b16 %v1050
    %v1595 = vunpack.c.h.b16 %v1050
    %v1596 = vunpack.c.l.b16 %v1051
    %v1597 = vunpack.c.h.b16 %v1051
    %v1598 = vunpack.c.l.b16 %v1052
    %v1599 = vunpack.c.h.b16 %v1052
    %v1600 = vunpack.c.l.b16 %v1053
    %v1601 = vunpack.c.h.b16 %v1053
    %v1602 = vunpack.c.l.b16 %v1054
    %v1603 = vunpack.c.h.b16 %v1054
    %v1604 = vunpack.c.l.b16 %v1055
    %v1605 = vunpack.c.h.b16 %v1055
    %v1606 = vunpack.c.l.b16 %v1056
    %v1607 = vunpack.c.h.b16 %v1056
    %v1608 = vunpack.c.l.b16 %v1057
    %v1609 = vunpack.c.h.b16 %v1057
    %v1610 = vunpack.c.l.b16 %v1058
    %v1611 = vunpack.c.h.b16 %v1058
    %v1612 = vunpack.c.l.b16 %v1059
    %v1613 = vunpack.c.h.b16 %v1059
    %v1614 = vunpack.c.l.b16 %v1060
    %v1615 = vunpack.c.h.b16 %v1060
    %v1616 = vunpack.c.l.b16 %v1061
    %v1617 = vunpack.c.h.b16 %v1061
    %v1618 = vunpack.c.l.b16 %v1062
    %v1619 = vunpack.c.h.b16 %v1062
    %v1620 = vunpack.c.l.b16 %v1063
    %v1621 = vunpack.c.h.b16 %v1063
    %v1622 = vunpack.c.l.b16 %v1064
    %v1623 = vunpack.c.h.b16 %v1064
    %v1624 = vunpack.c.l.b16 %v1065
    %v1625 = vunpack.c.h.b16 %v1065
    %v1626 = vunpack.c.l.b16 %v1066
    %v1627 = vunpack.c.h.b16 %v1066
    %v1628 = vunpack.c.l.b16 %v1067
    %v1629 = vunpack.c.h.b16 %v1067
    %v1630 = vunpack.c.l.b16 %v1068
    %v1631 = vunpack.c.h.b16 %v1068
    %v1632 = vunpack.c.l.b16 %v1069
    %v1633 = vunpack.c.h.b16 %v1069
    %v1634 = vpack.c.b16 %v1572, %v1570
    %v1635 = vpack.c.b16 %v1573, %v1571
    %v1636 = vpack.c.b16 %v1576, %v1574
    %v1637 = vpack.c.b16 %v1577, %v1575
    %v1638 = vpack.c.b16 %v1580, %v1578
    %v1639 = vpack.c.b16 %v1581, %v1579
    %v1640 = vpack.c.b16 %v1584, %v1582
    %v1641 = vpack.c.b16 %v1585, %v1583
    %v1642 = vpack.c.b16 %v1588, %v1586
    %v1643 = vpack.c.b16 %v1589, %v1587
    %v1644 = vpack.c.b16 %v1592, %v1590
    %v1645 = vpack.c.b16 %v1593, %v1591
    %v1646 = vpack.c.b16 %v1596, %v1594
    %v1647 = vpack.c.b16 %v1597, %v1595
    %v1648 = vpack.c.b16 %v1600, %v1598
    %v1649 = vpack.c.b16 %v1601, %v1599
    %v1650 = vpack.c.b16 %v1604, %v1602
    %v1651 = vpack.c.b16 %v1605, %v1603
    %v1652 = vpack.c.b16 %v1608, %v1606
    %v1653 = vpack.c.b16 %v1609, %v1607
    %v1654 = vpack.c.b16 %v1612, %v1610
    %v1655 = vpack.c.b16 %v1613, %v1611
    %v1656 = vpack.c.b16 %v1616, %v1614
    %v1657 = vpack.c.b16 %v1617, %v1615
    %v1658 = vpack.c.b16 %v1620, %v1618
    %v1659 = vpack.c.b16 %v1621, %v1619
    %v1660 = vpack.c.b16 %v1624, %v1622
    %v1661 = vpack.c.b16 %v1625, %v1623
    %v1662 = vpack.c.b16 %v1628, %v1626
    %v1663 = vpack.c.b16 %v1629, %v1627
    %v1664 = vpack.c.b16 %v1632, %v1630
    %v1665 = vpack.c.b16 %v1633, %v1631
    %1698 = vmatpush.bf16.msra.mxu0 %v1648
    %1699 = vmatpush.bf16.msra.mxu0 %v1646
    %1700 = vmatpush.bf16.msra.mxu0 %v1644
    %1701 = vmatpush.bf16.msra.mxu0 %v1642
    %1702 = vmatpush.bf16.msra.mxu0 %v1640
    %1703 = vmatpush.bf16.msra.mxu0 %v1638
    %1704 = vmatpush.bf16.msra.mxu0 %v1636
    %1705 = vmatpush.bf16.msra.mxu0 %v1634
    %1706 = vmatmul.bf16.gmra.mxu0 %v1534
    %v1707 = vpop.f32.mrf.mxu0
    %v1708 = vadd.f32 %v1536, %v1707
    %v1709 = vpop.f32.mrf.mxu0
    %1710 = vdwg.mxu0
    %1711 = vmatpush.bf16.msra.mxu0 %v1664
    %1712 = vmatpush.bf16.msra.mxu0 %v1662
    %1713 = vmatpush.bf16.msra.mxu0 %v1660
    %1714 = vmatpush.bf16.msra.mxu0 %v1658
    %1715 = vmatpush.bf16.msra.mxu0 %v1656
    %1716 = vmatpush.bf16.msra.mxu0 %v1654
    %1717 = vmatpush.bf16.msra.mxu0 %v1652
    %1718 = vmatpush.bf16.msra.mxu0 %v1650
    %1719 = vmatmul.bf16.gmra.mxu0 %v1535
    %v1720 = vpop.f32.mrf.mxu0
    %v1721 = vadd.f32 %v1708, %v1720
    %v1722 = vpop.f32.mrf.mxu0
    %1723 = vdwg.mxu0
    %1724 = vmatpush.bf16.msra.mxu0 %v1649
    %1725 = vmatpush.bf16.msra.mxu0 %v1647
    %1726 = vmatpush.bf16.msra.mxu0 %v1645
    %1727 = vmatpush.bf16.msra.mxu0 %v1643
    %1728 = vmatpush.bf16.msra.mxu0 %v1641
    %1729 = vmatpush.bf16.msra.mxu0 %v1639
    %1730 = vmatpush.bf16.msra.mxu0 %v1637
    %1731 = vmatpush.bf16.msra.mxu0 %v1635
    %1732 = vmatmul.bf16.gmra.mxu0 %v1534
    %v1733 = vpop.f32.mrf.mxu0
    %v1734 = vadd.f32 %v1537, %v1733
    %v1735 = vpop.f32.mrf.mxu0
    %1736 = vdwg.mxu0
    %1737 = vmatpush.bf16.msra.mxu0 %v1665
    %1738 = vmatpush.bf16.msra.mxu0 %v1663
    %1739 = vmatpush.bf16.msra.mxu0 %v1661
    %1740 = vmatpush.bf16.msra.mxu0 %v1659
    %1741 = vmatpush.bf16.msra.mxu0 %v1657
    %1742 = vmatpush.bf16.msra.mxu0 %v1655
    %1743 = vmatpush.bf16.msra.mxu0 %v1653
    %1744 = vmatpush.bf16.msra.mxu0 %v1651
    %1745 = vmatmul.bf16.gmra.mxu0 %v1535
    %v1746 = vpop.f32.mrf.mxu0
    %v1747 = vadd.f32 %v1734, %v1746
    %v1748 = vpop.f32.mrf.mxu0
    %1749 = vdwg.mxu0
    %1750 = vst [vmem:[#allocation23] sm:$0xff] %v1721
    %1751 = vst [vmem:[#allocation23 + $0x8] sm:$0xff] %v1747
    %v1752 = vld [vmem:[%s6] sm:$0xf]
    %v1753 = vld [vmem:[%s6 + $0x4] sm:$0xf]
    %v1754 = vld [vmem:[%s6 + $0x8] sm:$0xf]
    %v1755 = vld [vmem:[%s6 + $0xc] sm:$0xf]
    %v1756 = vld [vmem:[%s10] sm:$0xff]
    %v1757 = vld [vmem:[%s10 + $0x8] sm:$0xff]
    %v1762 = vunpack.c.l.b16 %v1752
    %v1763 = vunpack.c.l.b16 %v1753
    %v1764 = vunpack.c.l.b16 %v1754
    %v1765 = vunpack.c.l.b16 %v1755
    %v1766 = vpack.c.b16 %v1763, %v1762
    %v1767 = vpack.c.b16 %v1765, %v1764
    %v1770 = vunpack.c.l.b16 %v1756
    %v1771 = vunpack.c.h.b16 %v1756
    %v1772 = vunpack.c.l.b16 %v1757
    %v1773 = vunpack.c.h.b16 %v1757
    %v1774 = vpack.c.b16 %v1772, %v1770
    %v1775 = vpack.c.b16 %v1773, %v1771
    %vm1778 = vcmask 130048
    %v1780 = vsel %vm1778, %v1766, 0
    %v1783 = vsel %vm1778, %v1767, 0
    %1785 = vmatpush.bf16.msra.mxu0 0
    %1786 = vmatpush.bf16.msra.mxu0 0
    %1787 = vmatpush.bf16.msra.mxu0 0
    %1788 = vmatpush.bf16.msra.mxu0 0
    %1789 = vmatpush.bf16.msra.mxu0 0
    %1790 = vmatpush.bf16.msra.mxu0 0
    %1791 = vmatpush.bf16.msra.mxu0 0
    %1792 = vmatpush.bf16.msra.mxu0 %v1774
    %1793 = vmatmul.bf16.gmra.mxu0 %v1780
    %v1794 = vpop.f32.mrf.mxu0
    %v1795 = vadd.f32 0.0, %v1794
    %v1796 = vpop.f32.mrf.mxu0
    %v1797 = vadd.f32 0.0, %v1796
    %1798 = vmatmul.bf16.gmra.mxu0 %v1783
    %v1799 = vpop.f32.mrf.mxu0
    %v1800 = vadd.f32 0.0, %v1799
    %v1801 = vpop.f32.mrf.mxu0
    %v1802 = vadd.f32 0.0, %v1801
    %1803 = vdwg.mxu0
    %1804 = vmatpush.bf16.msra.mxu0 0
    %1805 = vmatpush.bf16.msra.mxu0 0
    %1806 = vmatpush.bf16.msra.mxu0 0
    %1807 = vmatpush.bf16.msra.mxu0 0
    %1808 = vmatpush.bf16.msra.mxu0 0
    %1809 = vmatpush.bf16.msra.mxu0 0
    %1810 = vmatpush.bf16.msra.mxu0 0
    %1811 = vmatpush.bf16.msra.mxu0 %v1775
    %1812 = vmatmul.bf16.gmra.mxu0 %v1780
    %v1813 = vpop.f32.mrf.mxu0
    %v1814 = vadd.f32 0.0, %v1813
    %v1815 = vpop.f32.mrf.mxu0
    %v1816 = vadd.f32 0.0, %v1815
    %1817 = vmatmul.bf16.gmra.mxu0 %v1783
    %v1818 = vpop.f32.mrf.mxu0
    %v1819 = vadd.f32 0.0, %v1818
    %v1820 = vpop.f32.mrf.mxu0
    %v1821 = vadd.f32 0.0, %v1820
    %1822 = vdwg.mxu0
    %v1827 = vrot.slane %v1795, 1
    %v1828 = vrot.slane %v1795, 2
    %v1829 = vrot.slane %v1795, 3
    %v1830 = vrot.slane %v1795, 4
    %v1831 = vrot.slane %v1795, 5
    %v1832 = vrot.slane %v1795, 6
    %v1833 = vrot.slane %v1795, 7
    %v1834 = vrot.slane %v1797, 1
    %v1835 = vrot.slane %v1797, 2
    %v1836 = vrot.slane %v1797, 3
    %v1837 = vrot.slane %v1797, 4
    %v1838 = vrot.slane %v1797, 5
    %v1839 = vrot.slane %v1797, 6
    %v1840 = vrot.slane %v1797, 7
    %v1841 = vrot.slane %v1800, 1
    %v1842 = vrot.slane %v1800, 2
    %v1843 = vrot.slane %v1800, 3
    %v1844 = vrot.slane %v1800, 4
    %v1845 = vrot.slane %v1800, 5
    %v1846 = vrot.slane %v1800, 6
    %v1847 = vrot.slane %v1800, 7
    %v1848 = vrot.slane %v1802, 1
    %v1849 = vrot.slane %v1802, 2
    %v1850 = vrot.slane %v1802, 3
    %v1851 = vrot.slane %v1802, 4
    %v1852 = vrot.slane %v1802, 5
    %v1853 = vrot.slane %v1802, 6
    %v1854 = vrot.slane %v1802, 7
    %v1855 = vperm.slane %v1795, 0
    %v1856 = vperm.slane %v1827, 0
    %v1857 = vperm.slane %v1828, 0
    %v1858 = vperm.slane %v1829, 0
    %v1859 = vperm.slane %v1830, 0
    %v1860 = vperm.slane %v1831, 0
    %v1861 = vperm.slane %v1832, 0
    %v1862 = vperm.slane %v1833, 0
    %v1863 = vperm.slane %v1797, 0
    %v1864 = vperm.slane %v1834, 0
    %v1865 = vperm.slane %v1835, 0
    %v1866 = vperm.slane %v1836, 0
    %v1867 = vperm.slane %v1837, 0
    %v1868 = vperm.slane %v1838, 0
    %v1869 = vperm.slane %v1839, 0
    %v1870 = vperm.slane %v1840, 0
    %v1871 = vperm.slane %v1800, 0
    %v1872 = vperm.slane %v1841, 0
    %v1873 = vperm.slane %v1842, 0
    %v1874 = vperm.slane %v1843, 0
    %v1875 = vperm.slane %v1844, 0
    %v1876 = vperm.slane %v1845, 0
    %v1877 = vperm.slane %v1846, 0
    %v1878 = vperm.slane %v1847, 0
    %v1879 = vperm.slane %v1802, 0
    %v1880 = vperm.slane %v1848, 0
    %v1881 = vperm.slane %v1849, 0
    %v1882 = vperm.slane %v1850, 0
    %v1883 = vperm.slane %v1851, 0
    %v1884 = vperm.slane %v1852, 0
    %v1885 = vperm.slane %v1853, 0
    %v1886 = vperm.slane %v1854, 0
    %v1919 = vadd.f32 %v1855, %v1814
    %v1920 = vadd.f32 %v1855, %v1816
    %v1921 = vadd.f32 %v1855, %v1819
    %v1922 = vadd.f32 %v1855, %v1821
    %v1923 = vadd.f32 %v1856, %v1814
    %v1924 = vadd.f32 %v1856, %v1816
    %v1925 = vadd.f32 %v1856, %v1819
    %v1926 = vadd.f32 %v1856, %v1821
    %v1927 = vadd.f32 %v1857, %v1814
    %v1928 = vadd.f32 %v1857, %v1816
    %v1929 = vadd.f32 %v1857, %v1819
    %v1930 = vadd.f32 %v1857, %v1821
    %v1931 = vadd.f32 %v1858, %v1814
    %v1932 = vadd.f32 %v1858, %v1816
    %v1933 = vadd.f32 %v1858, %v1819
    %v1934 = vadd.f32 %v1858, %v1821
    %v1935 = vadd.f32 %v1859, %v1814
    %v1936 = vadd.f32 %v1859, %v1816
    %v1937 = vadd.f32 %v1859, %v1819
    %v1938 = vadd.f32 %v1859, %v1821
    %v1939 = vadd.f32 %v1860, %v1814
    %v1940 = vadd.f32 %v1860, %v1816
    %v1941 = vadd.f32 %v1860, %v1819
    %v1942 = vadd.f32 %v1860, %v1821
    %v1943 = vadd.f32 %v1861, %v1814
    %v1944 = vadd.f32 %v1861, %v1816
    %v1945 = vadd.f32 %v1861, %v1819
    %v1946 = vadd.f32 %v1861, %v1821
    %v1947 = vadd.f32 %v1862, %v1814
    %v1948 = vadd.f32 %v1862, %v1816
    %v1949 = vadd.f32 %v1862, %v1819
    %v1950 = vadd.f32 %v1862, %v1821
    %v1951 = vadd.f32 %v1863, %v1814
    %v1952 = vadd.f32 %v1863, %v1816
    %v1953 = vadd.f32 %v1863, %v1819
    %v1954 = vadd.f32 %v1863, %v1821
    %v1955 = vadd.f32 %v1864, %v1814
    %v1956 = vadd.f32 %v1864, %v1816
    %v1957 = vadd.f32 %v1864, %v1819
    %v1958 = vadd.f32 %v1864, %v1821
    %v1959 = vadd.f32 %v1865, %v1814
    %v1960 = vadd.f32 %v1865, %v1816
    %v1961 = vadd.f32 %v1865, %v1819
    %v1962 = vadd.f32 %v1865, %v1821
    %v1963 = vadd.f32 %v1866, %v1814
    %v1964 = vadd.f32 %v1866, %v1816
    %v1965 = vadd.f32 %v1866, %v1819
    %v1966 = vadd.f32 %v1866, %v1821
    %v1967 = vadd.f32 %v1867, %v1814
    %v1968 = vadd.f32 %v1867, %v1816
    %v1969 = vadd.f32 %v1867, %v1819
    %v1970 = vadd.f32 %v1867, %v1821
    %v1971 = vadd.f32 %v1868, %v1814
    %v1972 = vadd.f32 %v1868, %v1816
    %v1973 = vadd.f32 %v1868, %v1819
    %v1974 = vadd.f32 %v1868, %v1821
    %v1975 = vadd.f32 %v1869, %v1814
    %v1976 = vadd.f32 %v1869, %v1816
    %v1977 = vadd.f32 %v1869, %v1819
    %v1978 = vadd.f32 %v1869, %v1821
    %v1979 = vadd.f32 %v1870, %v1814
    %v1980 = vadd.f32 %v1870, %v1816
    %v1981 = vadd.f32 %v1870, %v1819
    %v1982 = vadd.f32 %v1870, %v1821
    %v1983 = vadd.f32 %v1871, %v1814
    %v1984 = vadd.f32 %v1871, %v1816
    %v1985 = vadd.f32 %v1871, %v1819
    %v1986 = vadd.f32 %v1871, %v1821
    %v1987 = vadd.f32 %v1872, %v1814
    %v1988 = vadd.f32 %v1872, %v1816
    %v1989 = vadd.f32 %v1872, %v1819
    %v1990 = vadd.f32 %v1872, %v1821
    %v1991 = vadd.f32 %v1873, %v1814
    %v1992 = vadd.f32 %v1873, %v1816
    %v1993 = vadd.f32 %v1873, %v1819
    %v1994 = vadd.f32 %v1873, %v1821
    %v1995 = vadd.f32 %v1874, %v1814
    %v1996 = vadd.f32 %v1874, %v1816
    %v1997 = vadd.f32 %v1874, %v1819
    %v1998 = vadd.f32 %v1874, %v1821
    %v1999 = vadd.f32 %v1875, %v1814
    %v2000 = vadd.f32 %v1875, %v1816
    %v2001 = vadd.f32 %v1875, %v1819
    %v2002 = vadd.f32 %v1875, %v1821
    %v2003 = vadd.f32 %v1876, %v1814
    %v2004 = vadd.f32 %v1876, %v1816
    %v2005 = vadd.f32 %v1876, %v1819
    %v2006 = vadd.f32 %v1876, %v1821
    %v2007 = vadd.f32 %v1877, %v1814
    %v2008 = vadd.f32 %v1877, %v1816
    %v2009 = vadd.f32 %v1877, %v1819
    %v2010 = vadd.f32 %v1877, %v1821
    %v2011 = vadd.f32 %v1878, %v1814
    %v2012 = vadd.f32 %v1878, %v1816
    %v2013 = vadd.f32 %v1878, %v1819
    %v2014 = vadd.f32 %v1878, %v1821
    %v2015 = vadd.f32 %v1879, %v1814
    %v2016 = vadd.f32 %v1879, %v1816
    %v2017 = vadd.f32 %v1879, %v1819
    %v2018 = vadd.f32 %v1879, %v1821
    %v2019 = vadd.f32 %v1880, %v1814
    %v2020 = vadd.f32 %v1880, %v1816
    %v2021 = vadd.f32 %v1880, %v1819
    %v2022 = vadd.f32 %v1880, %v1821
    %v2023 = vadd.f32 %v1881, %v1814
    %v2024 = vadd.f32 %v1881, %v1816
    %v2025 = vadd.f32 %v1881, %v1819
    %v2026 = vadd.f32 %v1881, %v1821
    %v2027 = vadd.f32 %v1882, %v1814
    %v2028 = vadd.f32 %v1882, %v1816
    %v2029 = vadd.f32 %v1882, %v1819
    %v2030 = vadd.f32 %v1882, %v1821
    %v2031 = vadd.f32 %v1883, %v1814
    %v2032 = vadd.f32 %v1883, %v1816
    %v2033 = vadd.f32 %v1883, %v1819
    %v2034 = vadd.f32 %v1883, %v1821
    %v2035 = vadd.f32 %v1884, %v1814
    %v2036 = vadd.f32 %v1884, %v1816
    %v2037 = vadd.f32 %v1884, %v1819
    %v2038 = vadd.f32 %v1884, %v1821
    %v2039 = vadd.f32 %v1885, %v1814
    %v2040 = vadd.f32 %v1885, %v1816
    %v2041 = vadd.f32 %v1885, %v1819
    %v2042 = vadd.f32 %v1885, %v1821
    %v2043 = vadd.f32 %v1886, %v1814
    %v2044 = vadd.f32 %v1886, %v1816
    %v2045 = vadd.f32 %v1886, %v1819
    %v2046 = vadd.f32 %v1886, %v1821
    %v2047 = vld [vmem:[#allocation14] sm:$0xff]
    %v2048 = vld [vmem:[#allocation14 + $0x8] sm:$0xff]
    %v2049 = vld [vmem:[#allocation14 + $0x10] sm:$0xff]
    %v2050 = vld [vmem:[#allocation14 + $0x18] sm:$0xff]
    %v2051 = vld [vmem:[#allocation14 + $0x20] sm:$0xff]
    %v2052 = vld [vmem:[#allocation14 + $0x28] sm:$0xff]
    %v2053 = vld [vmem:[#allocation14 + $0x30] sm:$0xff]
    %v2054 = vld [vmem:[#allocation14 + $0x38] sm:$0xff]
    %v2055 = vld [vmem:[#allocation14 + $0x40] sm:$0xff]
    %v2056 = vld [vmem:[#allocation14 + $0x48] sm:$0xff]
    %v2057 = vld [vmem:[#allocation14 + $0x50] sm:$0xff]
    %v2058 = vld [vmem:[#allocation14 + $0x58] sm:$0xff]
    %v2059 = vld [vmem:[#allocation14 + $0x60] sm:$0xff]
    %v2060 = vld [vmem:[#allocation14 + $0x68] sm:$0xff]
    %v2061 = vld [vmem:[#allocation14 + $0x70] sm:$0xff]
    %v2062 = vld [vmem:[#allocation14 + $0x78] sm:$0xff]
    %v2063 = vld [vmem:[#allocation14 + $0x80] sm:$0xff]
    %v2064 = vld [vmem:[#allocation14 + $0x88] sm:$0xff]
    %v2065 = vld [vmem:[#allocation14 + $0x90] sm:$0xff]
    %v2066 = vld [vmem:[#allocation14 + $0x98] sm:$0xff]
    %v2067 = vld [vmem:[#allocation14 + $0xa0] sm:$0xff]
    %v2068 = vld [vmem:[#allocation14 + $0xa8] sm:$0xff]
    %v2069 = vld [vmem:[#allocation14 + $0xb0] sm:$0xff]
    %v2070 = vld [vmem:[#allocation14 + $0xb8] sm:$0xff]
    %v2071 = vld [vmem:[#allocation14 + $0xc0] sm:$0xff]
    %v2072 = vld [vmem:[#allocation14 + $0xc8] sm:$0xff]
    %v2073 = vld [vmem:[#allocation14 + $0xd0] sm:$0xff]
    %v2074 = vld [vmem:[#allocation14 + $0xd8] sm:$0xff]
    %v2075 = vld [vmem:[#allocation14 + $0xe0] sm:$0xff]
    %v2076 = vld [vmem:[#allocation14 + $0xe8] sm:$0xff]
    %v2077 = vld [vmem:[#allocation14 + $0xf0] sm:$0xff]
    %v2078 = vld [vmem:[#allocation14 + $0xf8] sm:$0xff]
    %v2079 = vld [vmem:[#allocation14 + $0x100] sm:$0xff]
    %v2080 = vld [vmem:[#allocation14 + $0x108] sm:$0xff]
    %v2081 = vld [vmem:[#allocation14 + $0x110] sm:$0xff]
    %v2082 = vld [vmem:[#allocation14 + $0x118] sm:$0xff]
    %v2083 = vld [vmem:[#allocation14 + $0x120] sm:$0xff]
    %v2084 = vld [vmem:[#allocation14 + $0x128] sm:$0xff]
    %v2085 = vld [vmem:[#allocation14 + $0x130] sm:$0xff]
    %v2086 = vld [vmem:[#allocation14 + $0x138] sm:$0xff]
    %v2087 = vld [vmem:[#allocation14 + $0x140] sm:$0xff]
    %v2088 = vld [vmem:[#allocation14 + $0x148] sm:$0xff]
    %v2089 = vld [vmem:[#allocation14 + $0x150] sm:$0xff]
    %v2090 = vld [vmem:[#allocation14 + $0x158] sm:$0xff]
    %v2091 = vld [vmem:[#allocation14 + $0x160] sm:$0xff]
    %v2092 = vld [vmem:[#allocation14 + $0x168] sm:$0xff]
    %v2093 = vld [vmem:[#allocation14 + $0x170] sm:$0xff]
    %v2094 = vld [vmem:[#allocation14 + $0x178] sm:$0xff]
    %v2095 = vld [vmem:[#allocation14 + $0x180] sm:$0xff]
    %v2096 = vld [vmem:[#allocation14 + $0x188] sm:$0xff]
    %v2097 = vld [vmem:[#allocation14 + $0x190] sm:$0xff]
    %v2098 = vld [vmem:[#allocation14 + $0x198] sm:$0xff]
    %v2099 = vld [vmem:[#allocation14 + $0x1a0] sm:$0xff]
    %v2100 = vld [vmem:[#allocation14 + $0x1a8] sm:$0xff]
    %v2101 = vld [vmem:[#allocation14 + $0x1b0] sm:$0xff]
    %v2102 = vld [vmem:[#allocation14 + $0x1b8] sm:$0xff]
    %v2103 = vld [vmem:[#allocation14 + $0x1c0] sm:$0xff]
    %v2104 = vld [vmem:[#allocation14 + $0x1c8] sm:$0xff]
    %v2105 = vld [vmem:[#allocation14 + $0x1d0] sm:$0xff]
    %v2106 = vld [vmem:[#allocation14 + $0x1d8] sm:$0xff]
    %v2107 = vld [vmem:[#allocation14 + $0x1e0] sm:$0xff]
    %v2108 = vld [vmem:[#allocation14 + $0x1e8] sm:$0xff]
    %v2109 = vld [vmem:[#allocation14 + $0x1f0] sm:$0xff]
    %v2110 = vld [vmem:[#allocation14 + $0x1f8] sm:$0xff]
    %v2111 = vld [vmem:[#allocation14 + $0x200] sm:$0xff]
    %v2112 = vld [vmem:[#allocation14 + $0x208] sm:$0xff]
    %v2113 = vld [vmem:[#allocation14 + $0x210] sm:$0xff]
    %v2114 = vld [vmem:[#allocation14 + $0x218] sm:$0xff]
    %v2115 = vld [vmem:[#allocation14 + $0x220] sm:$0xff]
    %v2116 = vld [vmem:[#allocation14 + $0x228] sm:$0xff]
    %v2117 = vld [vmem:[#allocation14 + $0x230] sm:$0xff]
    %v2118 = vld [vmem:[#allocation14 + $0x238] sm:$0xff]
    %v2119 = vld [vmem:[#allocation14 + $0x240] sm:$0xff]
    %v2120 = vld [vmem:[#allocation14 + $0x248] sm:$0xff]
    %v2121 = vld [vmem:[#allocation14 + $0x250] sm:$0xff]
    %v2122 = vld [vmem:[#allocation14 + $0x258] sm:$0xff]
    %v2123 = vld [vmem:[#allocation14 + $0x260] sm:$0xff]
    %v2124 = vld [vmem:[#allocation14 + $0x268] sm:$0xff]
    %v2125 = vld [vmem:[#allocation14 + $0x270] sm:$0xff]
    %v2126 = vld [vmem:[#allocation14 + $0x278] sm:$0xff]
    %v2127 = vld [vmem:[#allocation14 + $0x280] sm:$0xff]
    %v2128 = vld [vmem:[#allocation14 + $0x288] sm:$0xff]
    %v2129 = vld [vmem:[#allocation14 + $0x290] sm:$0xff]
    %v2130 = vld [vmem:[#allocation14 + $0x298] sm:$0xff]
    %v2131 = vld [vmem:[#allocation14 + $0x2a0] sm:$0xff]
    %v2132 = vld [vmem:[#allocation14 + $0x2a8] sm:$0xff]
    %v2133 = vld [vmem:[#allocation14 + $0x2b0] sm:$0xff]
    %v2134 = vld [vmem:[#allocation14 + $0x2b8] sm:$0xff]
    %v2135 = vld [vmem:[#allocation14 + $0x2c0] sm:$0xff]
    %v2136 = vld [vmem:[#allocation14 + $0x2c8] sm:$0xff]
    %v2137 = vld [vmem:[#allocation14 + $0x2d0] sm:$0xff]
    %v2138 = vld [vmem:[#allocation14 + $0x2d8] sm:$0xff]
    %v2139 = vld [vmem:[#allocation14 + $0x2e0] sm:$0xff]
    %v2140 = vld [vmem:[#allocation14 + $0x2e8] sm:$0xff]
    %v2141 = vld [vmem:[#allocation14 + $0x2f0] sm:$0xff]
    %v2142 = vld [vmem:[#allocation14 + $0x2f8] sm:$0xff]
    %v2143 = vld [vmem:[#allocation14 + $0x300] sm:$0xff]
    %v2144 = vld [vmem:[#allocation14 + $0x308] sm:$0xff]
    %v2145 = vld [vmem:[#allocation14 + $0x310] sm:$0xff]
    %v2146 = vld [vmem:[#allocation14 + $0x318] sm:$0xff]
    %v2147 = vld [vmem:[#allocation14 + $0x320] sm:$0xff]
    %v2148 = vld [vmem:[#allocation14 + $0x328] sm:$0xff]
    %v2149 = vld [vmem:[#allocation14 + $0x330] sm:$0xff]
    %v2150 = vld [vmem:[#allocation14 + $0x338] sm:$0xff]
    %v2151 = vld [vmem:[#allocation14 + $0x340] sm:$0xff]
    %v2152 = vld [vmem:[#allocation14 + $0x348] sm:$0xff]
    %v2153 = vld [vmem:[#allocation14 + $0x350] sm:$0xff]
    %v2154 = vld [vmem:[#allocation14 + $0x358] sm:$0xff]
    %v2155 = vld [vmem:[#allocation14 + $0x360] sm:$0xff]
    %v2156 = vld [vmem:[#allocation14 + $0x368] sm:$0xff]
    %v2157 = vld [vmem:[#allocation14 + $0x370] sm:$0xff]
    %v2158 = vld [vmem:[#allocation14 + $0x378] sm:$0xff]
    %v2159 = vld [vmem:[#allocation14 + $0x380] sm:$0xff]
    %v2160 = vld [vmem:[#allocation14 + $0x388] sm:$0xff]
    %v2161 = vld [vmem:[#allocation14 + $0x390] sm:$0xff]
    %v2162 = vld [vmem:[#allocation14 + $0x398] sm:$0xff]
    %v2163 = vld [vmem:[#allocation14 + $0x3a0] sm:$0xff]
    %v2164 = vld [vmem:[#allocation14 + $0x3a8] sm:$0xff]
    %v2165 = vld [vmem:[#allocation14 + $0x3b0] sm:$0xff]
    %v2166 = vld [vmem:[#allocation14 + $0x3b8] sm:$0xff]
    %v2167 = vld [vmem:[#allocation14 + $0x3c0] sm:$0xff]
    %v2168 = vld [vmem:[#allocation14 + $0x3c8] sm:$0xff]
    %v2169 = vld [vmem:[#allocation14 + $0x3d0] sm:$0xff]
    %v2170 = vld [vmem:[#allocation14 + $0x3d8] sm:$0xff]
    %v2171 = vld [vmem:[#allocation14 + $0x3e0] sm:$0xff]
    %v2172 = vld [vmem:[#allocation14 + $0x3e8] sm:$0xff]
    %v2173 = vld [vmem:[#allocation14 + $0x3f0] sm:$0xff]
    %v2174 = vld [vmem:[#allocation14 + $0x3f8] sm:$0xff]
    %v2175 = vadd.f32 %v1919, %v2047
    %v2176 = vadd.f32 %v1920, %v2048
    %v2177 = vadd.f32 %v1921, %v2049
    %v2178 = vadd.f32 %v1922, %v2050
    %v2179 = vadd.f32 %v1923, %v2051
    %v2180 = vadd.f32 %v1924, %v2052
    %v2181 = vadd.f32 %v1925, %v2053
    %v2182 = vadd.f32 %v1926, %v2054
    %v2183 = vadd.f32 %v1927, %v2055
    %v2184 = vadd.f32 %v1928, %v2056
    %v2185 = vadd.f32 %v1929, %v2057
    %v2186 = vadd.f32 %v1930, %v2058
    %v2187 = vadd.f32 %v1931, %v2059
    %v2188 = vadd.f32 %v1932, %v2060
    %v2189 = vadd.f32 %v1933, %v2061
    %v2190 = vadd.f32 %v1934, %v2062
    %v2191 = vadd.f32 %v1935, %v2063
    %v2192 = vadd.f32 %v1936, %v2064
    %v2193 = vadd.f32 %v1937, %v2065
    %v2194 = vadd.f32 %v1938, %v2066
    %v2195 = vadd.f32 %v1939, %v2067
    %v2196 = vadd.f32 %v1940, %v2068
    %v2197 = vadd.f32 %v1941, %v2069
    %v2198 = vadd.f32 %v1942, %v2070
    %v2199 = vadd.f32 %v1943, %v2071
    %v2200 = vadd.f32 %v1944, %v2072
    %v2201 = vadd.f32 %v1945, %v2073
    %v2202 = vadd.f32 %v1946, %v2074
    %v2203 = vadd.f32 %v1947, %v2075
    %v2204 = vadd.f32 %v1948, %v2076
    %v2205 = vadd.f32 %v1949, %v2077
    %v2206 = vadd.f32 %v1950, %v2078
    %v2207 = vadd.f32 %v1951, %v2079
    %v2208 = vadd.f32 %v1952, %v2080
    %v2209 = vadd.f32 %v1953, %v2081
    %v2210 = vadd.f32 %v1954, %v2082
    %v2211 = vadd.f32 %v1955, %v2083
    %v2212 = vadd.f32 %v1956, %v2084
    %v2213 = vadd.f32 %v1957, %v2085
    %v2214 = vadd.f32 %v1958, %v2086
    %v2215 = vadd.f32 %v1959, %v2087
    %v2216 = vadd.f32 %v1960, %v2088
    %v2217 = vadd.f32 %v1961, %v2089
    %v2218 = vadd.f32 %v1962, %v2090
    %v2219 = vadd.f32 %v1963, %v2091
    %v2220 = vadd.f32 %v1964, %v2092
    %v2221 = vadd.f32 %v1965, %v2093
    %v2222 = vadd.f32 %v1966, %v2094
    %v2223 = vadd.f32 %v1967, %v2095
    %v2224 = vadd.f32 %v1968, %v2096
    %v2225 = vadd.f32 %v1969, %v2097
    %v2226 = vadd.f32 %v1970, %v2098
    %v2227 = vadd.f32 %v1971, %v2099
    %v2228 = vadd.f32 %v1972, %v2100
    %v2229 = vadd.f32 %v1973, %v2101
    %v2230 = vadd.f32 %v1974, %v2102
    %v2231 = vadd.f32 %v1975, %v2103
    %v2232 = vadd.f32 %v1976, %v2104
    %v2233 = vadd.f32 %v1977, %v2105
    %v2234 = vadd.f32 %v1978, %v2106
    %v2235 = vadd.f32 %v1979, %v2107
    %v2236 = vadd.f32 %v1980, %v2108
    %v2237 = vadd.f32 %v1981, %v2109
    %v2238 = vadd.f32 %v1982, %v2110
    %v2239 = vadd.f32 %v1983, %v2111
    %v2240 = vadd.f32 %v1984, %v2112
    %v2241 = vadd.f32 %v1985, %v2113
    %v2242 = vadd.f32 %v1986, %v2114
    %v2243 = vadd.f32 %v1987, %v2115
    %v2244 = vadd.f32 %v1988, %v2116
    %v2245 = vadd.f32 %v1989, %v2117
    %v2246 = vadd.f32 %v1990, %v2118
    %v2247 = vadd.f32 %v1991, %v2119
    %v2248 = vadd.f32 %v1992, %v2120
    %v2249 = vadd.f32 %v1993, %v2121
    %v2250 = vadd.f32 %v1994, %v2122
    %v2251 = vadd.f32 %v1995, %v2123
    %v2252 = vadd.f32 %v1996, %v2124
    %v2253 = vadd.f32 %v1997, %v2125
    %v2254 = vadd.f32 %v1998, %v2126
    %v2255 = vadd.f32 %v1999, %v2127
    %v2256 = vadd.f32 %v2000, %v2128
    %v2257 = vadd.f32 %v2001, %v2129
    %v2258 = vadd.f32 %v2002, %v2130
    %v2259 = vadd.f32 %v2003, %v2131
    %v2260 = vadd.f32 %v2004, %v2132
    %v2261 = vadd.f32 %v2005, %v2133
    %v2262 = vadd.f32 %v2006, %v2134
    %v2263 = vadd.f32 %v2007, %v2135
    %v2264 = vadd.f32 %v2008, %v2136
    %v2265 = vadd.f32 %v2009, %v2137
    %v2266 = vadd.f32 %v2010, %v2138
    %v2267 = vadd.f32 %v2011, %v2139
    %v2268 = vadd.f32 %v2012, %v2140
    %v2269 = vadd.f32 %v2013, %v2141
    %v2270 = vadd.f32 %v2014, %v2142
    %v2271 = vadd.f32 %v2015, %v2143
    %v2272 = vadd.f32 %v2016, %v2144
    %v2273 = vadd.f32 %v2017, %v2145
    %v2274 = vadd.f32 %v2018, %v2146
    %v2275 = vadd.f32 %v2019, %v2147
    %v2276 = vadd.f32 %v2020, %v2148
    %v2277 = vadd.f32 %v2021, %v2149
    %v2278 = vadd.f32 %v2022, %v2150
    %v2279 = vadd.f32 %v2023, %v2151
    %v2280 = vadd.f32 %v2024, %v2152
    %v2281 = vadd.f32 %v2025, %v2153
    %v2282 = vadd.f32 %v2026, %v2154
    %v2283 = vadd.f32 %v2027, %v2155
    %v2284 = vadd.f32 %v2028, %v2156
    %v2285 = vadd.f32 %v2029, %v2157
    %v2286 = vadd.f32 %v2030, %v2158
    %v2287 = vadd.f32 %v2031, %v2159
    %v2288 = vadd.f32 %v2032, %v2160
    %v2289 = vadd.f32 %v2033, %v2161
    %v2290 = vadd.f32 %v2034, %v2162
    %v2291 = vadd.f32 %v2035, %v2163
    %v2292 = vadd.f32 %v2036, %v2164
    %v2293 = vadd.f32 %v2037, %v2165
    %v2294 = vadd.f32 %v2038, %v2166
    %v2295 = vadd.f32 %v2039, %v2167
    %v2296 = vadd.f32 %v2040, %v2168
    %v2297 = vadd.f32 %v2041, %v2169
    %v2298 = vadd.f32 %v2042, %v2170
    %v2299 = vadd.f32 %v2043, %v2171
    %v2300 = vadd.f32 %v2044, %v2172
    %v2301 = vadd.f32 %v2045, %v2173
    %v2302 = vadd.f32 %v2046, %v2174
    %vm2303 = vcmp.gt.f32.partialorder %v2175, 0.0
    %vm2304 = vcmp.gt.f32.partialorder %v2176, 0.0
    %vm2305 = vcmp.gt.f32.partialorder %v2177, 0.0
    %vm2306 = vcmp.gt.f32.partialorder %v2178, 0.0
    %vm2307 = vcmp.gt.f32.partialorder %v2179, 0.0
    %vm2308 = vcmp.gt.f32.partialorder %v2180, 0.0
    %vm2309 = vcmp.gt.f32.partialorder %v2181, 0.0
    %vm2310 = vcmp.gt.f32.partialorder %v2182, 0.0
    %vm2311 = vcmp.gt.f32.partialorder %v2183, 0.0
    %vm2312 = vcmp.gt.f32.partialorder %v2184, 0.0
    %vm2313 = vcmp.gt.f32.partialorder %v2185, 0.0
    %vm2314 = vcmp.gt.f32.partialorder %v2186, 0.0
    %vm2315 = vcmp.gt.f32.partialorder %v2187, 0.0
    %vm2316 = vcmp.gt.f32.partialorder %v2188, 0.0
    %vm2317 = vcmp.gt.f32.partialorder %v2189, 0.0
    %vm2318 = vcmp.gt.f32.partialorder %v2190, 0.0
    %vm2319 = vcmp.gt.f32.partialorder %v2191, 0.0
    %vm2320 = vcmp.gt.f32.partialorder %v2192, 0.0
    %vm2321 = vcmp.gt.f32.partialorder %v2193, 0.0
    %vm2322 = vcmp.gt.f32.partialorder %v2194, 0.0
    %vm2323 = vcmp.gt.f32.partialorder %v2195, 0.0
    %vm2324 = vcmp.gt.f32.partialorder %v2196, 0.0
    %vm2325 = vcmp.gt.f32.partialorder %v2197, 0.0
    %vm2326 = vcmp.gt.f32.partialorder %v2198, 0.0
    %vm2327 = vcmp.gt.f32.partialorder %v2199, 0.0
    %vm2328 = vcmp.gt.f32.partialorder %v2200, 0.0
    %vm2329 = vcmp.gt.f32.partialorder %v2201, 0.0
    %vm2330 = vcmp.gt.f32.partialorder %v2202, 0.0
    %vm2331 = vcmp.gt.f32.partialorder %v2203, 0.0
    %vm2332 = vcmp.gt.f32.partialorder %v2204, 0.0
    %vm2333 = vcmp.gt.f32.partialorder %v2205, 0.0
    %vm2334 = vcmp.gt.f32.partialorder %v2206, 0.0
    %vm2335 = vcmp.gt.f32.partialorder %v2207, 0.0
    %vm2336 = vcmp.gt.f32.partialorder %v2208, 0.0
    %vm2337 = vcmp.gt.f32.partialorder %v2209, 0.0
    %vm2338 = vcmp.gt.f32.partialorder %v2210, 0.0
    %vm2339 = vcmp.gt.f32.partialorder %v2211, 0.0
    %vm2340 = vcmp.gt.f32.partialorder %v2212, 0.0
    %vm2341 = vcmp.gt.f32.partialorder %v2213, 0.0
    %vm2342 = vcmp.gt.f32.partialorder %v2214, 0.0
    %vm2343 = vcmp.gt.f32.partialorder %v2215, 0.0
    %vm2344 = vcmp.gt.f32.partialorder %v2216, 0.0
    %vm2345 = vcmp.gt.f32.partialorder %v2217, 0.0
    %vm2346 = vcmp.gt.f32.partialorder %v2218, 0.0
    %vm2347 = vcmp.gt.f32.partialorder %v2219, 0.0
    %vm2348 = vcmp.gt.f32.partialorder %v2220, 0.0
    %vm2349 = vcmp.gt.f32.partialorder %v2221, 0.0
    %vm2350 = vcmp.gt.f32.partialorder %v2222, 0.0
    %vm2351 = vcmp.gt.f32.partialorder %v2223, 0.0
    %vm2352 = vcmp.gt.f32.partialorder %v2224, 0.0
    %vm2353 = vcmp.gt.f32.partialorder %v2225, 0.0
    %vm2354 = vcmp.gt.f32.partialorder %v2226, 0.0
    %vm2355 = vcmp.gt.f32.partialorder %v2227, 0.0
    %vm2356 = vcmp.gt.f32.partialorder %v2228, 0.0
    %vm2357 = vcmp.gt.f32.partialorder %v2229, 0.0
    %vm2358 = vcmp.gt.f32.partialorder %v2230, 0.0
    %vm2359 = vcmp.gt.f32.partialorder %v2231, 0.0
    %vm2360 = vcmp.gt.f32.partialorder %v2232, 0.0
    %vm2361 = vcmp.gt.f32.partialorder %v2233, 0.0
    %vm2362 = vcmp.gt.f32.partialorder %v2234, 0.0
    %vm2363 = vcmp.gt.f32.partialorder %v2235, 0.0
    %vm2364 = vcmp.gt.f32.partialorder %v2236, 0.0
    %vm2365 = vcmp.gt.f32.partialorder %v2237, 0.0
    %vm2366 = vcmp.gt.f32.partialorder %v2238, 0.0
    %vm2367 = vcmp.gt.f32.partialorder %v2239, 0.0
    %vm2368 = vcmp.gt.f32.partialorder %v2240, 0.0
    %vm2369 = vcmp.gt.f32.partialorder %v2241, 0.0
    %vm2370 = vcmp.gt.f32.partialorder %v2242, 0.0
    %vm2371 = vcmp.gt.f32.partialorder %v2243, 0.0
    %vm2372 = vcmp.gt.f32.partialorder %v2244, 0.0
    %vm2373 = vcmp.gt.f32.partialorder %v2245, 0.0
    %vm2374 = vcmp.gt.f32.partialorder %v2246, 0.0
    %vm2375 = vcmp.gt.f32.partialorder %v2247, 0.0
    %vm2376 = vcmp.gt.f32.partialorder %v2248, 0.0
    %vm2377 = vcmp.gt.f32.partialorder %v2249, 0.0
    %vm2378 = vcmp.gt.f32.partialorder %v2250, 0.0
    %vm2379 = vcmp.gt.f32.partialorder %v2251, 0.0
    %vm2380 = vcmp.gt.f32.partialorder %v2252, 0.0
    %vm2381 = vcmp.gt.f32.partialorder %v2253, 0.0
    %vm2382 = vcmp.gt.f32.partialorder %v2254, 0.0
    %vm2383 = vcmp.gt.f32.partialorder %v2255, 0.0
    %vm2384 = vcmp.gt.f32.partialorder %v2256, 0.0
    %vm2385 = vcmp.gt.f32.partialorder %v2257, 0.0
    %vm2386 = vcmp.gt.f32.partialorder %v2258, 0.0
    %vm2387 = vcmp.gt.f32.partialorder %v2259, 0.0
    %vm2388 = vcmp.gt.f32.partialorder %v2260, 0.0
    %vm2389 = vcmp.gt.f32.partialorder %v2261, 0.0
    %vm2390 = vcmp.gt.f32.partialorder %v2262, 0.0
    %vm2391 = vcmp.gt.f32.partialorder %v2263, 0.0
    %vm2392 = vcmp.gt.f32.partialorder %v2264, 0.0
    %vm2393 = vcmp.gt.f32.partialorder %v2265, 0.0
    %vm2394 = vcmp.gt.f32.partialorder %v2266, 0.0
    %vm2395 = vcmp.gt.f32.partialorder %v2267, 0.0
    %vm2396 = vcmp.gt.f32.partialorder %v2268, 0.0
    %vm2397 = vcmp.gt.f32.partialorder %v2269, 0.0
    %vm2398 = vcmp.gt.f32.partialorder %v2270, 0.0
    %vm2399 = vcmp.gt.f32.partialorder %v2271, 0.0
    %vm2400 = vcmp.gt.f32.partialorder %v2272, 0.0
    %vm2401 = vcmp.gt.f32.partialorder %v2273, 0.0
    %vm2402 = vcmp.gt.f32.partialorder %v2274, 0.0
    %vm2403 = vcmp.gt.f32.partialorder %v2275, 0.0
    %vm2404 = vcmp.gt.f32.partialorder %v2276, 0.0
    %vm2405 = vcmp.gt.f32.partialorder %v2277, 0.0
    %vm2406 = vcmp.gt.f32.partialorder %v2278, 0.0
    %vm2407 = vcmp.gt.f32.partialorder %v2279, 0.0
    %vm2408 = vcmp.gt.f32.partialorder %v2280, 0.0
    %vm2409 = vcmp.gt.f32.partialorder %v2281, 0.0
    %vm2410 = vcmp.gt.f32.partialorder %v2282, 0.0
    %vm2411 = vcmp.gt.f32.partialorder %v2283, 0.0
    %vm2412 = vcmp.gt.f32.partialorder %v2284, 0.0
    %vm2413 = vcmp.gt.f32.partialorder %v2285, 0.0
    %vm2414 = vcmp.gt.f32.partialorder %v2286, 0.0
    %vm2415 = vcmp.gt.f32.partialorder %v2287, 0.0
    %vm2416 = vcmp.gt.f32.partialorder %v2288, 0.0
    %vm2417 = vcmp.gt.f32.partialorder %v2289, 0.0
    %vm2418 = vcmp.gt.f32.partialorder %v2290, 0.0
    %vm2419 = vcmp.gt.f32.partialorder %v2291, 0.0
    %vm2420 = vcmp.gt.f32.partialorder %v2292, 0.0
    %vm2421 = vcmp.gt.f32.partialorder %v2293, 0.0
    %vm2422 = vcmp.gt.f32.partialorder %v2294, 0.0
    %vm2423 = vcmp.gt.f32.partialorder %v2295, 0.0
    %vm2424 = vcmp.gt.f32.partialorder %v2296, 0.0
    %vm2425 = vcmp.gt.f32.partialorder %v2297, 0.0
    %vm2426 = vcmp.gt.f32.partialorder %v2298, 0.0
    %vm2427 = vcmp.gt.f32.partialorder %v2299, 0.0
    %vm2428 = vcmp.gt.f32.partialorder %v2300, 0.0
    %vm2429 = vcmp.gt.f32.partialorder %v2301, 0.0
    %vm2430 = vcmp.gt.f32.partialorder %v2302, 0.0
    %v2431 = vmul.f32 %v2175, 0.2
    %v2432 = vmul.f32 %v2176, 0.2
    %v2433 = vmul.f32 %v2177, 0.2
    %v2434 = vmul.f32 %v2178, 0.2
    %v2435 = vmul.f32 %v2179, 0.2
    %v2436 = vmul.f32 %v2180, 0.2
    %v2437 = vmul.f32 %v2181, 0.2
    %v2438 = vmul.f32 %v2182, 0.2
    %v2439 = vmul.f32 %v2183, 0.2
    %v2440 = vmul.f32 %v2184, 0.2
    %v2441 = vmul.f32 %v2185, 0.2
    %v2442 = vmul.f32 %v2186, 0.2
    %v2443 = vmul.f32 %v2187, 0.2
    %v2444 = vmul.f32 %v2188, 0.2
    %v2445 = vmul.f32 %v2189, 0.2
    %v2446 = vmul.f32 %v2190, 0.2
    %v2447 = vmul.f32 %v2191, 0.2
    %v2448 = vmul.f32 %v2192, 0.2
    %v2449 = vmul.f32 %v2193, 0.2
    %v2450 = vmul.f32 %v2194, 0.2
    %v2451 = vmul.f32 %v2195, 0.2
    %v2452 = vmul.f32 %v2196, 0.2
    %v2453 = vmul.f32 %v2197, 0.2
    %v2454 = vmul.f32 %v2198, 0.2
    %v2455 = vmul.f32 %v2199, 0.2
    %v2456 = vmul.f32 %v2200, 0.2
    %v2457 = vmul.f32 %v2201, 0.2
    %v2458 = vmul.f32 %v2202, 0.2
    %v2459 = vmul.f32 %v2203, 0.2
    %v2460 = vmul.f32 %v2204, 0.2
    %v2461 = vmul.f32 %v2205, 0.2
    %v2462 = vmul.f32 %v2206, 0.2
    %v2463 = vmul.f32 %v2207, 0.2
    %v2464 = vmul.f32 %v2208, 0.2
    %v2465 = vmul.f32 %v2209, 0.2
    %v2466 = vmul.f32 %v2210, 0.2
    %v2467 = vmul.f32 %v2211, 0.2
    %v2468 = vmul.f32 %v2212, 0.2
    %v2469 = vmul.f32 %v2213, 0.2
    %v2470 = vmul.f32 %v2214, 0.2
    %v2471 = vmul.f32 %v2215, 0.2
    %v2472 = vmul.f32 %v2216, 0.2
    %v2473 = vmul.f32 %v2217, 0.2
    %v2474 = vmul.f32 %v2218, 0.2
    %v2475 = vmul.f32 %v2219, 0.2
    %v2476 = vmul.f32 %v2220, 0.2
    %v2477 = vmul.f32 %v2221, 0.2
    %v2478 = vmul.f32 %v2222, 0.2
    %v2479 = vmul.f32 %v2223, 0.2
    %v2480 = vmul.f32 %v2224, 0.2
    %v2481 = vmul.f32 %v2225, 0.2
    %v2482 = vmul.f32 %v2226, 0.2
    %v2483 = vmul.f32 %v2227, 0.2
    %v2484 = vmul.f32 %v2228, 0.2
    %v2485 = vmul.f32 %v2229, 0.2
    %v2486 = vmul.f32 %v2230, 0.2
    %v2487 = vmul.f32 %v2231, 0.2
    %v2488 = vmul.f32 %v2232, 0.2
    %v2489 = vmul.f32 %v2233, 0.2
    %v2490 = vmul.f32 %v2234, 0.2
    %v2491 = vmul.f32 %v2235, 0.2
    %v2492 = vmul.f32 %v2236, 0.2
    %v2493 = vmul.f32 %v2237, 0.2
    %v2494 = vmul.f32 %v2238, 0.2
    %v2495 = vmul.f32 %v2239, 0.2
    %v2496 = vmul.f32 %v2240, 0.2
    %v2497 = vmul.f32 %v2241, 0.2
    %v2498 = vmul.f32 %v2242, 0.2
    %v2499 = vmul.f32 %v2243, 0.2
    %v2500 = vmul.f32 %v2244, 0.2
    %v2501 = vmul.f32 %v2245, 0.2
    %v2502 = vmul.f32 %v2246, 0.2
    %v2503 = vmul.f32 %v2247, 0.2
    %v2504 = vmul.f32 %v2248, 0.2
    %v2505 = vmul.f32 %v2249, 0.2
    %v2506 = vmul.f32 %v2250, 0.2
    %v2507 = vmul.f32 %v2251, 0.2
    %v2508 = vmul.f32 %v2252, 0.2
    %v2509 = vmul.f32 %v2253, 0.2
    %v2510 = vmul.f32 %v2254, 0.2
    %v2511 = vmul.f32 %v2255, 0.2
    %v2512 = vmul.f32 %v2256, 0.2
    %v2513 = vmul.f32 %v2257, 0.2
    %v2514 = vmul.f32 %v2258, 0.2
    %v2515 = vmul.f32 %v2259, 0.2
    %v2516 = vmul.f32 %v2260, 0.2
    %v2517 = vmul.f32 %v2261, 0.2
    %v2518 = vmul.f32 %v2262, 0.2
    %v2519 = vmul.f32 %v2263, 0.2
    %v2520 = vmul.f32 %v2264, 0.2
    %v2521 = vmul.f32 %v2265, 0.2
    %v2522 = vmul.f32 %v2266, 0.2
    %v2523 = vmul.f32 %v2267, 0.2
    %v2524 = vmul.f32 %v2268, 0.2
    %v2525 = vmul.f32 %v2269, 0.2
    %v2526 = vmul.f32 %v2270, 0.2
    %v2527 = vmul.f32 %v2271, 0.2
    %v2528 = vmul.f32 %v2272, 0.2
    %v2529 = vmul.f32 %v2273, 0.2
    %v2530 = vmul.f32 %v2274, 0.2
    %v2531 = vmul.f32 %v2275, 0.2
    %v2532 = vmul.f32 %v2276, 0.2
    %v2533 = vmul.f32 %v2277, 0.2
    %v2534 = vmul.f32 %v2278, 0.2
    %v2535 = vmul.f32 %v2279, 0.2
    %v2536 = vmul.f32 %v2280, 0.2
    %v2537 = vmul.f32 %v2281, 0.2
    %v2538 = vmul.f32 %v2282, 0.2
    %v2539 = vmul.f32 %v2283, 0.2
    %v2540 = vmul.f32 %v2284, 0.2
    %v2541 = vmul.f32 %v2285, 0.2
    %v2542 = vmul.f32 %v2286, 0.2
    %v2543 = vmul.f32 %v2287, 0.2
    %v2544 = vmul.f32 %v2288, 0.2
    %v2545 = vmul.f32 %v2289, 0.2
    %v2546 = vmul.f32 %v2290, 0.2
    %v2547 = vmul.f32 %v2291, 0.2
    %v2548 = vmul.f32 %v2292, 0.2
    %v2549 = vmul.f32 %v2293, 0.2
    %v2550 = vmul.f32 %v2294, 0.2
    %v2551 = vmul.f32 %v2295, 0.2
    %v2552 = vmul.f32 %v2296, 0.2
    %v2553 = vmul.f32 %v2297, 0.2
    %v2554 = vmul.f32 %v2298, 0.2
    %v2555 = vmul.f32 %v2299, 0.2
    %v2556 = vmul.f32 %v2300, 0.2
    %v2557 = vmul.f32 %v2301, 0.2
    %v2558 = vmul.f32 %v2302, 0.2
    %v2559 = vsel %vm2303, %v2175, %v2431
    %v2560 = vsel %vm2304, %v2176, %v2432
    %v2561 = vsel %vm2305, %v2177, %v2433
    %v2562 = vsel %vm2306, %v2178, %v2434
    %v2563 = vsel %vm2307, %v2179, %v2435
    %v2564 = vsel %vm2308, %v2180, %v2436
    %v2565 = vsel %vm2309, %v2181, %v2437
    %v2566 = vsel %vm2310, %v2182, %v2438
    %v2567 = vsel %vm2311, %v2183, %v2439
    %v2568 = vsel %vm2312, %v2184, %v2440
    %v2569 = vsel %vm2313, %v2185, %v2441
    %v2570 = vsel %vm2314, %v2186, %v2442
    %v2571 = vsel %vm2315, %v2187, %v2443
    %v2572 = vsel %vm2316, %v2188, %v2444
    %v2573 = vsel %vm2317, %v2189, %v2445
    %v2574 = vsel %vm2318, %v2190, %v2446
    %v2575 = vsel %vm2319, %v2191, %v2447
    %v2576 = vsel %vm2320, %v2192, %v2448
    %v2577 = vsel %vm2321, %v2193, %v2449
    %v2578 = vsel %vm2322, %v2194, %v2450
    %v2579 = vsel %vm2323, %v2195, %v2451
    %v2580 = vsel %vm2324, %v2196, %v2452
    %v2581 = vsel %vm2325, %v2197, %v2453
    %v2582 = vsel %vm2326, %v2198, %v2454
    %v2583 = vsel %vm2327, %v2199, %v2455
    %v2584 = vsel %vm2328, %v2200, %v2456
    %v2585 = vsel %vm2329, %v2201, %v2457
    %v2586 = vsel %vm2330, %v2202, %v2458
    %v2587 = vsel %vm2331, %v2203, %v2459
    %v2588 = vsel %vm2332, %v2204, %v2460
    %v2589 = vsel %vm2333, %v2205, %v2461
    %v2590 = vsel %vm2334, %v2206, %v2462
    %v2591 = vsel %vm2335, %v2207, %v2463
    %v2592 = vsel %vm2336, %v2208, %v2464
    %v2593 = vsel %vm2337, %v2209, %v2465
    %v2594 = vsel %vm2338, %v2210, %v2466
    %v2595 = vsel %vm2339, %v2211, %v2467
    %v2596 = vsel %vm2340, %v2212, %v2468
    %v2597 = vsel %vm2341, %v2213, %v2469
    %v2598 = vsel %vm2342, %v2214, %v2470
    %v2599 = vsel %vm2343, %v2215, %v2471
    %v2600 = vsel %vm2344, %v2216, %v2472
    %v2601 = vsel %vm2345, %v2217, %v2473
    %v2602 = vsel %vm2346, %v2218, %v2474
    %v2603 = vsel %vm2347, %v2219, %v2475
    %v2604 = vsel %vm2348, %v2220, %v2476
    %v2605 = vsel %vm2349, %v2221, %v2477
    %v2606 = vsel %vm2350, %v2222, %v2478
    %v2607 = vsel %vm2351, %v2223, %v2479
    %v2608 = vsel %vm2352, %v2224, %v2480
    %v2609 = vsel %vm2353, %v2225, %v2481
    %v2610 = vsel %vm2354, %v2226, %v2482
    %v2611 = vsel %vm2355, %v2227, %v2483
    %v2612 = vsel %vm2356, %v2228, %v2484
    %v2613 = vsel %vm2357, %v2229, %v2485
    %v2614 = vsel %vm2358, %v2230, %v2486
    %v2615 = vsel %vm2359, %v2231, %v2487
    %v2616 = vsel %vm2360, %v2232, %v2488
    %v2617 = vsel %vm2361, %v2233, %v2489
    %v2618 = vsel %vm2362, %v2234, %v2490
    %v2619 = vsel %vm2363, %v2235, %v2491
    %v2620 = vsel %vm2364, %v2236, %v2492
    %v2621 = vsel %vm2365, %v2237, %v2493
    %v2622 = vsel %vm2366, %v2238, %v2494
    %v2623 = vsel %vm2367, %v2239, %v2495
    %v2624 = vsel %vm2368, %v2240, %v2496
    %v2625 = vsel %vm2369, %v2241, %v2497
    %v2626 = vsel %vm2370, %v2242, %v2498
    %v2627 = vsel %vm2371, %v2243, %v2499
    %v2628 = vsel %vm2372, %v2244, %v2500
    %v2629 = vsel %vm2373, %v2245, %v2501
    %v2630 = vsel %vm2374, %v2246, %v2502
    %v2631 = vsel %vm2375, %v2247, %v2503
    %v2632 = vsel %vm2376, %v2248, %v2504
    %v2633 = vsel %vm2377, %v2249, %v2505
    %v2634 = vsel %vm2378, %v2250, %v2506
    %v2635 = vsel %vm2379, %v2251, %v2507
    %v2636 = vsel %vm2380, %v2252, %v2508
    %v2637 = vsel %vm2381, %v2253, %v2509
    %v2638 = vsel %vm2382, %v2254, %v2510
    %v2639 = vsel %vm2383, %v2255, %v2511
    %v2640 = vsel %vm2384, %v2256, %v2512
    %v2641 = vsel %vm2385, %v2257, %v2513
    %v2642 = vsel %vm2386, %v2258, %v2514
    %v2643 = vsel %vm2387, %v2259, %v2515
    %v2644 = vsel %vm2388, %v2260, %v2516
    %v2645 = vsel %vm2389, %v2261, %v2517
    %v2646 = vsel %vm2390, %v2262, %v2518
    %v2647 = vsel %vm2391, %v2263, %v2519
    %v2648 = vsel %vm2392, %v2264, %v2520
    %v2649 = vsel %vm2393, %v2265, %v2521
    %v2650 = vsel %vm2394, %v2266, %v2522
    %v2651 = vsel %vm2395, %v2267, %v2523
    %v2652 = vsel %vm2396, %v2268, %v2524
    %v2653 = vsel %vm2397, %v2269, %v2525
    %v2654 = vsel %vm2398, %v2270, %v2526
    %v2655 = vsel %vm2399, %v2271, %v2527
    %v2656 = vsel %vm2400, %v2272, %v2528
    %v2657 = vsel %vm2401, %v2273, %v2529
    %v2658 = vsel %vm2402, %v2274, %v2530
    %v2659 = vsel %vm2403, %v2275, %v2531
    %v2660 = vsel %vm2404, %v2276, %v2532
    %v2661 = vsel %vm2405, %v2277, %v2533
    %v2662 = vsel %vm2406, %v2278, %v2534
    %v2663 = vsel %vm2407, %v2279, %v2535
    %v2664 = vsel %vm2408, %v2280, %v2536
    %v2665 = vsel %vm2409, %v2281, %v2537
    %v2666 = vsel %vm2410, %v2282, %v2538
    %v2667 = vsel %vm2411, %v2283, %v2539
    %v2668 = vsel %vm2412, %v2284, %v2540
    %v2669 = vsel %vm2413, %v2285, %v2541
    %v2670 = vsel %vm2414, %v2286, %v2542
    %v2671 = vsel %vm2415, %v2287, %v2543
    %v2672 = vsel %vm2416, %v2288, %v2544
    %v2673 = vsel %vm2417, %v2289, %v2545
    %v2674 = vsel %vm2418, %v2290, %v2546
    %v2675 = vsel %vm2419, %v2291, %v2547
    %v2676 = vsel %vm2420, %v2292, %v2548
    %v2677 = vsel %vm2421, %v2293, %v2549
    %v2678 = vsel %vm2422, %v2294, %v2550
    %v2679 = vsel %vm2423, %v2295, %v2551
    %v2680 = vsel %vm2424, %v2296, %v2552
    %v2681 = vsel %vm2425, %v2297, %v2553
    %v2682 = vsel %vm2426, %v2298, %v2554
    %v2683 = vsel %vm2427, %v2299, %v2555
    %v2684 = vsel %vm2428, %v2300, %v2556
    %v2685 = vsel %vm2429, %v2301, %v2557
    %v2686 = vsel %vm2430, %v2302, %v2558
    %v2687 = vperm.slane %v257, 1
    %v2688 = vmul.f32 %v2559, %v2687
    %v2689 = vmul.f32 %v2560, %v2687
    %v2690 = vmul.f32 %v2561, %v2687
    %v2691 = vmul.f32 %v2562, %v2687
    %v2692 = vmul.f32 %v2563, %v2687
    %v2693 = vmul.f32 %v2564, %v2687
    %v2694 = vmul.f32 %v2565, %v2687
    %v2695 = vmul.f32 %v2566, %v2687
    %v2696 = vmul.f32 %v2567, %v2687
    %v2697 = vmul.f32 %v2568, %v2687
    %v2698 = vmul.f32 %v2569, %v2687
    %v2699 = vmul.f32 %v2570, %v2687
    %v2700 = vmul.f32 %v2571, %v2687
    %v2701 = vmul.f32 %v2572, %v2687
    %v2702 = vmul.f32 %v2573, %v2687
    %v2703 = vmul.f32 %v2574, %v2687
    %v2704 = vmul.f32 %v2575, %v2687
    %v2705 = vmul.f32 %v2576, %v2687
    %v2706 = vmul.f32 %v2577, %v2687
    %v2707 = vmul.f32 %v2578, %v2687
    %v2708 = vmul.f32 %v2579, %v2687
    %v2709 = vmul.f32 %v2580, %v2687
    %v2710 = vmul.f32 %v2581, %v2687
    %v2711 = vmul.f32 %v2582, %v2687
    %v2712 = vmul.f32 %v2583, %v2687
    %v2713 = vmul.f32 %v2584, %v2687
    %v2714 = vmul.f32 %v2585, %v2687
    %v2715 = vmul.f32 %v2586, %v2687
    %v2716 = vmul.f32 %v2587, %v2687
    %v2717 = vmul.f32 %v2588, %v2687
    %v2718 = vmul.f32 %v2589, %v2687
    %v2719 = vmul.f32 %v2590, %v2687
    %v2720 = vmul.f32 %v2591, %v2687
    %v2721 = vmul.f32 %v2592, %v2687
    %v2722 = vmul.f32 %v2593, %v2687
    %v2723 = vmul.f32 %v2594, %v2687
    %v2724 = vmul.f32 %v2595, %v2687
    %v2725 = vmul.f32 %v2596, %v2687
    %v2726 = vmul.f32 %v2597, %v2687
    %v2727 = vmul.f32 %v2598, %v2687
    %v2728 = vmul.f32 %v2599, %v2687
    %v2729 = vmul.f32 %v2600, %v2687
    %v2730 = vmul.f32 %v2601, %v2687
    %v2731 = vmul.f32 %v2602, %v2687
    %v2732 = vmul.f32 %v2603, %v2687
    %v2733 = vmul.f32 %v2604, %v2687
    %v2734 = vmul.f32 %v2605, %v2687
    %v2735 = vmul.f32 %v2606, %v2687
    %v2736 = vmul.f32 %v2607, %v2687
    %v2737 = vmul.f32 %v2608, %v2687
    %v2738 = vmul.f32 %v2609, %v2687
    %v2739 = vmul.f32 %v2610, %v2687
    %v2740 = vmul.f32 %v2611, %v2687
    %v2741 = vmul.f32 %v2612, %v2687
    %v2742 = vmul.f32 %v2613, %v2687
    %v2743 = vmul.f32 %v2614, %v2687
    %v2744 = vmul.f32 %v2615, %v2687
    %v2745 = vmul.f32 %v2616, %v2687
    %v2746 = vmul.f32 %v2617, %v2687
    %v2747 = vmul.f32 %v2618, %v2687
    %v2748 = vmul.f32 %v2619, %v2687
    %v2749 = vmul.f32 %v2620, %v2687
    %v2750 = vmul.f32 %v2621, %v2687
    %v2751 = vmul.f32 %v2622, %v2687
    %v2752 = vmul.f32 %v2623, %v2687
    %v2753 = vmul.f32 %v2624, %v2687
    %v2754 = vmul.f32 %v2625, %v2687
    %v2755 = vmul.f32 %v2626, %v2687
    %v2756 = vmul.f32 %v2627, %v2687
    %v2757 = vmul.f32 %v2628, %v2687
    %v2758 = vmul.f32 %v2629, %v2687
    %v2759 = vmul.f32 %v2630, %v2687
    %v2760 = vmul.f32 %v2631, %v2687
    %v2761 = vmul.f32 %v2632, %v2687
    %v2762 = vmul.f32 %v2633, %v2687
    %v2763 = vmul.f32 %v2634, %v2687
    %v2764 = vmul.f32 %v2635, %v2687
    %v2765 = vmul.f32 %v2636, %v2687
    %v2766 = vmul.f32 %v2637, %v2687
    %v2767 = vmul.f32 %v2638, %v2687
    %v2768 = vmul.f32 %v2639, %v2687
    %v2769 = vmul.f32 %v2640, %v2687
    %v2770 = vmul.f32 %v2641, %v2687
    %v2771 = vmul.f32 %v2642, %v2687
    %v2772 = vmul.f32 %v2643, %v2687
    %v2773 = vmul.f32 %v2644, %v2687
    %v2774 = vmul.f32 %v2645, %v2687
    %v2775 = vmul.f32 %v2646, %v2687
    %v2776 = vmul.f32 %v2647, %v2687
    %v2777 = vmul.f32 %v2648, %v2687
    %v2778 = vmul.f32 %v2649, %v2687
    %v2779 = vmul.f32 %v2650, %v2687
    %v2780 = vmul.f32 %v2651, %v2687
    %v2781 = vmul.f32 %v2652, %v2687
    %v2782 = vmul.f32 %v2653, %v2687
    %v2783 = vmul.f32 %v2654, %v2687
    %v2784 = vmul.f32 %v2655, %v2687
    %v2785 = vmul.f32 %v2656, %v2687
    %v2786 = vmul.f32 %v2657, %v2687
    %v2787 = vmul.f32 %v2658, %v2687
    %v2788 = vmul.f32 %v2659, %v2687
    %v2789 = vmul.f32 %v2660, %v2687
    %v2790 = vmul.f32 %v2661, %v2687
    %v2791 = vmul.f32 %v2662, %v2687
    %v2792 = vmul.f32 %v2663, %v2687
    %v2793 = vmul.f32 %v2664, %v2687
    %v2794 = vmul.f32 %v2665, %v2687
    %v2795 = vmul.f32 %v2666, %v2687
    %v2796 = vmul.f32 %v2667, %v2687
    %v2797 = vmul.f32 %v2668, %v2687
    %v2798 = vmul.f32 %v2669, %v2687
    %v2799 = vmul.f32 %v2670, %v2687
    %v2800 = vmul.f32 %v2671, %v2687
    %v2801 = vmul.f32 %v2672, %v2687
    %v2802 = vmul.f32 %v2673, %v2687
    %v2803 = vmul.f32 %v2674, %v2687
    %v2804 = vmul.f32 %v2675, %v2687
    %v2805 = vmul.f32 %v2676, %v2687
    %v2806 = vmul.f32 %v2677, %v2687
    %v2807 = vmul.f32 %v2678, %v2687
    %v2808 = vmul.f32 %v2679, %v2687
    %v2809 = vmul.f32 %v2680, %v2687
    %v2810 = vmul.f32 %v2681, %v2687
    %v2811 = vmul.f32 %v2682, %v2687
    %v2812 = vmul.f32 %v2683, %v2687
    %v2813 = vmul.f32 %v2684, %v2687
    %v2814 = vmul.f32 %v2685, %v2687
    %v2815 = vmul.f32 %v2686, %v2687
    %2816 = vadd.xlane.f32.xlu0 %v2688
    %v2817 = vpop.xlane.xlu0 %2816
    %2818 = vadd.xlane.f32.xlu0 %v2689
    %v2819 = vpop.xlane.xlu0 %2818
    %2820 = vadd.xlane.f32.xlu0 %v2690
    %v2821 = vpop.xlane.xlu0 %2820
    %2822 = vadd.xlane.f32.xlu0 %v2691
    %v2823 = vpop.xlane.xlu0 %2822
    %2824 = vadd.xlane.f32.xlu0 %v2692
    %v2825 = vpop.xlane.xlu0 %2824
    %2826 = vadd.xlane.f32.xlu0 %v2693
    %v2827 = vpop.xlane.xlu0 %2826
    %2828 = vadd.xlane.f32.xlu0 %v2694
    %v2829 = vpop.xlane.xlu0 %2828
    %2830 = vadd.xlane.f32.xlu0 %v2695
    %v2831 = vpop.xlane.xlu0 %2830
    %2832 = vadd.xlane.f32.xlu0 %v2696
    %v2833 = vpop.xlane.xlu0 %2832
    %2834 = vadd.xlane.f32.xlu0 %v2697
    %v2835 = vpop.xlane.xlu0 %2834
    %2836 = vadd.xlane.f32.xlu0 %v2698
    %v2837 = vpop.xlane.xlu0 %2836
    %2838 = vadd.xlane.f32.xlu0 %v2699
    %v2839 = vpop.xlane.xlu0 %2838
    %2840 = vadd.xlane.f32.xlu0 %v2700
    %v2841 = vpop.xlane.xlu0 %2840
    %2842 = vadd.xlane.f32.xlu0 %v2701
    %v2843 = vpop.xlane.xlu0 %2842
    %2844 = vadd.xlane.f32.xlu0 %v2702
    %v2845 = vpop.xlane.xlu0 %2844
    %2846 = vadd.xlane.f32.xlu0 %v2703
    %v2847 = vpop.xlane.xlu0 %2846
    %2848 = vadd.xlane.f32.xlu0 %v2704
    %v2849 = vpop.xlane.xlu0 %2848
    %2850 = vadd.xlane.f32.xlu0 %v2705
    %v2851 = vpop.xlane.xlu0 %2850
    %2852 = vadd.xlane.f32.xlu0 %v2706
    %v2853 = vpop.xlane.xlu0 %2852
    %2854 = vadd.xlane.f32.xlu0 %v2707
    %v2855 = vpop.xlane.xlu0 %2854
    %2856 = vadd.xlane.f32.xlu0 %v2708
    %v2857 = vpop.xlane.xlu0 %2856
    %2858 = vadd.xlane.f32.xlu0 %v2709
    %v2859 = vpop.xlane.xlu0 %2858
    %2860 = vadd.xlane.f32.xlu0 %v2710
    %v2861 = vpop.xlane.xlu0 %2860
    %2862 = vadd.xlane.f32.xlu0 %v2711
    %v2863 = vpop.xlane.xlu0 %2862
    %2864 = vadd.xlane.f32.xlu0 %v2712
    %v2865 = vpop.xlane.xlu0 %2864
    %2866 = vadd.xlane.f32.xlu0 %v2713
    %v2867 = vpop.xlane.xlu0 %2866
    %2868 = vadd.xlane.f32.xlu0 %v2714
    %v2869 = vpop.xlane.xlu0 %2868
    %2870 = vadd.xlane.f32.xlu0 %v2715
    %v2871 = vpop.xlane.xlu0 %2870
    %2872 = vadd.xlane.f32.xlu0 %v2716
    %v2873 = vpop.xlane.xlu0 %2872
    %2874 = vadd.xlane.f32.xlu0 %v2717
    %v2875 = vpop.xlane.xlu0 %2874
    %2876 = vadd.xlane.f32.xlu0 %v2718
    %v2877 = vpop.xlane.xlu0 %2876
    %2878 = vadd.xlane.f32.xlu0 %v2719
    %v2879 = vpop.xlane.xlu0 %2878
    %2880 = vadd.xlane.f32.xlu0 %v2720
    %v2881 = vpop.xlane.xlu0 %2880
    %2882 = vadd.xlane.f32.xlu0 %v2721
    %v2883 = vpop.xlane.xlu0 %2882
    %2884 = vadd.xlane.f32.xlu0 %v2722
    %v2885 = vpop.xlane.xlu0 %2884
    %2886 = vadd.xlane.f32.xlu0 %v2723
    %v2887 = vpop.xlane.xlu0 %2886
    %2888 = vadd.xlane.f32.xlu0 %v2724
    %v2889 = vpop.xlane.xlu0 %2888
    %2890 = vadd.xlane.f32.xlu0 %v2725
    %v2891 = vpop.xlane.xlu0 %2890
    %2892 = vadd.xlane.f32.xlu0 %v2726
    %v2893 = vpop.xlane.xlu0 %2892
    %2894 = vadd.xlane.f32.xlu0 %v2727
    %v2895 = vpop.xlane.xlu0 %2894
    %2896 = vadd.xlane.f32.xlu0 %v2728
    %v2897 = vpop.xlane.xlu0 %2896
    %2898 = vadd.xlane.f32.xlu0 %v2729
    %v2899 = vpop.xlane.xlu0 %2898
    %2900 = vadd.xlane.f32.xlu0 %v2730
    %v2901 = vpop.xlane.xlu0 %2900
    %2902 = vadd.xlane.f32.xlu0 %v2731
    %v2903 = vpop.xlane.xlu0 %2902
    %2904 = vadd.xlane.f32.xlu0 %v2732
    %v2905 = vpop.xlane.xlu0 %2904
    %2906 = vadd.xlane.f32.xlu0 %v2733
    %v2907 = vpop.xlane.xlu0 %2906
    %2908 = vadd.xlane.f32.xlu0 %v2734
    %v2909 = vpop.xlane.xlu0 %2908
    %2910 = vadd.xlane.f32.xlu0 %v2735
    %v2911 = vpop.xlane.xlu0 %2910
    %2912 = vadd.xlane.f32.xlu0 %v2736
    %v2913 = vpop.xlane.xlu0 %2912
    %2914 = vadd.xlane.f32.xlu0 %v2737
    %v2915 = vpop.xlane.xlu0 %2914
    %2916 = vadd.xlane.f32.xlu0 %v2738
    %v2917 = vpop.xlane.xlu0 %2916
    %2918 = vadd.xlane.f32.xlu0 %v2739
    %v2919 = vpop.xlane.xlu0 %2918
    %2920 = vadd.xlane.f32.xlu0 %v2740
    %v2921 = vpop.xlane.xlu0 %2920
    %2922 = vadd.xlane.f32.xlu0 %v2741
    %v2923 = vpop.xlane.xlu0 %2922
    %2924 = vadd.xlane.f32.xlu0 %v2742
    %v2925 = vpop.xlane.xlu0 %2924
    %2926 = vadd.xlane.f32.xlu0 %v2743
    %v2927 = vpop.xlane.xlu0 %2926
    %2928 = vadd.xlane.f32.xlu0 %v2744
    %v2929 = vpop.xlane.xlu0 %2928
    %2930 = vadd.xlane.f32.xlu0 %v2745
    %v2931 = vpop.xlane.xlu0 %2930
    %2932 = vadd.xlane.f32.xlu0 %v2746
    %v2933 = vpop.xlane.xlu0 %2932
    %2934 = vadd.xlane.f32.xlu0 %v2747
    %v2935 = vpop.xlane.xlu0 %2934
    %2936 = vadd.xlane.f32.xlu0 %v2748
    %v2937 = vpop.xlane.xlu0 %2936
    %2938 = vadd.xlane.f32.xlu0 %v2749
    %v2939 = vpop.xlane.xlu0 %2938
    %2940 = vadd.xlane.f32.xlu0 %v2750
    %v2941 = vpop.xlane.xlu0 %2940
    %2942 = vadd.xlane.f32.xlu0 %v2751
    %v2943 = vpop.xlane.xlu0 %2942
    %2944 = vadd.xlane.f32.xlu0 %v2752
    %v2945 = vpop.xlane.xlu0 %2944
    %2946 = vadd.xlane.f32.xlu0 %v2753
    %v2947 = vpop.xlane.xlu0 %2946
    %2948 = vadd.xlane.f32.xlu0 %v2754
    %v2949 = vpop.xlane.xlu0 %2948
    %2950 = vadd.xlane.f32.xlu0 %v2755
    %v2951 = vpop.xlane.xlu0 %2950
    %2952 = vadd.xlane.f32.xlu0 %v2756
    %v2953 = vpop.xlane.xlu0 %2952
    %2954 = vadd.xlane.f32.xlu0 %v2757
    %v2955 = vpop.xlane.xlu0 %2954
    %2956 = vadd.xlane.f32.xlu0 %v2758
    %v2957 = vpop.xlane.xlu0 %2956
    %2958 = vadd.xlane.f32.xlu0 %v2759
    %v2959 = vpop.xlane.xlu0 %2958
    %2960 = vadd.xlane.f32.xlu0 %v2760
    %v2961 = vpop.xlane.xlu0 %2960
    %2962 = vadd.xlane.f32.xlu0 %v2761
    %v2963 = vpop.xlane.xlu0 %2962
    %2964 = vadd.xlane.f32.xlu0 %v2762
    %v2965 = vpop.xlane.xlu0 %2964
    %2966 = vadd.xlane.f32.xlu0 %v2763
    %v2967 = vpop.xlane.xlu0 %2966
    %2968 = vadd.xlane.f32.xlu0 %v2764
    %v2969 = vpop.xlane.xlu0 %2968
    %2970 = vadd.xlane.f32.xlu0 %v2765
    %v2971 = vpop.xlane.xlu0 %2970
    %2972 = vadd.xlane.f32.xlu0 %v2766
    %v2973 = vpop.xlane.xlu0 %2972
    %2974 = vadd.xlane.f32.xlu0 %v2767
    %v2975 = vpop.xlane.xlu0 %2974
    %2976 = vadd.xlane.f32.xlu0 %v2768
    %v2977 = vpop.xlane.xlu0 %2976
    %2978 = vadd.xlane.f32.xlu0 %v2769
    %v2979 = vpop.xlane.xlu0 %2978
    %2980 = vadd.xlane.f32.xlu0 %v2770
    %v2981 = vpop.xlane.xlu0 %2980
    %2982 = vadd.xlane.f32.xlu0 %v2771
    %v2983 = vpop.xlane.xlu0 %2982
    %2984 = vadd.xlane.f32.xlu0 %v2772
    %v2985 = vpop.xlane.xlu0 %2984
    %2986 = vadd.xlane.f32.xlu0 %v2773
    %v2987 = vpop.xlane.xlu0 %2986
    %2988 = vadd.xlane.f32.xlu0 %v2774
    %v2989 = vpop.xlane.xlu0 %2988
    %2990 = vadd.xlane.f32.xlu0 %v2775
    %v2991 = vpop.xlane.xlu0 %2990
    %2992 = vadd.xlane.f32.xlu0 %v2776
    %v2993 = vpop.xlane.xlu0 %2992
    %2994 = vadd.xlane.f32.xlu0 %v2777
    %v2995 = vpop.xlane.xlu0 %2994
    %2996 = vadd.xlane.f32.xlu0 %v2778
    %v2997 = vpop.xlane.xlu0 %2996
    %2998 = vadd.xlane.f32.xlu0 %v2779
    %v2999 = vpop.xlane.xlu0 %2998
    %3000 = vadd.xlane.f32.xlu0 %v2780
    %v3001 = vpop.xlane.xlu0 %3000
    %3002 = vadd.xlane.f32.xlu0 %v2781
    %v3003 = vpop.xlane.xlu0 %3002
    %3004 = vadd.xlane.f32.xlu0 %v2782
    %v3005 = vpop.xlane.xlu0 %3004
    %3006 = vadd.xlane.f32.xlu0 %v2783
    %v3007 = vpop.xlane.xlu0 %3006
    %3008 = vadd.xlane.f32.xlu0 %v2784
    %v3009 = vpop.xlane.xlu0 %3008
    %3010 = vadd.xlane.f32.xlu0 %v2785
    %v3011 = vpop.xlane.xlu0 %3010
    %3012 = vadd.xlane.f32.xlu0 %v2786
    %v3013 = vpop.xlane.xlu0 %3012
    %3014 = vadd.xlane.f32.xlu0 %v2787
    %v3015 = vpop.xlane.xlu0 %3014
    %3016 = vadd.xlane.f32.xlu0 %v2788
    %v3017 = vpop.xlane.xlu0 %3016
    %3018 = vadd.xlane.f32.xlu0 %v2789
    %v3019 = vpop.xlane.xlu0 %3018
    %3020 = vadd.xlane.f32.xlu0 %v2790
    %v3021 = vpop.xlane.xlu0 %3020
    %3022 = vadd.xlane.f32.xlu0 %v2791
    %v3023 = vpop.xlane.xlu0 %3022
    %3024 = vadd.xlane.f32.xlu0 %v2792
    %v3025 = vpop.xlane.xlu0 %3024
    %3026 = vadd.xlane.f32.xlu0 %v2793
    %v3027 = vpop.xlane.xlu0 %3026
    %3028 = vadd.xlane.f32.xlu0 %v2794
    %v3029 = vpop.xlane.xlu0 %3028
    %3030 = vadd.xlane.f32.xlu0 %v2795
    %v3031 = vpop.xlane.xlu0 %3030
    %3032 = vadd.xlane.f32.xlu0 %v2796
    %v3033 = vpop.xlane.xlu0 %3032
    %3034 = vadd.xlane.f32.xlu0 %v2797
    %v3035 = vpop.xlane.xlu0 %3034
    %3036 = vadd.xlane.f32.xlu0 %v2798
    %v3037 = vpop.xlane.xlu0 %3036
    %3038 = vadd.xlane.f32.xlu0 %v2799
    %v3039 = vpop.xlane.xlu0 %3038
    %3040 = vadd.xlane.f32.xlu0 %v2800
    %v3041 = vpop.xlane.xlu0 %3040
    %3042 = vadd.xlane.f32.xlu0 %v2801
    %v3043 = vpop.xlane.xlu0 %3042
    %3044 = vadd.xlane.f32.xlu0 %v2802
    %v3045 = vpop.xlane.xlu0 %3044
    %3046 = vadd.xlane.f32.xlu0 %v2803
    %v3047 = vpop.xlane.xlu0 %3046
    %3048 = vadd.xlane.f32.xlu0 %v2804
    %v3049 = vpop.xlane.xlu0 %3048
    %3050 = vadd.xlane.f32.xlu0 %v2805
    %v3051 = vpop.xlane.xlu0 %3050
    %3052 = vadd.xlane.f32.xlu0 %v2806
    %v3053 = vpop.xlane.xlu0 %3052
    %3054 = vadd.xlane.f32.xlu0 %v2807
    %v3055 = vpop.xlane.xlu0 %3054
    %3056 = vadd.xlane.f32.xlu0 %v2808
    %v3057 = vpop.xlane.xlu0 %3056
    %3058 = vadd.xlane.f32.xlu0 %v2809
    %v3059 = vpop.xlane.xlu0 %3058
    %3060 = vadd.xlane.f32.xlu0 %v2810
    %v3061 = vpop.xlane.xlu0 %3060
    %3062 = vadd.xlane.f32.xlu0 %v2811
    %v3063 = vpop.xlane.xlu0 %3062
    %3064 = vadd.xlane.f32.xlu0 %v2812
    %v3065 = vpop.xlane.xlu0 %3064
    %3066 = vadd.xlane.f32.xlu0 %v2813
    %v3067 = vpop.xlane.xlu0 %3066
    %3068 = vadd.xlane.f32.xlu0 %v2814
    %v3069 = vpop.xlane.xlu0 %3068
    %3070 = vadd.xlane.f32.xlu0 %v2815
    %v3071 = vpop.xlane.xlu0 %3070
    %v3072 = vld [vmem:[#allocation13] sm:$0xff]
    %v3073 = vld [vmem:[#allocation13 + $0x8] sm:$0xff]
    %v3074 = vld [vmem:[#allocation13 + $0x10] sm:$0xff]
    %v3075 = vld [vmem:[#allocation13 + $0x18] sm:$0xff]
    %vm3076 = vcmp.gt.f32.partialorder %v3072, 0.0
    %vm3077 = vcmp.gt.f32.partialorder %v3073, 0.0
    %vm3078 = vcmp.gt.f32.partialorder %v3074, 0.0
    %vm3079 = vcmp.gt.f32.partialorder %v3075, 0.0
    %v3208 = vlaneseq
    %v3209 = vand.u32 %v3208, 127
    %v3210 = vperm.slane %v2817, %v3209
    %v3211 = vadd.s32 %v3209, 4294967288
    %v3212 = vperm.slane %v2819, %v3211
    %vm3213 = vcmask 130112
    %v3214 = vsel %vm3213, %v3212, %v3210
    %v3215 = vadd.s32 %v3209, 4294967280
    %v3216 = vperm.slane %v2821, %v3215
    %vm3217 = vcmask 195712
    %v3218 = vsel %vm3217, %v3216, %v3214
    %v3219 = vadd.s32 %v3209, 4294967272
    %v3220 = vperm.slane %v2823, %v3219
    %vm3221 = vcmask 261312
    %v3222 = vsel %vm3221, %v3220, %v3218
    %v3223 = vperm.slane %v2825, %v3209
    %v3224 = vperm.slane %v2827, %v3211
    %v3225 = vsel %vm3213, %v3224, %v3223
    %v3226 = vperm.slane %v2829, %v3215
    %v3227 = vsel %vm3217, %v3226, %v3225
    %v3228 = vperm.slane %v2831, %v3219
    %v3229 = vsel %vm3221, %v3228, %v3227
    %v3230 = vperm.slane %v2833, %v3209
    %v3231 = vperm.slane %v2835, %v3211
    %v3232 = vsel %vm3213, %v3231, %v3230
    %v3233 = vperm.slane %v2837, %v3215
    %v3234 = vsel %vm3217, %v3233, %v3232
    %v3235 = vperm.slane %v2839, %v3219
    %v3236 = vsel %vm3221, %v3235, %v3234
    %v3237 = vperm.slane %v2841, %v3209
    %v3238 = vperm.slane %v2843, %v3211
    %v3239 = vsel %vm3213, %v3238, %v3237
    %v3240 = vperm.slane %v2845, %v3215
    %v3241 = vsel %vm3217, %v3240, %v3239
    %v3242 = vperm.slane %v2847, %v3219
    %v3243 = vsel %vm3221, %v3242, %v3241
    %v3244 = vperm.slane %v2849, %v3209
    %v3245 = vperm.slane %v2851, %v3211
    %v3246 = vsel %vm3213, %v3245, %v3244
    %v3247 = vperm.slane %v2853, %v3215
    %v3248 = vsel %vm3217, %v3247, %v3246
    %v3249 = vperm.slane %v2855, %v3219
    %v3250 = vsel %vm3221, %v3249, %v3248
    %v3251 = vperm.slane %v2857, %v3209
    %v3252 = vperm.slane %v2859, %v3211
    %v3253 = vsel %vm3213, %v3252, %v3251
    %v3254 = vperm.slane %v2861, %v3215
    %v3255 = vsel %vm3217, %v3254, %v3253
    %v3256 = vperm.slane %v2863, %v3219
    %v3257 = vsel %vm3221, %v3256, %v3255
    %v3258 = vperm.slane %v2865, %v3209
    %v3259 = vperm.slane %v2867, %v3211
    %v3260 = vsel %vm3213, %v3259, %v3258
    %v3261 = vperm.slane %v2869, %v3215
    %v3262 = vsel %vm3217, %v3261, %v3260
    %v3263 = vperm.slane %v2871, %v3219
    %v3264 = vsel %vm3221, %v3263, %v3262
    %v3265 = vperm.slane %v2873, %v3209
    %v3266 = vperm.slane %v2875, %v3211
    %v3267 = vsel %vm3213, %v3266, %v3265
    %v3268 = vperm.slane %v2877, %v3215
    %v3269 = vsel %vm3217, %v3268, %v3267
    %v3270 = vperm.slane %v2879, %v3219
    %v3271 = vsel %vm3221, %v3270, %v3269
    %v3272 = vperm.slane %v2881, %v3209
    %v3273 = vperm.slane %v2883, %v3211
    %v3274 = vsel %vm3213, %v3273, %v3272
    %v3275 = vperm.slane %v2885, %v3215
    %v3276 = vsel %vm3217, %v3275, %v3274
    %v3277 = vperm.slane %v2887, %v3219
    %v3278 = vsel %vm3221, %v3277, %v3276
    %v3279 = vperm.slane %v2889, %v3209
    %v3280 = vperm.slane %v2891, %v3211
    %v3281 = vsel %vm3213, %v3280, %v3279
    %v3282 = vperm.slane %v2893, %v3215
    %v3283 = vsel %vm3217, %v3282, %v3281
    %v3284 = vperm.slane %v2895, %v3219
    %v3285 = vsel %vm3221, %v3284, %v3283
    %v3286 = vperm.slane %v2897, %v3209
    %v3287 = vperm.slane %v2899, %v3211
    %v3288 = vsel %vm3213, %v3287, %v3286
    %v3289 = vperm.slane %v2901, %v3215
    %v3290 = vsel %vm3217, %v3289, %v3288
    %v3291 = vperm.slane %v2903, %v3219
    %v3292 = vsel %vm3221, %v3291, %v3290
    %v3293 = vperm.slane %v2905, %v3209
    %v3294 = vperm.slane %v2907, %v3211
    %v3295 = vsel %vm3213, %v3294, %v3293
    %v3296 = vperm.slane %v2909, %v3215
    %v3297 = vsel %vm3217, %v3296, %v3295
    %v3298 = vperm.slane %v2911, %v3219
    %v3299 = vsel %vm3221, %v3298, %v3297
    %v3300 = vperm.slane %v2913, %v3209
    %v3301 = vperm.slane %v2915, %v3211
    %v3302 = vsel %vm3213, %v3301, %v3300
    %v3303 = vperm.slane %v2917, %v3215
    %v3304 = vsel %vm3217, %v3303, %v3302
    %v3305 = vperm.slane %v2919, %v3219
    %v3306 = vsel %vm3221, %v3305, %v3304
    %v3307 = vperm.slane %v2921, %v3209
    %v3308 = vperm.slane %v2923, %v3211
    %v3309 = vsel %vm3213, %v3308, %v3307
    %v3310 = vperm.slane %v2925, %v3215
    %v3311 = vsel %vm3217, %v3310, %v3309
    %v3312 = vperm.slane %v2927, %v3219
    %v3313 = vsel %vm3221, %v3312, %v3311
    %v3314 = vperm.slane %v2929, %v3209
    %v3315 = vperm.slane %v2931, %v3211
    %v3316 = vsel %vm3213, %v3315, %v3314
    %v3317 = vperm.slane %v2933, %v3215
    %v3318 = vsel %vm3217, %v3317, %v3316
    %v3319 = vperm.slane %v2935, %v3219
    %v3320 = vsel %vm3221, %v3319, %v3318
    %v3321 = vperm.slane %v2937, %v3209
    %v3322 = vperm.slane %v2939, %v3211
    %v3323 = vsel %vm3213, %v3322, %v3321
    %v3324 = vperm.slane %v2941, %v3215
    %v3325 = vsel %vm3217, %v3324, %v3323
    %v3326 = vperm.slane %v2943, %v3219
    %v3327 = vsel %vm3221, %v3326, %v3325
    %v3328 = vperm.slane %v2945, %v3209
    %v3329 = vperm.slane %v2947, %v3211
    %v3330 = vsel %vm3213, %v3329, %v3328
    %v3331 = vperm.slane %v2949, %v3215
    %v3332 = vsel %vm3217, %v3331, %v3330
    %v3333 = vperm.slane %v2951, %v3219
    %v3334 = vsel %vm3221, %v3333, %v3332
    %v3335 = vperm.slane %v2953, %v3209
    %v3336 = vperm.slane %v2955, %v3211
    %v3337 = vsel %vm3213, %v3336, %v3335
    %v3338 = vperm.slane %v2957, %v3215
    %v3339 = vsel %vm3217, %v3338, %v3337
    %v3340 = vperm.slane %v2959, %v3219
    %v3341 = vsel %vm3221, %v3340, %v3339
    %v3342 = vperm.slane %v2961, %v3209
    %v3343 = vperm.slane %v2963, %v3211
    %v3344 = vsel %vm3213, %v3343, %v3342
    %v3345 = vperm.slane %v2965, %v3215
    %v3346 = vsel %vm3217, %v3345, %v3344
    %v3347 = vperm.slane %v2967, %v3219
    %v3348 = vsel %vm3221, %v3347, %v3346
    %v3349 = vperm.slane %v2969, %v3209
    %v3350 = vperm.slane %v2971, %v3211
    %v3351 = vsel %vm3213, %v3350, %v3349
    %v3352 = vperm.slane %v2973, %v3215
    %v3353 = vsel %vm3217, %v3352, %v3351
    %v3354 = vperm.slane %v2975, %v3219
    %v3355 = vsel %vm3221, %v3354, %v3353
    %v3356 = vperm.slane %v2977, %v3209
    %v3357 = vperm.slane %v2979, %v3211
    %v3358 = vsel %vm3213, %v3357, %v3356
    %v3359 = vperm.slane %v2981, %v3215
    %v3360 = vsel %vm3217, %v3359, %v3358
    %v3361 = vperm.slane %v2983, %v3219
    %v3362 = vsel %vm3221, %v3361, %v3360
    %v3363 = vperm.slane %v2985, %v3209
    %v3364 = vperm.slane %v2987, %v3211
    %v3365 = vsel %vm3213, %v3364, %v3363
    %v3366 = vperm.slane %v2989, %v3215
    %v3367 = vsel %vm3217, %v3366, %v3365
    %v3368 = vperm.slane %v2991, %v3219
    %v3369 = vsel %vm3221, %v3368, %v3367
    %v3370 = vperm.slane %v2993, %v3209
    %v3371 = vperm.slane %v2995, %v3211
    %v3372 = vsel %vm3213, %v3371, %v3370
    %v3373 = vperm.slane %v2997, %v3215
    %v3374 = vsel %vm3217, %v3373, %v3372
    %v3375 = vperm.slane %v2999, %v3219
    %v3376 = vsel %vm3221, %v3375, %v3374
    %v3377 = vperm.slane %v3001, %v3209
    %v3378 = vperm.slane %v3003, %v3211
    %v3379 = vsel %vm3213, %v3378, %v3377
    %v3380 = vperm.slane %v3005, %v3215
    %v3381 = vsel %vm3217, %v3380, %v3379
    %v3382 = vperm.slane %v3007, %v3219
    %v3383 = vsel %vm3221, %v3382, %v3381
    %v3384 = vperm.slane %v3009, %v3209
    %v3385 = vperm.slane %v3011, %v3211
    %v3386 = vsel %vm3213, %v3385, %v3384
    %v3387 = vperm.slane %v3013, %v3215
    %v3388 = vsel %vm3217, %v3387, %v3386
    %v3389 = vperm.slane %v3015, %v3219
    %v3390 = vsel %vm3221, %v3389, %v3388
    %v3391 = vperm.slane %v3017, %v3209
    %v3392 = vperm.slane %v3019, %v3211
    %v3393 = vsel %vm3213, %v3392, %v3391
    %v3394 = vperm.slane %v3021, %v3215
    %v3395 = vsel %vm3217, %v3394, %v3393
    %v3396 = vperm.slane %v3023, %v3219
    %v3397 = vsel %vm3221, %v3396, %v3395
    %v3398 = vperm.slane %v3025, %v3209
    %v3399 = vperm.slane %v3027, %v3211
    %v3400 = vsel %vm3213, %v3399, %v3398
    %v3401 = vperm.slane %v3029, %v3215
    %v3402 = vsel %vm3217, %v3401, %v3400
    %v3403 = vperm.slane %v3031, %v3219
    %v3404 = vsel %vm3221, %v3403, %v3402
    %v3405 = vperm.slane %v3033, %v3209
    %v3406 = vperm.slane %v3035, %v3211
    %v3407 = vsel %vm3213, %v3406, %v3405
    %v3408 = vperm.slane %v3037, %v3215
    %v3409 = vsel %vm3217, %v3408, %v3407
    %v3410 = vperm.slane %v3039, %v3219
    %v3411 = vsel %vm3221, %v3410, %v3409
    %v3412 = vperm.slane %v3041, %v3209
    %v3413 = vperm.slane %v3043, %v3211
    %v3414 = vsel %vm3213, %v3413, %v3412
    %v3415 = vperm.slane %v3045, %v3215
    %v3416 = vsel %vm3217, %v3415, %v3414
    %v3417 = vperm.slane %v3047, %v3219
    %v3418 = vsel %vm3221, %v3417, %v3416
    %v3419 = vperm.slane %v3049, %v3209
    %v3420 = vperm.slane %v3051, %v3211
    %v3421 = vsel %vm3213, %v3420, %v3419
    %v3422 = vperm.slane %v3053, %v3215
    %v3423 = vsel %vm3217, %v3422, %v3421
    %v3424 = vperm.slane %v3055, %v3219
    %v3425 = vsel %vm3221, %v3424, %v3423
    %v3426 = vperm.slane %v3057, %v3209
    %v3427 = vperm.slane %v3059, %v3211
    %v3428 = vsel %vm3213, %v3427, %v3426
    %v3429 = vperm.slane %v3061, %v3215
    %v3430 = vsel %vm3217, %v3429, %v3428
    %v3431 = vperm.slane %v3063, %v3219
    %v3432 = vsel %vm3221, %v3431, %v3430
    %v3433 = vperm.slane %v3065, %v3209
    %v3434 = vperm.slane %v3067, %v3211
    %v3435 = vsel %vm3213, %v3434, %v3433
    %v3436 = vperm.slane %v3069, %v3215
    %v3437 = vsel %vm3217, %v3436, %v3435
    %v3438 = vperm.slane %v3071, %v3219
    %v3439 = vsel %vm3221, %v3438, %v3437
    %vm3440 = vcmask 1041409
    %v3441 = vsel %vm3440, %v3229, %v3222
    %vm3442 = vcmask 1042434
    %v3443 = vsel %vm3442, %v3236, %v3441
    %vm3444 = vcmask 1043459
    %v3445 = vsel %vm3444, %v3243, %v3443
    %vm3446 = vcmask 1044484
    %v3447 = vsel %vm3446, %v3250, %v3445
    %vm3448 = vcmask 1045509
    %v3449 = vsel %vm3448, %v3257, %v3447
    %vm3450 = vcmask 1046534
    %v3451 = vsel %vm3450, %v3264, %v3449
    %vm3452 = vcmask 1047559
    %v3453 = vsel %vm3452, %v3271, %v3451
    %v3454 = vsel %vm3440, %v3285, %v3278
    %v3455 = vsel %vm3442, %v3292, %v3454
    %v3456 = vsel %vm3444, %v3299, %v3455
    %v3457 = vsel %vm3446, %v3306, %v3456
    %v3458 = vsel %vm3448, %v3313, %v3457
    %v3459 = vsel %vm3450, %v3320, %v3458
    %v3460 = vsel %vm3452, %v3327, %v3459
    %v3461 = vsel %vm3440, %v3341, %v3334
    %v3462 = vsel %vm3442, %v3348, %v3461
    %v3463 = vsel %vm3444, %v3355, %v3462
    %v3464 = vsel %vm3446, %v3362, %v3463
    %v3465 = vsel %vm3448, %v3369, %v3464
    %v3466 = vsel %vm3450, %v3376, %v3465
    %v3467 = vsel %vm3452, %v3383, %v3466
    %v3468 = vsel %vm3440, %v3397, %v3390
    %v3469 = vsel %vm3442, %v3404, %v3468
    %v3470 = vsel %vm3444, %v3411, %v3469
    %v3471 = vsel %vm3446, %v3418, %v3470
    %v3472 = vsel %vm3448, %v3425, %v3471
    %v3473 = vsel %vm3450, %v3432, %v3472
    %v3474 = vsel %vm3452, %v3439, %v3473
    %v3479 = vsel %vm3076, %v3453, -1e+30
    %v3480 = vsel %vm3077, %v3460, -1e+30
    %v3481 = vsel %vm3078, %v3467, -1e+30
    %v3482 = vsel %vm3079, %v3474, -1e+30
    %vm3483 = vcmask 261120
    %v3484 = vsel %vm3483, %v3479, -inf
    %3485 = vmax.xlane.f32.xlu0 %v3484
    %v3486 = vpop.xlane.xlu0 %3485
    %v3487 = vsel %vm3483, %v3480, -inf
    %3488 = vmax.xlane.f32.xlu0 %v3487
    %v3489 = vpop.xlane.xlu0 %3488
    %v3490 = vsel %vm3483, %v3481, -inf
    %3491 = vmax.xlane.f32.xlu0 %v3490
    %v3492 = vpop.xlane.xlu0 %3491
    %v3493 = vsel %vm3483, %v3482, -inf
    %3494 = vmax.xlane.f32.xlu0 %v3493
    %v3495 = vpop.xlane.xlu0 %3494
    %v3496 = vsub.f32 %v3479, %v3486
    %v3497 = vsub.f32 %v3480, %v3489
    %v3498 = vsub.f32 %v3481, %v3492
    %v3499 = vsub.f32 %v3482, %v3495
    %v3500 = vmul.f32 %v3496, 1.442695
    %v3501 = vpow.pop %v3500
    %v3502 = vmul.f32 %v3497, 1.442695
    %v3503 = vpow.pop %v3502
    %v3504 = vmul.f32 %v3498, 1.442695
    %v3505 = vpow.pop %v3504
    %v3506 = vmul.f32 %v3499, 1.442695
    %v3507 = vpow.pop %v3506
    %v3508 = vsel %vm3483, %v3501, 0.0
    %3509 = vadd.xlane.f32.xlu0 %v3508
    %v3510 = vpop.xlane.xlu0 %3509
    %v3511 = vsel %vm3483, %v3503, 0.0
    %3512 = vadd.xlane.f32.xlu0 %v3511
    %v3513 = vpop.xlane.xlu0 %3512
    %v3514 = vsel %vm3483, %v3505, 0.0
    %3515 = vadd.xlane.f32.xlu0 %v3514
    %v3516 = vpop.xlane.xlu0 %3515
    %v3517 = vsel %vm3483, %v3507, 0.0
    %3518 = vadd.xlane.f32.xlu0 %v3517
    %v3519 = vpop.xlane.xlu0 %3518
    %v3520 = vrcp.pop %v3510
    %v3521 = vmul.f32 %v3510, %v3520
    %v3522 = vsub.f32 1.0, %v3521
    %v3523 = vmul.f32 %v3520, %v3522
    %v3524 = vadd.f32 %v3520, %v3523
    %vm3525 = vweird.f32 %v3510
    %vm3526 = vweird.f32 %v3520
    %vm3527 = vmor %vm3525, %vm3526
    %v3528 = vsel %vm3527, %v3520, %v3524
    %v3529 = vand.u32 2147483647, %v3510
    %vm3530 = vcmp.eq.f32.partialorder %v3529, 8.507059e+37
    %v3531 = vand.u32 %v3510, 2147483648
    %v3532 = vor.u32 1.1754944e-38, %v3531
    %v3533 = vsel %vm3530, %v3532, %v3528
    %v3534 = vmul.f32 %v3501, %v3533
    %v3535 = vrcp.pop %v3513
    %v3536 = vmul.f32 %v3513, %v3535
    %v3537 = vsub.f32 1.0, %v3536
    %v3538 = vmul.f32 %v3535, %v3537
    %v3539 = vadd.f32 %v3535, %v3538
    %vm3540 = vweird.f32 %v3513
    %vm3541 = vweird.f32 %v3535
    %vm3542 = vmor %vm3540, %vm3541
    %v3543 = vsel %vm3542, %v3535, %v3539
    %v3544 = vand.u32 2147483647, %v3513
    %vm3545 = vcmp.eq.f32.partialorder %v3544, 8.507059e+37
    %v3546 = vand.u32 %v3513, 2147483648
    %v3547 = vor.u32 1.1754944e-38, %v3546
    %v3548 = vsel %vm3545, %v3547, %v3543
    %v3549 = vmul.f32 %v3503, %v3548
    %v3550 = vrcp.pop %v3516
    %v3551 = vmul.f32 %v3516, %v3550
    %v3552 = vsub.f32 1.0, %v3551
    %v3553 = vmul.f32 %v3550, %v3552
    %v3554 = vadd.f32 %v3550, %v3553
    %vm3555 = vweird.f32 %v3516
    %vm3556 = vweird.f32 %v3550
    %vm3557 = vmor %vm3555, %vm3556
    %v3558 = vsel %vm3557, %v3550, %v3554
    %v3559 = vand.u32 2147483647, %v3516
    %vm3560 = vcmp.eq.f32.partialorder %v3559, 8.507059e+37
    %v3561 = vand.u32 %v3516, 2147483648
    %v3562 = vor.u32 1.1754944e-38, %v3561
    %v3563 = vsel %vm3560, %v3562, %v3558
    %v3564 = vmul.f32 %v3505, %v3563
    %v3565 = vrcp.pop %v3519
    %v3566 = vmul.f32 %v3519, %v3565
    %v3567 = vsub.f32 1.0, %v3566
    %v3568 = vmul.f32 %v3565, %v3567
    %v3569 = vadd.f32 %v3565, %v3568
    %vm3570 = vweird.f32 %v3519
    %vm3571 = vweird.f32 %v3565
    %vm3572 = vmor %vm3570, %vm3571
    %v3573 = vsel %vm3572, %v3565, %v3569
    %v3574 = vand.u32 2147483647, %v3519
    %vm3575 = vcmp.eq.f32.partialorder %v3574, 8.507059e+37
    %v3576 = vand.u32 %v3519, 2147483648
    %v3577 = vor.u32 1.1754944e-38, %v3576
    %v3578 = vsel %vm3575, %v3577, %v3573
    %v3579 = vmul.f32 %v3507, %v3578
    %v3581 = vsel %vm3483, %v3534, 0
    %v3584 = vsel %vm3483, %v3549, 0
    %v3587 = vsel %vm3483, %v3564, 0
    %v3590 = vsel %vm3483, %v3579, 0
    %3592 = vmatpush.msra.mxu0 0.0
    %3593 = vmatpush.msra.mxu0 0.0
    %3594 = vmatpush.msra.mxu0 0.0
    %3595 = vmatpush.msra.mxu0 0.0
    %3596 = vmatpush.msra.mxu0 0.0
    %3597 = vmatpush.msra.mxu0 0.0
    %3598 = vmatpush.msra.mxu0 0.0
    %3599 = vmatpush.msra.mxu0 0.0
    %3600 = vmatpush.msra.mxu0 0.0
    %3601 = vmatpush.msra.mxu0 0.0
    %3602 = vmatpush.msra.mxu0 0.0
    %3603 = vmatpush.msra.mxu0 0.0
    %3604 = vmatpush.msra.mxu0 %v1821
    %3605 = vmatpush.msra.mxu0 %v1819
    %3606 = vmatpush.msra.mxu0 %v1816
    %3607 = vmatpush.msra.mxu0 %v1814
    %3608 = vmatmul.f32.gmra.mxu0 %v3581
    %v3609 = vpop.f32.mrf.mxu0
    %v3610 = vadd.f32 0.0, %v3609
    %3611 = vmatmul.f32.gmra.mxu0 %v3584
    %v3612 = vpop.f32.mrf.mxu0
    %v3613 = vadd.f32 0.0, %v3612
    %3614 = vmatmul.f32.gmra.mxu0 %v3587
    %v3615 = vpop.f32.mrf.mxu0
    %v3616 = vadd.f32 0.0, %v3615
    %3617 = vmatmul.f32.gmra.mxu0 %v3590
    %v3618 = vpop.f32.mrf.mxu0
    %v3619 = vadd.f32 0.0, %v3618
    %3620 = vdwg.mxu0
    %v3621 = vld [vmem:[%s9] sm:$0xff]
    %v3623 = vsel %vm3483, %v3621, 0
    %3625 = vmatpush.msra.mxu0 0.0
    %3626 = vmatpush.msra.mxu0 0.0
    %3627 = vmatpush.msra.mxu0 0.0
    %3628 = vmatpush.msra.mxu0 0.0
    %3629 = vmatpush.msra.mxu0 0.0
    %3630 = vmatpush.msra.mxu0 0.0
    %3631 = vmatpush.msra.mxu0 0.0
    %3632 = vmatpush.msra.mxu0 0.0
    %3633 = vmatpush.msra.mxu0 0.0
    %3634 = vmatpush.msra.mxu0 0.0
    %3635 = vmatpush.msra.mxu0 0.0
    %3636 = vmatpush.msra.mxu0 0.0
    %3637 = vmatpush.msra.mxu0 %v3619
    %3638 = vmatpush.msra.mxu0 %v3616
    %3639 = vmatpush.msra.mxu0 %v3613
    %3640 = vmatpush.msra.mxu0 %v3610
    %3641 = vmatmul.f32.gmra.mxu0 %v3623
    %v3642 = vpop.f32.mrf.mxu0
    %v3643 = vadd.f32 0.0, %v3642
    %3644 = vdwg.mxu0
    %v3645 = vld [vmem:[#allocation16] sm:$0xf]
    %v3646 = vld [vmem:[#allocation16 + $0x4] sm:$0xf]
    %v3647 = vld [vmem:[#allocation16 + $0x8] sm:$0xf]
    %v3648 = vld [vmem:[#allocation16 + $0xc] sm:$0xf]
    %v3649 = vld [vmem:[#allocation16 + $0x10] sm:$0xf]
    %v3650 = vld [vmem:[#allocation16 + $0x14] sm:$0xf]
    %v3651 = vld [vmem:[#allocation16 + $0x18] sm:$0xf]
    %v3652 = vld [vmem:[#allocation16 + $0x1c] sm:$0xf]
    %v3653 = vld [vmem:[#allocation16 + $0x20] sm:$0xf]
    %v3654 = vld [vmem:[#allocation16 + $0x24] sm:$0xf]
    %v3655 = vld [vmem:[#allocation16 + $0x28] sm:$0xf]
    %v3656 = vld [vmem:[#allocation16 + $0x2c] sm:$0xf]
    %v3657 = vld [vmem:[#allocation16 + $0x30] sm:$0xf]
    %v3658 = vld [vmem:[#allocation16 + $0x34] sm:$0xf]
    %v3659 = vld [vmem:[#allocation16 + $0x38] sm:$0xf]
    %v3660 = vld [vmem:[#allocation16 + $0x3c] sm:$0xf]
    %v3661 = vpack.c.bf16 %v3643, %v3643
    %v3662 = vperm.slane %v257, 2
    %v3679 = vunpack.c.l.b16 %v3645
    %v3680 = vunpack.c.l.b16 %v3646
    %v3681 = vunpack.c.l.b16 %v3647
    %v3682 = vunpack.c.l.b16 %v3648
    %v3683 = vunpack.c.l.b16 %v3649
    %v3684 = vunpack.c.l.b16 %v3650
    %v3685 = vunpack.c.l.b16 %v3651
    %v3686 = vunpack.c.l.b16 %v3652
    %v3687 = vunpack.c.l.b16 %v3653
    %v3688 = vunpack.c.l.b16 %v3654
    %v3689 = vunpack.c.l.b16 %v3655
    %v3690 = vunpack.c.l.b16 %v3656
    %v3691 = vunpack.c.l.b16 %v3657
    %v3692 = vunpack.c.l.b16 %v3658
    %v3693 = vunpack.c.l.b16 %v3659
    %v3694 = vunpack.c.l.b16 %v3660
    %v3695 = vpack.c.b16 %v3680, %v3679
    %v3696 = vpack.c.b16 %v3682, %v3681
    %v3697 = vpack.c.b16 %v3684, %v3683
    %v3698 = vpack.c.b16 %v3686, %v3685
    %v3699 = vpack.c.b16 %v3688, %v3687
    %v3700 = vpack.c.b16 %v3690, %v3689
    %v3701 = vpack.c.b16 %v3692, %v3691
    %v3702 = vpack.c.b16 %v3694, %v3693
    %3711 = vmatpush.bf16.msra.mxu0 %v3702
    %3712 = vmatpush.bf16.msra.mxu0 %v3701
    %3713 = vmatpush.bf16.msra.mxu0 %v3700
    %3714 = vmatpush.bf16.msra.mxu0 %v3699
    %3715 = vmatpush.bf16.msra.mxu0 %v3698
    %3716 = vmatpush.bf16.msra.mxu0 %v3697
    %3717 = vmatpush.bf16.msra.mxu0 %v3696
    %3718 = vmatpush.bf16.msra.mxu0 %v3695
    %3719 = vmatmul.bf16.gmra.mxu0 %v3661
    %v3720 = vpop.f32.mrf.mxu0
    %v3721 = vadd.f32 %v3662, %v3720
    %v3722 = vpop.f32.mrf.mxu0
    %3723 = vdwg.mxu0
    %v3724 = vld [vmem:[#allocation17] sm:$0xf]
    %v3725 = vld [vmem:[#allocation17 + $0x4] sm:$0xf]
    %v3726 = vld [vmem:[#allocation17 + $0x8] sm:$0xf]
    %v3727 = vld [vmem:[#allocation17 + $0xc] sm:$0xf]
    %v3728 = vld [vmem:[#allocation17 + $0x10] sm:$0xf]
    %v3729 = vld [vmem:[#allocation17 + $0x14] sm:$0xf]
    %v3730 = vld [vmem:[#allocation17 + $0x18] sm:$0xf]
    %v3731 = vld [vmem:[#allocation17 + $0x1c] sm:$0xf]
    %v3732 = vld [vmem:[#allocation17 + $0x20] sm:$0xf]
    %v3733 = vld [vmem:[#allocation17 + $0x24] sm:$0xf]
    %v3734 = vld [vmem:[#allocation17 + $0x28] sm:$0xf]
    %v3735 = vld [vmem:[#allocation17 + $0x2c] sm:$0xf]
    %v3736 = vld [vmem:[#allocation17 + $0x30] sm:$0xf]
    %v3737 = vld [vmem:[#allocation17 + $0x34] sm:$0xf]
    %v3738 = vld [vmem:[#allocation17 + $0x38] sm:$0xf]
    %v3739 = vld [vmem:[#allocation17 + $0x3c] sm:$0xf]
    %v3740 = vld [vmem:[#allocation19] sm:$0xff]
    %v3741 = vld [vmem:[#allocation19 + $0x8] sm:$0xff]
    %v3742 = vld [vmem:[#allocation19 + $0x10] sm:$0xff]
    %v3743 = vld [vmem:[#allocation19 + $0x18] sm:$0xff]
    %v3744 = vld [vmem:[#allocation19 + $0x20] sm:$0xff]
    %v3745 = vld [vmem:[#allocation19 + $0x28] sm:$0xff]
    %v3746 = vld [vmem:[#allocation19 + $0x30] sm:$0xff]
    %v3747 = vld [vmem:[#allocation19 + $0x38] sm:$0xff]
    %v3748 = vld [vmem:[#allocation19 + $0x40] sm:$0xff]
    %v3749 = vld [vmem:[#allocation19 + $0x48] sm:$0xff]
    %v3750 = vld [vmem:[#allocation19 + $0x50] sm:$0xff]
    %v3751 = vld [vmem:[#allocation19 + $0x58] sm:$0xff]
    %v3752 = vld [vmem:[#allocation19 + $0x60] sm:$0xff]
    %v3753 = vld [vmem:[#allocation19 + $0x68] sm:$0xff]
    %v3754 = vld [vmem:[#allocation19 + $0x70] sm:$0xff]
    %v3755 = vld [vmem:[#allocation19 + $0x78] sm:$0xff]
    %v3756 = vld [vmem:[#allocation20] sm:$0xff]
    %v3757 = vld [vmem:[#allocation20 + $0x8] sm:$0xff]
    %v3758 = vld [vmem:[#allocation20 + $0x10] sm:$0xff]
    %v3759 = vld [vmem:[#allocation20 + $0x18] sm:$0xff]
    %v3760 = vld [vmem:[#allocation20 + $0x20] sm:$0xff]
    %v3761 = vld [vmem:[#allocation20 + $0x28] sm:$0xff]
    %v3762 = vld [vmem:[#allocation20 + $0x30] sm:$0xff]
    %v3763 = vld [vmem:[#allocation20 + $0x38] sm:$0xff]
    %v3764 = vld [vmem:[#allocation20 + $0x40] sm:$0xff]
    %v3765 = vld [vmem:[#allocation20 + $0x48] sm:$0xff]
    %v3766 = vld [vmem:[#allocation20 + $0x50] sm:$0xff]
    %v3767 = vld [vmem:[#allocation20 + $0x58] sm:$0xff]
    %v3768 = vld [vmem:[#allocation20 + $0x60] sm:$0xff]
    %v3769 = vld [vmem:[#allocation20 + $0x68] sm:$0xff]
    %v3770 = vld [vmem:[#allocation20 + $0x70] sm:$0xff]
    %v3771 = vld [vmem:[#allocation20 + $0x78] sm:$0xff]
    %v3772 = vld [vmem:[#allocation20 + $0x80] sm:$0xff]
    %v3773 = vld [vmem:[#allocation20 + $0x88] sm:$0xff]
    %v3774 = vld [vmem:[#allocation20 + $0x90] sm:$0xff]
    %v3775 = vld [vmem:[#allocation20 + $0x98] sm:$0xff]
    %v3776 = vld [vmem:[#allocation20 + $0xa0] sm:$0xff]
    %v3777 = vld [vmem:[#allocation20 + $0xa8] sm:$0xff]
    %v3778 = vld [vmem:[#allocation20 + $0xb0] sm:$0xff]
    %v3779 = vld [vmem:[#allocation20 + $0xb8] sm:$0xff]
    %v3780 = vld [vmem:[#allocation20 + $0xc0] sm:$0xff]
    %v3781 = vld [vmem:[#allocation20 + $0xc8] sm:$0xff]
    %v3782 = vld [vmem:[#allocation20 + $0xd0] sm:$0xff]
    %v3783 = vld [vmem:[#allocation20 + $0xd8] sm:$0xff]
    %v3784 = vld [vmem:[#allocation20 + $0xe0] sm:$0xff]
    %v3785 = vld [vmem:[#allocation20 + $0xe8] sm:$0xff]
    %v3786 = vld [vmem:[#allocation20 + $0xf0] sm:$0xff]
    %v3787 = vld [vmem:[#allocation20 + $0xf8] sm:$0xff]
    %v3788 = vpack.c.bf16 %v3721, %v3721
    %v3789 = vperm.slane %v257, 3
    %v3806 = vunpack.c.l.b16 %v3724
    %v3807 = vunpack.c.l.b16 %v3725
    %v3808 = vunpack.c.l.b16 %v3726
    %v3809 = vunpack.c.l.b16 %v3727
    %v3810 = vunpack.c.l.b16 %v3728
    %v3811 = vunpack.c.l.b16 %v3729
    %v3812 = vunpack.c.l.b16 %v3730
    %v3813 = vunpack.c.l.b16 %v3731
    %v3814 = vunpack.c.l.b16 %v3732
    %v3815 = vunpack.c.l.b16 %v3733
    %v3816 = vunpack.c.l.b16 %v3734
    %v3817 = vunpack.c.l.b16 %v3735
    %v3818 = vunpack.c.l.b16 %v3736
    %v3819 = vunpack.c.l.b16 %v3737
    %v3820 = vunpack.c.l.b16 %v3738
    %v3821 = vunpack.c.l.b16 %v3739
    %v3822 = vpack.c.b16 %v3807, %v3806
    %v3823 = vpack.c.b16 %v3809, %v3808
    %v3824 = vpack.c.b16 %v3811, %v3810
    %v3825 = vpack.c.b16 %v3813, %v3812
    %v3826 = vpack.c.b16 %v3815, %v3814
    %v3827 = vpack.c.b16 %v3817, %v3816
    %v3828 = vpack.c.b16 %v3819, %v3818
    %v3829 = vpack.c.b16 %v3821, %v3820
    %3838 = vmatpush.bf16.msra.mxu0 %v3829
    %3839 = vmatpush.bf16.msra.mxu0 %v3828
    %3840 = vmatpush.bf16.msra.mxu0 %v3827
    %3841 = vmatpush.bf16.msra.mxu0 %v3826
    %3842 = vmatpush.bf16.msra.mxu0 %v3825
    %3843 = vmatpush.bf16.msra.mxu0 %v3824
    %3844 = vmatpush.bf16.msra.mxu0 %v3823
    %3845 = vmatpush.bf16.msra.mxu0 %v3822
    %3846 = vmatmul.bf16.gmra.mxu0 %v3788
    %v3847 = vpop.f32.mrf.mxu0
    %v3848 = vadd.f32 %v3789, %v3847
    %v3849 = vpop.f32.mrf.mxu0
    %3850 = vdwg.mxu0
    %v3851 = vrot.slane %v3848, 4
    %v3852 = vadd.f32 %v3848, %v3851
    %v3853 = vrot.slane %v3852, 2
    %v3854 = vadd.f32 %v3852, %v3853
    %v3855 = vrot.slane %v3854, 1
    %v3856 = vadd.f32 %v3854, %v3855
    %v3857 = vmul.f32 %v3856, %v1197
    %v3858 = vsub.f32 %v3848, %v3857
    %v3859 = vmul.f32 %v3858, %v3858
    %v3860 = vrot.slane %v3859, 4
    %v3861 = vadd.f32 %v3859, %v3860
    %v3862 = vrot.slane %v3861, 2
    %v3863 = vadd.f32 %v3861, %v3862
    %v3864 = vrot.slane %v3863, 1
    %v3865 = vadd.f32 %v3863, %v3864
    %v3866 = vmul.f32 %v3865, %v1197
    %v3867 = vadd.f32 %v3866, 1e-05
    %v3868 = vrsqrt.pop %v3867
    %v3869 = vmul.f32 %v3868, %v3867
    %v3870 = vmul.f32 %v3869, %v3868
    %v3871 = vmul.f32 0.5, %v3870
    %v3872 = vsub.f32 1.5, %v3871
    %v3873 = vmul.f32 %v3868, %v3872
    %vm3874 = vweird.f32 %v3867
    %vm3875 = vweird.f32 %v3868
    %vm3876 = vmor %vm3874, %vm3875
    %v3877 = vsel %vm3876, %v3868, %v3873
    %v3878 = vmul.f32 %v3858, %v3877
    %v3879 = vperm.slane %v257, 4
    %v3880 = vmul.f32 %v3878, %v3879
    %v3881 = vperm.slane %v257, 5
    %v3882 = vadd.f32 %v3880, %v3881
    %v3883 = vmax.f32 %v3882, 0.0
    %v3884 = vpack.c.bf16 %v3883, %v3883
    %v3885 = vperm.slane %v257, 6
    %v3886 = vperm.slane %v258, 6
    %v3903 = vunpack.c.l.b16 %v3740
    %v3904 = vunpack.c.h.b16 %v3740
    %v3905 = vunpack.c.l.b16 %v3741
    %v3906 = vunpack.c.h.b16 %v3741
    %v3907 = vunpack.c.l.b16 %v3742
    %v3908 = vunpack.c.h.b16 %v3742
    %v3909 = vunpack.c.l.b16 %v3743
    %v3910 = vunpack.c.h.b16 %v3743
    %v3911 = vunpack.c.l.b16 %v3744
    %v3912 = vunpack.c.h.b16 %v3744
    %v3913 = vunpack.c.l.b16 %v3745
    %v3914 = vunpack.c.h.b16 %v3745
    %v3915 = vunpack.c.l.b16 %v3746
    %v3916 = vunpack.c.h.b16 %v3746
    %v3917 = vunpack.c.l.b16 %v3747
    %v3918 = vunpack.c.h.b16 %v3747
    %v3919 = vunpack.c.l.b16 %v3748
    %v3920 = vunpack.c.h.b16 %v3748
    %v3921 = vunpack.c.l.b16 %v3749
    %v3922 = vunpack.c.h.b16 %v3749
    %v3923 = vunpack.c.l.b16 %v3750
    %v3924 = vunpack.c.h.b16 %v3750
    %v3925 = vunpack.c.l.b16 %v3751
    %v3926 = vunpack.c.h.b16 %v3751
    %v3927 = vunpack.c.l.b16 %v3752
    %v3928 = vunpack.c.h.b16 %v3752
    %v3929 = vunpack.c.l.b16 %v3753
    %v3930 = vunpack.c.h.b16 %v3753
    %v3931 = vunpack.c.l.b16 %v3754
    %v3932 = vunpack.c.h.b16 %v3754
    %v3933 = vunpack.c.l.b16 %v3755
    %v3934 = vunpack.c.h.b16 %v3755
    %v3935 = vpack.c.b16 %v3905, %v3903
    %v3936 = vpack.c.b16 %v3906, %v3904
    %v3937 = vpack.c.b16 %v3909, %v3907
    %v3938 = vpack.c.b16 %v3910, %v3908
    %v3939 = vpack.c.b16 %v3913, %v3911
    %v3940 = vpack.c.b16 %v3914, %v3912
    %v3941 = vpack.c.b16 %v3917, %v3915
    %v3942 = vpack.c.b16 %v3918, %v3916
    %v3943 = vpack.c.b16 %v3921, %v3919
    %v3944 = vpack.c.b16 %v3922, %v3920
    %v3945 = vpack.c.b16 %v3925, %v3923
    %v3946 = vpack.c.b16 %v3926, %v3924
    %v3947 = vpack.c.b16 %v3929, %v3927
    %v3948 = vpack.c.b16 %v3930, %v3928
    %v3949 = vpack.c.b16 %v3933, %v3931
    %v3950 = vpack.c.b16 %v3934, %v3932
    %3967 = vmatpush.bf16.msra.mxu0 %v3949
    %3968 = vmatpush.bf16.msra.mxu0 %v3947
    %3969 = vmatpush.bf16.msra.mxu0 %v3945
    %3970 = vmatpush.bf16.msra.mxu0 %v3943
    %3971 = vmatpush.bf16.msra.mxu0 %v3941
    %3972 = vmatpush.bf16.msra.mxu0 %v3939
    %3973 = vmatpush.bf16.msra.mxu0 %v3937
    %3974 = vmatpush.bf16.msra.mxu0 %v3935
    %3975 = vmatmul.bf16.gmra.mxu0 %v3884
    %v3976 = vpop.f32.mrf.mxu0
    %v3977 = vadd.f32 %v3885, %v3976
    %v3978 = vpop.f32.mrf.mxu0
    %3979 = vdwg.mxu0
    %3980 = vmatpush.bf16.msra.mxu0 %v3950
    %3981 = vmatpush.bf16.msra.mxu0 %v3948
    %3982 = vmatpush.bf16.msra.mxu0 %v3946
    %3983 = vmatpush.bf16.msra.mxu0 %v3944
    %3984 = vmatpush.bf16.msra.mxu0 %v3942
    %3985 = vmatpush.bf16.msra.mxu0 %v3940
    %3986 = vmatpush.bf16.msra.mxu0 %v3938
    %3987 = vmatpush.bf16.msra.mxu0 %v3936
    %3988 = vmatmul.bf16.gmra.mxu0 %v3884
    %v3989 = vpop.f32.mrf.mxu0
    %v3990 = vadd.f32 %v3886, %v3989
    %v3991 = vpop.f32.mrf.mxu0
    %3992 = vdwg.mxu0
    %v3993 = vrot.slane %v3977, 4
    %v3994 = vadd.f32 %v3977, %v3993
    %v3995 = vrot.slane %v3994, 2
    %v3996 = vadd.f32 %v3994, %v3995
    %v3997 = vrot.slane %v3996, 1
    %v3998 = vadd.f32 %v3996, %v3997
    %v3999 = vrot.slane %v3990, 4
    %v4000 = vadd.f32 %v3990, %v3999
    %v4001 = vrot.slane %v4000, 2
    %v4002 = vadd.f32 %v4000, %v4001
    %v4003 = vrot.slane %v4002, 1
    %v4004 = vadd.f32 %v4002, %v4003
    %v4005 = vmul.f32 %v3998, %v1197
    %v4006 = vmul.f32 %v4004, %v1197
    %v4007 = vsub.f32 %v3977, %v4005
    %v4008 = vsub.f32 %v3990, %v4006
    %v4009 = vmul.f32 %v4007, %v4007
    %v4010 = vmul.f32 %v4008, %v4008
    %v4011 = vrot.slane %v4009, 4
    %v4012 = vadd.f32 %v4009, %v4011
    %v4013 = vrot.slane %v4012, 2
    %v4014 = vadd.f32 %v4012, %v4013
    %v4015 = vrot.slane %v4014, 1
    %v4016 = vadd.f32 %v4014, %v4015
    %v4017 = vrot.slane %v4010, 4
    %v4018 = vadd.f32 %v4010, %v4017
    %v4019 = vrot.slane %v4018, 2
    %v4020 = vadd.f32 %v4018, %v4019
    %v4021 = vrot.slane %v4020, 1
    %v4022 = vadd.f32 %v4020, %v4021
    %v4023 = vmul.f32 %v4016, %v1197
    %v4024 = vmul.f32 %v4022, %v1197
    %v4025 = vadd.f32 %v4023, 1e-05
    %v4026 = vadd.f32 %v4024, 1e-05
    %v4027 = vrsqrt.pop %v4025
    %v4028 = vmul.f32 %v4027, %v4025
    %v4029 = vmul.f32 %v4028, %v4027
    %v4030 = vmul.f32 0.5, %v4029
    %v4031 = vsub.f32 1.5, %v4030
    %v4032 = vmul.f32 %v4027, %v4031
    %vm4033 = vweird.f32 %v4025
    %vm4034 = vweird.f32 %v4027
    %vm4035 = vmor %vm4033, %vm4034
    %v4036 = vsel %vm4035, %v4027, %v4032
    %v4037 = vrsqrt.pop %v4026
    %v4038 = vmul.f32 %v4037, %v4026
    %v4039 = vmul.f32 %v4038, %v4037
    %v4040 = vmul.f32 0.5, %v4039
    %v4041 = vsub.f32 1.5, %v4040
    %v4042 = vmul.f32 %v4037, %v4041
    %vm4043 = vweird.f32 %v4026
    %vm4044 = vweird.f32 %v4037
    %vm4045 = vmor %vm4043, %vm4044
    %v4046 = vsel %vm4045, %v4037, %v4042
    %v4047 = vmul.f32 %v4007, %v4036
    %v4048 = vmul.f32 %v4008, %v4046
    %v4049 = vperm.slane %v257, 7
    %v4050 = vperm.slane %v258, 7
    %v4051 = vmul.f32 %v4047, %v4049
    %v4052 = vmul.f32 %v4048, %v4050
    %v4053 = vperm.slane %v259, 0
    %v4054 = vperm.slane %v260, 0
    %v4055 = vadd.f32 %v4051, %v4053
    %v4056 = vadd.f32 %v4052, %v4054
    %v4057 = vmax.f32 %v4055, 0.0
    %v4058 = vmax.f32 %v4056, 0.0
    %v4059 = vpack.c.bf16 %v4057, %v4057
    %v4060 = vpack.c.bf16 %v4058, %v4058
    %v4061 = vperm.slane %v259, 1
    %v4062 = vperm.slane %v260, 1
    %v4095 = vunpack.c.l.b16 %v3756
    %v4096 = vunpack.c.h.b16 %v3756
    %v4097 = vunpack.c.l.b16 %v3757
    %v4098 = vunpack.c.h.b16 %v3757
    %v4099 = vunpack.c.l.b16 %v3758
    %v4100 = vunpack.c.h.b16 %v3758
    %v4101 = vunpack.c.l.b16 %v3759
    %v4102 = vunpack.c.h.b16 %v3759
    %v4103 = vunpack.c.l.b16 %v3760
    %v4104 = vunpack.c.h.b16 %v3760
    %v4105 = vunpack.c.l.b16 %v3761
    %v4106 = vunpack.c.h.b16 %v3761
    %v4107 = vunpack.c.l.b16 %v3762
    %v4108 = vunpack.c.h.b16 %v3762
    %v4109 = vunpack.c.l.b16 %v3763
    %v4110 = vunpack.c.h.b16 %v3763
    %v4111 = vunpack.c.l.b16 %v3764
    %v4112 = vunpack.c.h.b16 %v3764
    %v4113 = vunpack.c.l.b16 %v3765
    %v4114 = vunpack.c.h.b16 %v3765
    %v4115 = vunpack.c.l.b16 %v3766
    %v4116 = vunpack.c.h.b16 %v3766
    %v4117 = vunpack.c.l.b16 %v3767
    %v4118 = vunpack.c.h.b16 %v3767
    %v4119 = vunpack.c.l.b16 %v3768
    %v4120 = vunpack.c.h.b16 %v3768
    %v4121 = vunpack.c.l.b16 %v3769
    %v4122 = vunpack.c.h.b16 %v3769
    %v4123 = vunpack.c.l.b16 %v3770
    %v4124 = vunpack.c.h.b16 %v3770
    %v4125 = vunpack.c.l.b16 %v3771
    %v4126 = vunpack.c.h.b16 %v3771
    %v4127 = vunpack.c.l.b16 %v3772
    %v4128 = vunpack.c.h.b16 %v3772
    %v4129 = vunpack.c.l.b16 %v3773
    %v4130 = vunpack.c.h.b16 %v3773
    %v4131 = vunpack.c.l.b16 %v3774
    %v4132 = vunpack.c.h.b16 %v3774
    %v4133 = vunpack.c.l.b16 %v3775
    %v4134 = vunpack.c.h.b16 %v3775
    %v4135 = vunpack.c.l.b16 %v3776
    %v4136 = vunpack.c.h.b16 %v3776
    %v4137 = vunpack.c.l.b16 %v3777
    %v4138 = vunpack.c.h.b16 %v3777
    %v4139 = vunpack.c.l.b16 %v3778
    %v4140 = vunpack.c.h.b16 %v3778
    %v4141 = vunpack.c.l.b16 %v3779
    %v4142 = vunpack.c.h.b16 %v3779
    %v4143 = vunpack.c.l.b16 %v3780
    %v4144 = vunpack.c.h.b16 %v3780
    %v4145 = vunpack.c.l.b16 %v3781
    %v4146 = vunpack.c.h.b16 %v3781
    %v4147 = vunpack.c.l.b16 %v3782
    %v4148 = vunpack.c.h.b16 %v3782
    %v4149 = vunpack.c.l.b16 %v3783
    %v4150 = vunpack.c.h.b16 %v3783
    %v4151 = vunpack.c.l.b16 %v3784
    %v4152 = vunpack.c.h.b16 %v3784
    %v4153 = vunpack.c.l.b16 %v3785
    %v4154 = vunpack.c.h.b16 %v3785
    %v4155 = vunpack.c.l.b16 %v3786
    %v4156 = vunpack.c.h.b16 %v3786
    %v4157 = vunpack.c.l.b16 %v3787
    %v4158 = vunpack.c.h.b16 %v3787
    %v4159 = vpack.c.b16 %v4097, %v4095
    %v4160 = vpack.c.b16 %v4098, %v4096
    %v4161 = vpack.c.b16 %v4101, %v4099
    %v4162 = vpack.c.b16 %v4102, %v4100
    %v4163 = vpack.c.b16 %v4105, %v4103
    %v4164 = vpack.c.b16 %v4106, %v4104
    %v4165 = vpack.c.b16 %v4109, %v4107
    %v4166 = vpack.c.b16 %v4110, %v4108
    %v4167 = vpack.c.b16 %v4113, %v4111
    %v4168 = vpack.c.b16 %v4114, %v4112
    %v4169 = vpack.c.b16 %v4117, %v4115
    %v4170 = vpack.c.b16 %v4118, %v4116
    %v4171 = vpack.c.b16 %v4121, %v4119
    %v4172 = vpack.c.b16 %v4122, %v4120
    %v4173 = vpack.c.b16 %v4125, %v4123
    %v4174 = vpack.c.b16 %v4126, %v4124
    %v4175 = vpack.c.b16 %v4129, %v4127
    %v4176 = vpack.c.b16 %v4130, %v4128
    %v4177 = vpack.c.b16 %v4133, %v4131
    %v4178 = vpack.c.b16 %v4134, %v4132
    %v4179 = vpack.c.b16 %v4137, %v4135
    %v4180 = vpack.c.b16 %v4138, %v4136
    %v4181 = vpack.c.b16 %v4141, %v4139
    %v4182 = vpack.c.b16 %v4142, %v4140
    %v4183 = vpack.c.b16 %v4145, %v4143
    %v4184 = vpack.c.b16 %v4146, %v4144
    %v4185 = vpack.c.b16 %v4149, %v4147
    %v4186 = vpack.c.b16 %v4150, %v4148
    %v4187 = vpack.c.b16 %v4153, %v4151
    %v4188 = vpack.c.b16 %v4154, %v4152
    %v4189 = vpack.c.b16 %v4157, %v4155
    %v4190 = vpack.c.b16 %v4158, %v4156
    %4223 = vmatpush.bf16.msra.mxu0 %v4173
    %4224 = vmatpush.bf16.msra.mxu0 %v4171
    %4225 = vmatpush.bf16.msra.mxu0 %v4169
    %4226 = vmatpush.bf16.msra.mxu0 %v4167
    %4227 = vmatpush.bf16.msra.mxu0 %v4165
    %4228 = vmatpush.bf16.msra.mxu0 %v4163
    %4229 = vmatpush.bf16.msra.mxu0 %v4161
    %4230 = vmatpush.bf16.msra.mxu0 %v4159
    %4231 = vmatmul.bf16.gmra.mxu0 %v4059
    %v4232 = vpop.f32.mrf.mxu0
    %v4233 = vadd.f32 %v4061, %v4232
    %v4234 = vpop.f32.mrf.mxu0
    %4235 = vdwg.mxu0
    %4236 = vmatpush.bf16.msra.mxu0 %v4189
    %4237 = vmatpush.bf16.msra.mxu0 %v4187
    %4238 = vmatpush.bf16.msra.mxu0 %v4185
    %4239 = vmatpush.bf16.msra.mxu0 %v4183
    %4240 = vmatpush.bf16.msra.mxu0 %v4181
    %4241 = vmatpush.bf16.msra.mxu0 %v4179
    %4242 = vmatpush.bf16.msra.mxu0 %v4177
    %4243 = vmatpush.bf16.msra.mxu0 %v4175
    %4244 = vmatmul.bf16.gmra.mxu0 %v4060
    %v4245 = vpop.f32.mrf.mxu0
    %v4246 = vadd.f32 %v4233, %v4245
    %v4247 = vpop.f32.mrf.mxu0
    %4248 = vdwg.mxu0
    %4249 = vmatpush.bf16.msra.mxu0 %v4174
    %4250 = vmatpush.bf16.msra.mxu0 %v4172
    %4251 = vmatpush.bf16.msra.mxu0 %v4170
    %4252 = vmatpush.bf16.msra.mxu0 %v4168
    %4253 = vmatpush.bf16.msra.mxu0 %v4166
    %4254 = vmatpush.bf16.msra.mxu0 %v4164
    %4255 = vmatpush.bf16.msra.mxu0 %v4162
    %4256 = vmatpush.bf16.msra.mxu0 %v4160
    %4257 = vmatmul.bf16.gmra.mxu0 %v4059
    %v4258 = vpop.f32.mrf.mxu0
    %v4259 = vadd.f32 %v4062, %v4258
    %v4260 = vpop.f32.mrf.mxu0
    %4261 = vdwg.mxu0
    %4262 = vmatpush.bf16.msra.mxu0 %v4190
    %4263 = vmatpush.bf16.msra.mxu0 %v4188
    %4264 = vmatpush.bf16.msra.mxu0 %v4186
    %4265 = vmatpush.bf16.msra.mxu0 %v4184
    %4266 = vmatpush.bf16.msra.mxu0 %v4182
    %4267 = vmatpush.bf16.msra.mxu0 %v4180
    %4268 = vmatpush.bf16.msra.mxu0 %v4178
    %4269 = vmatpush.bf16.msra.mxu0 %v4176
    %4270 = vmatmul.bf16.gmra.mxu0 %v4060
    %v4271 = vpop.f32.mrf.mxu0
    %v4272 = vadd.f32 %v4259, %v4271
    %v4273 = vpop.f32.mrf.mxu0
    %4274 = vdwg.mxu0
    %4275 = vst [vmem:[#allocation23 + $0x10] sm:$0xff] %v4246
    %4276 = vst [vmem:[#allocation23 + $0x18] sm:$0xff] %v4272
    // Predicated region
    $region118: #{tpu_custom_call.1} parent=1 // pred_check
      _
    $region119: #{tpu_custom_call.1} parent=1 // pred_check_branch
      %4278 = sbr.rel (0) target = $region121
    $region120: #{tpu_custom_call.1} parent=1 // pred_region
      %4280 = vsyncadd [#allocation4], 0
      %s4282 = sshll.u32 [#allocation23], 4
      %s4283 = int_to_ptr.vmem [resolvable:$true] %s4282
      %s4284 = sshll.u32 %s16, 4
      %s4285 = int_to_ptr.hbm [resolvable:$true] %s4284
      %4287 = dma.vmem_to_hbm [thread:$0]  %s4283, 512, %s4285, [#allocation4]
    $region121: #{tpu_custom_call.1} parent=1 // pred_fallthru
      _
    // Predicated region
    $region122: #{tpu_custom_call.1} parent=1 // pred_check
      _
    $region123: #{tpu_custom_call.1} parent=1 // pred_check_branch
      %4289 = sbr.rel (0) target = $region125
    $region124: #{tpu_custom_call.1} parent=1 // pred_region
      %4291 = dma.done [#allocation4], 512
    $region125: #{tpu_custom_call.1} parent=1 // pred_fallthru
      _
    %4292 = vsyncpa [#allocation3], 1
    %4293 = vsyncpa [#allocation6], 1
    %4294 = vsyncpa [#allocation9], 1
    %4295 = vsyncpa [#allocation12], 1
    %4296 = vsyncpa [#allocation15], 1
    %4297 = vsyncpa [#allocation18], 1
    %4298 = vsyncpa [#allocation21], 1
    %4299 = vsyncpa [#allocation4], 1

</llo_original>
